<compile_context>
chip_gen: v7x
topology: tpu7x:2x2x1
jax: 0.10.0
libtpu: 0.0.40
codegen_flags: <defaults>
</compile_context>

<pallas_src>
import functools
import math

import jax
import jax.numpy as jnp
import numpy as np
from jax.experimental import pallas as pl
from jax.experimental.pallas import tpu as pltpu


# ----------------------------- small helpers (traced inside kernels) -----------------------

def _layernorm(x, w, b, eps=1e-5):
    mu = jnp.mean(x, axis=-1, keepdims=True)
    var = jnp.mean((x - mu) ** 2, axis=-1, keepdims=True)
    return (x - mu) * jax.lax.rsqrt(var + eps) * w + b


def _gelu_tanh(x):
    # TODO(synk): PyTorch nn.GELU() default is the exact erf form; erf has no guaranteed
    # Mosaic lowering, so the tanh approximation is used (max abs diff ~1e-3).
    c = math.sqrt(2.0 / math.pi)
    return 0.5 * x * (1.0 + jnp.tanh(c * (x + 0.044715 * x * x * x)))


# ----------------------------------- fused Pallas kernel -----------------------------------

def fused_decoder_kernel(x_ref, pos_ref, mask_ref,
                         wqkv_ref, wproj_ref, wfc1_ref, wfc2_ref,
                         vec_ref, bfc1_ref, norm_ref,
                         out_ref,
                         x_scr,
                         *, num_heads, depth, tail, b_tile, seq):
    """One grid step = (batch tile bt, layer l). Activation carried in x_scr (rows, C) f32."""
    l = pl.program_id(1)
    H = num_heads
    N = seq
    R, C = x_scr.shape              # R = b_tile * N packed rows

    @pl.when(l == 0)
    def _():
        x_scr[...] = x_ref[...].astype(jnp.float32)

    x = x_scr[...] + pos_ref[...].astype(jnp.float32)          # xin = x + pos   (R, C) f32

    # Packed per-layer vectors: rows [ln1_w, ln1_b, ln2_w, ln2_b, b_proj, b_fc2].
    vec = vec_ref[0]                                            # (6, C) f32
    ln1w, ln1b = vec[0:1, :], vec[1:2, :]
    ln2w, ln2b = vec[2:3, :], vec[3:4, :]
    bproj, bfc2 = vec[4:5, :], vec[5:6, :]

    # ---------------- attention branch (pre-LN), packed-sequence form ----------------
    h1 = _layernorm(x, ln1w, ln1b)
    xb = jnp.broadcast_to(h1.astype(jnp.bfloat16)[None], (H, R, C))   # head-batched lhs (bf16)

    wqkv = wqkv_ref[0]                                          # (3H, hd, C) bf16, Q pre-scaled
    dn_hm = (((2,), (2,)), ((0,), (0,)))                        # contract C, batch over heads
    q = jax.lax.dot_general(xb, wqkv[0:H], dn_hm, preferred_element_type=jnp.float32)
    k = jax.lax.dot_general(xb, wqkv[H:2 * H], dn_hm, preferred_element_type=jnp.float32)
    v = jax.lax.dot_general(xb, wqkv[2 * H:3 * H], dn_hm, preferred_element_type=jnp.float32)
    # q / k / v: (H, R, hd).  1/sqrt(hd) already folded into the Q weights.

    s = jax.lax.dot_general(q.astype(jnp.bfloat16), k.astype(jnp.bfloat16),
                            (((2,), (2,)), ((0,), (0,))),
                            preferred_element_type=jnp.float32)        # (H, R, R)
    s = s + mask_ref[...]                   # block-diagonal batch mask (0 / -1e30), exact
    s = s - jnp.max(s, axis=-1, keepdims=True)
    p = jnp.exp(s)
    p = p * pl.reciprocal(jnp.sum(p, axis=-1, keepdims=True), approx=True)

    o = jax.lax.dot_general(p.astype(jnp.bfloat16), v.astype(jnp.bfloat16),
                            (((2,), (1,)), ((0,), (0,))),
                            preferred_element_type=jnp.float32)        # (H, R, hd)
    o = o.astype(jnp.bfloat16)

    # Per-head proj accumulation into one (R, C) f32 accumulator (no (H, R, C) intermediate).
    wproj = wproj_ref[0]                                        # (H, hd, C) bf16
    attn = jax.lax.dot_general(o[0], wproj[0], (((1,), (0,)), ((), ())),
                               preferred_element_type=jnp.float32)
    for h in range(1, H):                                       # static unroll; H is small
        attn = attn + jax.lax.dot_general(o[h], wproj[h], (((1,), (0,)), ((), ())),
                                          preferred_element_type=jnp.float32)
    x = x + attn + bproj

    # ---------------- MLP branch (pre-LN) ----------------
    h2 = _layernorm(x, ln2w, ln2b)
    hmid = jnp.dot(h2.astype(jnp.bfloat16), wfc1_ref[0],
                   preferred_element_type=jnp.float32) + bfc1_ref[0]
    hmid = _gelu_tanh(hmid)
    mlp = jnp.dot(hmid.astype(jnp.bfloat16), wfc2_ref[0],
                  preferred_element_type=jnp.float32) + bfc2
    x = x + mlp

    x_scr[...] = x

    # Fused tail slice + final LayerNorm, written only on the last layer.
    @pl.when(l == depth - 1)
    def _():
        normv = norm_ref[...]                                   # (2, C): [w, b]
        normw, normb = normv[0:1, :], normv[1:2, :]
        for bt in range(b_tile):                                # static; only last layer
            rows = x[bt * N + N - tail: bt * N + N, :]
            out_ref[bt * tail:(bt + 1) * tail, :] = _layernorm(
                rows, normw, normb).astype(out_ref.dtype)


# ----------------------------------- wrapper -----------------------------------------------

def transformer_decoder_forward(x, pos, params, return_token_num, num_heads, b_tile=None):
    B, N, C = x.shape
    assert C % num_heads == 0
    depth = params["w_qkv"].shape[0]
    H = num_heads
    hidden = params["w_fc1"].shape[-1]
    tail = return_token_num

    # Whole batch resident by default (small B); choose a divisor of B that keeps
    # R = b_tile*N modest (packed-mask attention wastes (b_tile-1)/b_tile of score FLOPs).
    if b_tile is None:
        b_tile = B
    assert B % b_tile == 0
    R = b_tile * N

    # Packed-row layout: row r of a tile corresponds to (batch bt = r // N, token n = r % N).
    x2 = x.reshape(B * N, C)
    pos2 = pos.reshape(B * N, C)

    # Block-diagonal additive mask keeping attention within each packed sequence.
    row_block = np.arange(R) // N
    mask = jnp.asarray(
        np.where(row_block[:, None] == row_block[None, :], 0.0, -1e30).astype(np.float32))

    kernel = functools.partial(fused_decoder_kernel, num_heads=H, depth=depth,
                               tail=tail, b_tile=b_tile, seq=N)

    def per_layer(shape):     # weight slab for layer l (varies along the "arbitrary" axis)
        return pl.BlockSpec((1,) + shape, lambda b, l: (l,) + (0,) * len(shape))

    in_specs = [
        pl.BlockSpec((R, C), lambda b, l: (b, 0)),          # x   (packed rows)
        pl.BlockSpec((R, C), lambda b, l: (b, 0)),          # pos (packed rows)
        pl.BlockSpec((R, R), lambda b, l: (0, 0)),          # block-diag mask (constant)
        per_layer((3 * H, C // H, C)),                      # w_qkv head-major   (bf16)
        per_layer((H, C // H, C)),                          # w_proj head-major  (bf16)
        per_layer((C, hidden)),                             # w_fc1              (bf16)
        per_layer((hidden, C)),                             # w_fc2              (bf16)
        per_layer((6, C)),                                  # packed ln/bias vectors (f32)
        per_layer((1, hidden)),                             # b_fc1
        pl.BlockSpec((2, C), lambda b, l: (0, 0)),          # final norm [w; b]
    ]

    # Advisory cost model for XLA scheduling around this long fused call.
    flops_layer = (B * N * C * (8 * C + 4 * hidden)         # qkv + proj + fc1 + fc2
                   + 4 * B * b_tile * N * N * C)            # packed scores + pv
    transc_layer = B * b_tile * H * N * N + B * N * hidden  # softmax exp + gelu tanh
    layer_bytes = 2 * (4 * C * C + 2 * C * hidden) + 4 * (6 * C + hidden)
    bytes_accessed = ((B // b_tile) * depth * layer_bytes
                      + (2 * B * N * C + B * tail * C + R * R) * 4)
    cost = pl.CostEstimate(flops=int(depth * flops_layer),
                           transcendentals=int(depth * transc_layer),
                           bytes_accessed=int(bytes_accessed))

    # VMEM budget: double-buffered per-layer slab + resident activation + intermediates,
    # clamped to 3/4 of the device VMEM (128 MiB on v5e/v6e, 64 MiB on v7x).
    act_bytes = (R * C * 4 + H * R * C * 2 + H * R * R * 4
                 + 2 * R * hidden * 4 + 4 * R * C * 4)
    needed = 2 * layer_bytes + act_bytes + (8 << 20)
    try:
        vmem_cap = int(pltpu.get_tpu_info().vmem_capacity_bytes)
    except Exception:
        vmem_cap = 128 << 20
    vmem_limit = int(max(32 << 20, min(needed, (vmem_cap * 3) // 4)))

    y2 = pl.pallas_call(
        kernel,
        out_shape=jax.ShapeDtypeStruct((B * tail, C), x.dtype),
        grid_spec=pltpu.PrefetchScalarGridSpec(
            num_scalar_prefetch=0,
            grid=(B // b_tile, depth),                      # batch tiles outer, layers inner
            in_specs=in_specs,
            out_specs=pl.BlockSpec((b_tile * tail, C), lambda b, l: (b, 0)),
            scratch_shapes=[pltpu.VMEM((R, C), jnp.float32)],   # resident activation
        ),
        compiler_params=pltpu.CompilerParams(
            dimension_semantics=("parallel", "arbitrary"),
            vmem_limit_bytes=vmem_limit,
        ),
        cost_estimate=cost,
    )(x2, pos2, mask, params["w_qkv"], params["w_proj"], params["w_fc1"], params["w_fc2"],
      params["vec"], params["b_fc1"], params["norm"])

    return y2.reshape(B, tail, C)


# ----------------------------------- parameters --------------------------------------------

def init_params(key, embed_dim, depth, num_heads, mlp_ratio):
    C = embed_dim
    hidden = int(C * mlp_ratio)
    H = num_heads
    hd = C // H
    scale = float(hd) ** -0.5

    def xavier(k, fan_in, fan_out):
        bound = math.sqrt(6.0 / (fan_in + fan_out))
        return jax.random.uniform(k, (fan_in, fan_out), jnp.float32, -bound, bound)

    keys = jax.random.split(key, depth * 4)
    wqkv, wproj, wfc1, wfc2 = [], [], [], []
    for i in range(depth):
        kq, kp, k1, k2 = keys[4 * i:4 * i + 4]
        w = xavier(kq, C, 3 * C)                          # (C_in, 3C_out), qkv_bias=False
        w = w.at[:, :C].multiply(scale)                   # fold 1/sqrt(hd) into Q columns
        # head-major, out-major, lane-dense: (3H, hd, C_in)
        wqkv.append(w.T.reshape(3, H, hd, C).reshape(3 * H, hd, C))
        wproj.append(xavier(kp, C, C).reshape(H, hd, C))  # rows head-major -> (H, hd, C_out)
        wfc1.append(xavier(k1, C, hidden))
        wfc2.append(xavier(k2, hidden, C))

    # Packed per-layer vectors: rows [ln1_w, ln1_b, ln2_w, ln2_b, b_proj, b_fc2].
    vec = jnp.zeros((depth, 6, C), jnp.float32)
    vec = vec.at[:, 0, :].set(1.0).at[:, 2, :].set(1.0)

    return dict(
        w_qkv=jnp.stack(wqkv).astype(jnp.bfloat16),       # (depth, 3H, hd, C)
        w_proj=jnp.stack(wproj).astype(jnp.bfloat16),     # (depth, H, hd, C)
        w_fc1=jnp.stack(wfc1).astype(jnp.bfloat16),       # (depth, C, hidden)
        w_fc2=jnp.stack(wfc2).astype(jnp.bfloat16),       # (depth, hidden, C)
        vec=vec,                                          # (depth, 6, C)
        b_fc1=jnp.zeros((depth, 1, hidden), jnp.float32),
        norm=jnp.concatenate([jnp.ones((1, C), jnp.float32),
                              jnp.zeros((1, C), jnp.float32)], axis=0),   # (2, C): [w; b]
    )


# ----------------------------------- pure-JAX reference ------------------------------------
# Mirrors the kernel numerics (bf16 MXU inputs, f32 accumulation, f32 LN / softmax / GELU,
# scale pre-folded into the Q weights).

def reference_forward(x, pos, params, return_token_num, num_heads):
    depth = params["w_qkv"].shape[0]
    H = num_heads
    for l in range(depth):
        xin = x + pos
        vec = params["vec"][l]
        h1 = _layernorm(xin, vec[0], vec[1]).astype(jnp.bfloat16)
        wqkv = params["w_qkv"][l]
        q = jnp.einsum("bnc,hdc->bhnd", h1, wqkv[:H], preferred_element_type=jnp.float32)
        k = jnp.einsum("bnc,hdc->bhnd", h1, wqkv[H:2 * H], preferred_element_type=jnp.float32)
        v = jnp.einsum("bnc,hdc->bhnd", h1, wqkv[2 * H:], preferred_element_type=jnp.float32)
        s = jnp.einsum("bhqd,bhkd->bhqk", q.astype(jnp.bfloat16), k.astype(jnp.bfloat16),
                       preferred_element_type=jnp.float32)
        p = jax.nn.softmax(s, axis=-1)
        o = jnp.einsum("bhqk,bhkd->bhqd", p.astype(jnp.bfloat16), v.astype(jnp.bfloat16),
                       preferred_element_type=jnp.float32)
        attn = jnp.einsum("bhnd,hdc->bnc", o.astype(jnp.bfloat16), params["w_proj"][l],
                          preferred_element_type=jnp.float32) + vec[4]
        x = xin + attn

        h2 = _layernorm(x, vec[2], vec[3])
        hmid = jnp.dot(h2.astype(jnp.bfloat16), params["w_fc1"][l],
                       preferred_element_type=jnp.float32) + params["b_fc1"][l]
        hmid = _gelu_tanh(hmid)
        mlp = jnp.dot(hmid.astype(jnp.bfloat16), params["w_fc2"][l],
                      preferred_element_type=jnp.float32) + vec[5]
        x = x + mlp

    xt = x[:, -return_token_num:, :]
    return _layernorm(xt, params["norm"][0], params["norm"][1])


# ----------------------------------------- main ---------------------------------------------

if __name__ == "__main__":
    # Small but lane/sublane-aligned shapes (C multiple of 128, N multiple of 8).
    B, N, C = 2, 16, 128
    num_heads, depth, mlp_ratio = 4, 2, 4.0
    return_token_num = 8

    key = jax.random.PRNGKey(0)
    kx, kp, kw = jax.random.split(key, 3)
    x = jax.random.normal(kx, (B, N, C), jnp.float32)
    pos = jax.random.normal(kp, (B, N, C), jnp.float32)
    params = init_params(kw, C, depth, num_heads, mlp_ratio)

    y = transformer_decoder_forward(x, pos, params, return_token_num, num_heads)
    y = jax.block_until_ready(y)
    assert y.shape == (B, return_token_num, C)

    y_ref = reference_forward(x, pos, params, return_token_num, num_heads)
    # Tolerance budget: bf16 MXU inputs (mirrored in the reference) + approx EUP reciprocal
    # in the kernel softmax.
    np.testing.assert_allclose(np.asarray(y), np.asarray(y_ref), atol=1e-2, rtol=1e-2)

    print("KERNEL_OK")
</pallas_src>

<mosaic_0001>
module attributes {stable_mosaic.version = 11 : i64} {
  func.func @fused_decoder_kernel(%arg0: i32, %arg1: i32, %arg2: memref<32x128xf32, #tpu.memory_space<vmem>>, %arg3: memref<32x128xf32, #tpu.memory_space<vmem>>, %arg4: memref<32x32xf32, #tpu.memory_space<vmem>>, %arg5: memref<1x12x32x128xbf16, #tpu.memory_space<vmem>>, %arg6: memref<1x4x32x128xbf16, #tpu.memory_space<vmem>>, %arg7: memref<1x128x512xbf16, #tpu.memory_space<vmem>>, %arg8: memref<1x512x128xbf16, #tpu.memory_space<vmem>>, %arg9: memref<1x6x128xf32, #tpu.memory_space<vmem>>, %arg10: memref<1x1x512xf32, #tpu.memory_space<vmem>>, %arg11: memref<2x128xf32, #tpu.memory_space<vmem>>, %arg12: memref<16x128xf32, #tpu.memory_space<vmem>>, %arg13: memref<32x128xf32, #tpu.memory_space<vmem>>) attributes {dimension_semantics = [#tpu.dimension_semantics<parallel>, #tpu.dimension_semantics<arbitrary>], iteration_bounds = array<i64: 1, 2>, scalar_prefetch = 0 : i64, scratch_operands = 1 : i64, tpu.core_type = #tpu.core_type<tc>, window_params = [{transform_indices = @transform_0, window_bounds = array<i64: 32, 128>}, {transform_indices = @transform_1, window_bounds = array<i64: 32, 128>}, {pipeline_mode = #tpu.pipeline_mode<synchronous>, transform_indices = @transform_2, window_bounds = array<i64: 32, 32>}, {transform_indices = @transform_3, window_bounds = array<i64: 1, 12, 32, 128>}, {transform_indices = @transform_4, window_bounds = array<i64: 1, 4, 32, 128>}, {transform_indices = @transform_5, window_bounds = array<i64: 1, 128, 512>}, {transform_indices = @transform_6, window_bounds = array<i64: 1, 512, 128>}, {transform_indices = @transform_7, window_bounds = array<i64: 1, 6, 128>}, {transform_indices = @transform_8, window_bounds = array<i64: 1, 1, 512>}, {pipeline_mode = #tpu.pipeline_mode<synchronous>, transform_indices = @transform_9, window_bounds = array<i64: 2, 128>}, {transform_indices = @transform_10, window_bounds = array<i64: 16, 128>}]} {
    %c0_i32 = arith.constant 0 : i32
    %0 = arith.cmpi eq, %arg1, %c0_i32 : i32
    %1 = arith.extui %0 : i1 to i32
    %c0_i32_0 = arith.constant 0 : i32
    %2 = arith.cmpi ne, %1, %c0_i32_0 : i32
    scf.if %2 {
      %c0_55 = arith.constant 0 : index
      %c0_56 = arith.constant 0 : index
      %151 = vector.load %arg2[%c0_55, %c0_56] : memref<32x128xf32, #tpu.memory_space<vmem>>, vector<32x128xf32>
      %c0_57 = arith.constant 0 : index
      %c0_58 = arith.constant 0 : index
      %152 = vector.load %arg13[%c0_57, %c0_58] : memref<32x128xf32, #tpu.memory_space<vmem>>, vector<32x128xf32>
      tpu.vector_store %arg13[%c0_57, %c0_58], %151 {strides = array<i32>} : memref<32x128xf32, #tpu.memory_space<vmem>>, vector<32x128xf32>,
    } else {
    }
    %c0 = arith.constant 0 : index
    %c0_1 = arith.constant 0 : index
    %3 = vector.load %arg13[%c0, %c0_1] : memref<32x128xf32, #tpu.memory_space<vmem>>, vector<32x128xf32>
    %c0_2 = arith.constant 0 : index
    %c0_3 = arith.constant 0 : index
    %4 = vector.load %arg3[%c0_2, %c0_3] : memref<32x128xf32, #tpu.memory_space<vmem>>, vector<32x128xf32>
    %5 = arith.addf %3, %4 : vector<32x128xf32>
    %c0_4 = arith.constant 0 : index
    %c0_5 = arith.constant 0 : index
    %c0_6 = arith.constant 0 : index
    %6 = vector.load %arg9[%c0_4, %c0_5, %c0_6] : memref<1x6x128xf32, #tpu.memory_space<vmem>>, vector<1x6x128xf32>
    %7 = vector.shape_cast %6 : vector<1x6x128xf32> to vector<6x128xf32>
    %8 = vector.extract_strided_slice %7 {offsets = [0, 0], sizes = [1, 128], strides = [1, 1]} : vector<6x128xf32> to vector<1x128xf32>
    %9 = vector.extract_strided_slice %7 {offsets = [1, 0], sizes = [1, 128], strides = [1, 1]} : vector<6x128xf32> to vector<1x128xf32>
    %10 = vector.extract_strided_slice %7 {offsets = [2, 0], sizes = [1, 128], strides = [1, 1]} : vector<6x128xf32> to vector<1x128xf32>
    %11 = vector.extract_strided_slice %7 {offsets = [3, 0], sizes = [1, 128], strides = [1, 1]} : vector<6x128xf32> to vector<1x128xf32>
    %12 = vector.extract_strided_slice %7 {offsets = [4, 0], sizes = [1, 128], strides = [1, 1]} : vector<6x128xf32> to vector<1x128xf32>
    %13 = vector.extract_strided_slice %7 {offsets = [5, 0], sizes = [1, 128], strides = [1, 1]} : vector<6x128xf32> to vector<1x128xf32>
    %cst = arith.constant dense<0.000000e+00> : vector<32xf32>
    %14 = vector.multi_reduction <add>, %5, %cst [1] : vector<32x128xf32> to vector<32xf32>
    %15 = vector.shape_cast %14 : vector<32xf32> to vector<32x1xf32>
    %cst_7 = arith.constant 1.280000e+02 : f32
    %16 = vector.broadcast %cst_7 : f32 to vector<32x1xf32>
    %17 = arith.divf %15, %16 : vector<32x1xf32>
    %18 = vector.broadcast %17 : vector<32x1xf32> to vector<32x128xf32>
    %19 = arith.subf %5, %18 : vector<32x128xf32>
    %20 = arith.mulf %19, %19 : vector<32x128xf32>
    %cst_8 = arith.constant dense<0.000000e+00> : vector<32xf32>
    %21 = vector.multi_reduction <add>, %20, %cst_8 [1] : vector<32x128xf32> to vector<32xf32>
    %22 = vector.shape_cast %21 : vector<32xf32> to vector<32x1xf32>
    %cst_9 = arith.constant 1.280000e+02 : f32
    %23 = vector.broadcast %cst_9 : f32 to vector<32x1xf32>
    %24 = arith.divf %22, %23 : vector<32x1xf32>
    %25 = vector.broadcast %17 : vector<32x1xf32> to vector<32x128xf32>
    %26 = arith.subf %5, %25 : vector<32x128xf32>
    %cst_10 = arith.constant 9.99999974E-6 : f32
    %27 = vector.broadcast %cst_10 : f32 to vector<32x1xf32>
    %28 = arith.addf %24, %27 : vector<32x1xf32>
    %29 = math.rsqrt %28 : vector<32x1xf32>
    %30 = vector.broadcast %29 : vector<32x1xf32> to vector<32x128xf32>
    %31 = arith.mulf %26, %30 : vector<32x128xf32>
    %32 = vector.broadcast %8 : vector<1x128xf32> to vector<32x128xf32>
    %33 = arith.mulf %31, %32 : vector<32x128xf32>
    %34 = vector.broadcast %9 : vector<1x128xf32> to vector<32x128xf32>
    %35 = arith.addf %33, %34 : vector<32x128xf32>
    %36 = arith.truncf %35 : vector<32x128xf32> to vector<32x128xbf16>
    %37 = vector.shape_cast %36 : vector<32x128xbf16> to vector<1x32x128xbf16>
    %38 = vector.shape_cast %37 : vector<1x32x128xbf16> to vector<1x32x128xbf16>
    %39 = vector.broadcast %38 : vector<1x32x128xbf16> to vector<4x32x128xbf16>
    %c0_11 = arith.constant 0 : index
    %c0_12 = arith.constant 0 : index
    %c0_13 = arith.constant 0 : index
    %c0_14 = arith.constant 0 : index
    %40 = vector.load %arg5[%c0_11, %c0_12, %c0_13, %c0_14] : memref<1x12x32x128xbf16, #tpu.memory_space<vmem>>, vector<1x12x32x128xbf16>
    %41 = vector.shape_cast %40 : vector<1x12x32x128xbf16> to vector<12x32x128xbf16>
    %42 = vector.extract_strided_slice %41 {offsets = [0, 0, 0], sizes = [4, 32, 128], strides = [1, 1, 1]} : vector<12x32x128xbf16> to vector<4x32x128xbf16>
    %cst_15 = arith.constant dense<0.000000e+00> : vector<4x32x32xf32>
    %43 = tpu.matmul %39, %42, %cst_15 {dimension_numbers = #tpu.dot_dimension_numbers<[2], [2], [1], [1], [0, 0, 0, 1, 1, 1], [0], [0]>} : vector<4x32x128xbf16>, vector<4x32x128xbf16>, vector<4x32x32xf32> -> vector<4x32x32xf32>
    %44 = vector.extract_strided_slice %41 {offsets = [4, 0, 0], sizes = [4, 32, 128], strides = [1, 1, 1]} : vector<12x32x128xbf16> to vector<4x32x128xbf16>
    %cst_16 = arith.constant dense<0.000000e+00> : vector<4x32x32xf32>
    %45 = tpu.matmul %39, %44, %cst_16 {dimension_numbers = #tpu.dot_dimension_numbers<[2], [2], [1], [1], [0, 0, 0, 1, 1, 1], [0], [0]>} : vector<4x32x128xbf16>, vector<4x32x128xbf16>, vector<4x32x32xf32> -> vector<4x32x32xf32>
    %46 = vector.extract_strided_slice %41 {offsets = [8, 0, 0], sizes = [4, 32, 128], strides = [1, 1, 1]} : vector<12x32x128xbf16> to vector<4x32x128xbf16>
    %cst_17 = arith.constant dense<0.000000e+00> : vector<4x32x32xf32>
    %47 = tpu.matmul %39, %46, %cst_17 {dimension_numbers = #tpu.dot_dimension_numbers<[2], [2], [1], [1], [0, 0, 0, 1, 1, 1], [0], [0]>} : vector<4x32x128xbf16>, vector<4x32x128xbf16>, vector<4x32x32xf32> -> vector<4x32x32xf32>
    %48 = arith.truncf %43 : vector<4x32x32xf32> to vector<4x32x32xbf16>
    %49 = arith.truncf %45 : vector<4x32x32xf32> to vector<4x32x32xbf16>
    %cst_18 = arith.constant dense<0.000000e+00> : vector<4x32x32xf32>
    %50 = tpu.matmul %48, %49, %cst_18 {dimension_numbers = #tpu.dot_dimension_numbers<[2], [2], [1], [1], [0, 0, 0, 1, 1, 1], [0], [0]>} : vector<4x32x32xbf16>, vector<4x32x32xbf16>, vector<4x32x32xf32> -> vector<4x32x32xf32>
    %c0_19 = arith.constant 0 : index
    %c0_20 = arith.constant 0 : index
    %51 = vector.load %arg4[%c0_19, %c0_20] : memref<32x32xf32, #tpu.memory_space<vmem>>, vector<32x32xf32>
    %52 = vector.shape_cast %51 : vector<32x32xf32> to vector<1x32x32xf32>
    %53 = vector.broadcast %52 : vector<1x32x32xf32> to vector<4x32x32xf32>
    %54 = arith.addf %50, %53 : vector<4x32x32xf32>
    %cst_21 = arith.constant dense<0xFF800000> : vector<4x32xf32>
    %55 = vector.multi_reduction <maximumf>, %54, %cst_21 [2] : vector<4x32x32xf32> to vector<4x32xf32>
    %56 = vector.shape_cast %55 : vector<4x32xf32> to vector<4x32x1xf32>
    %57 = vector.broadcast %56 : vector<4x32x1xf32> to vector<4x32x32xf32>
    %58 = arith.subf %54, %57 : vector<4x32x32xf32>
    %59 = math.exp %58 : vector<4x32x32xf32>
    %cst_22 = arith.constant dense<0.000000e+00> : vector<4x32xf32>
    %60 = vector.multi_reduction <add>, %59, %cst_22 [2] : vector<4x32x32xf32> to vector<4x32xf32>
    %61 = vector.shape_cast %60 : vector<4x32xf32> to vector<4x32x1xf32>
    %62 = tpu.reciprocal %61 {approx = true} : vector<4x32x1xf32> -> vector<4x32x1xf32>
    %63 = vector.broadcast %62 : vector<4x32x1xf32> to vector<4x32x32xf32>
    %64 = arith.mulf %59, %63 : vector<4x32x32xf32>
    %65 = arith.truncf %64 : vector<4x32x32xf32> to vector<4x32x32xbf16>
    %66 = arith.truncf %47 : vector<4x32x32xf32> to vector<4x32x32xbf16>
    %cst_23 = arith.constant dense<0.000000e+00> : vector<4x32x32xf32>
    %67 = tpu.matmul %65, %66, %cst_23 {dimension_numbers = #tpu.dot_dimension_numbers<[2], [1], [1], [2], [0, 0, 0, 1, 1, 2], [0], [0]>} : vector<4x32x32xbf16>, vector<4x32x32xbf16>, vector<4x32x32xf32> -> vector<4x32x32xf32>
    %68 = arith.truncf %67 : vector<4x32x32xf32> to vector<4x32x32xbf16>
    %c0_24 = arith.constant 0 : index
    %c0_25 = arith.constant 0 : index
    %c0_26 = arith.constant 0 : index
    %c0_27 = arith.constant 0 : index
    %69 = vector.load %arg6[%c0_24, %c0_25, %c0_26, %c0_27] : memref<1x4x32x128xbf16, #tpu.memory_space<vmem>>, vector<1x4x32x128xbf16>
    %70 = vector.shape_cast %69 : vector<1x4x32x128xbf16> to vector<4x32x128xbf16>
    %71 = vector.extract_strided_slice %68 {offsets = [0, 0, 0], sizes = [1, 32, 32], strides = [1, 1, 1]} : vector<4x32x32xbf16> to vector<1x32x32xbf16>
    %72 = vector.shape_cast %71 : vector<1x32x32xbf16> to vector<32x32xbf16>
    %73 = vector.extract_strided_slice %70 {offsets = [0, 0, 0], sizes = [1, 32, 128], strides = [1, 1, 1]} : vector<4x32x128xbf16> to vector<1x32x128xbf16>
    %74 = vector.shape_cast %73 : vector<1x32x128xbf16> to vector<32x128xbf16>
    %cst_28 = arith.constant dense<0.000000e+00> : vector<32x128xf32>
    %75 = tpu.matmul %72, %74, %cst_28 {dimension_numbers = #tpu.dot_dimension_numbers<[1], [0], [0], [1], [0, 0, 1, 1], [], []>} : vector<32x32xbf16>, vector<32x128xbf16>, vector<32x128xf32> -> vector<32x128xf32>
    %76 = vector.extract_strided_slice %68 {offsets = [1, 0, 0], sizes = [1, 32, 32], strides = [1, 1, 1]} : vector<4x32x32xbf16> to vector<1x32x32xbf16>
    %77 = vector.shape_cast %76 : vector<1x32x32xbf16> to vector<32x32xbf16>
    %78 = vector.extract_strided_slice %70 {offsets = [1, 0, 0], sizes = [1, 32, 128], strides = [1, 1, 1]} : vector<4x32x128xbf16> to vector<1x32x128xbf16>
    %79 = vector.shape_cast %78 : vector<1x32x128xbf16> to vector<32x128xbf16>
    %cst_29 = arith.constant dense<0.000000e+00> : vector<32x128xf32>
    %80 = tpu.matmul %77, %79, %cst_29 {dimension_numbers = #tpu.dot_dimension_numbers<[1], [0], [0], [1], [0, 0, 1, 1], [], []>} : vector<32x32xbf16>, vector<32x128xbf16>, vector<32x128xf32> -> vector<32x128xf32>
    %81 = arith.addf %75, %80 : vector<32x128xf32>
    %82 = vector.extract_strided_slice %68 {offsets = [2, 0, 0], sizes = [1, 32, 32], strides = [1, 1, 1]} : vector<4x32x32xbf16> to vector<1x32x32xbf16>
    %83 = vector.shape_cast %82 : vector<1x32x32xbf16> to vector<32x32xbf16>
    %84 = vector.extract_strided_slice %70 {offsets = [2, 0, 0], sizes = [1, 32, 128], strides = [1, 1, 1]} : vector<4x32x128xbf16> to vector<1x32x128xbf16>
    %85 = vector.shape_cast %84 : vector<1x32x128xbf16> to vector<32x128xbf16>
    %cst_30 = arith.constant dense<0.000000e+00> : vector<32x128xf32>
    %86 = tpu.matmul %83, %85, %cst_30 {dimension_numbers = #tpu.dot_dimension_numbers<[1], [0], [0], [1], [0, 0, 1, 1], [], []>} : vector<32x32xbf16>, vector<32x128xbf16>, vector<32x128xf32> -> vector<32x128xf32>
    %87 = arith.addf %81, %86 : vector<32x128xf32>
    %88 = vector.extract_strided_slice %68 {offsets = [3, 0, 0], sizes = [1, 32, 32], strides = [1, 1, 1]} : vector<4x32x32xbf16> to vector<1x32x32xbf16>
    %89 = vector.shape_cast %88 : vector<1x32x32xbf16> to vector<32x32xbf16>
    %90 = vector.extract_strided_slice %70 {offsets = [3, 0, 0], sizes = [1, 32, 128], strides = [1, 1, 1]} : vector<4x32x128xbf16> to vector<1x32x128xbf16>
    %91 = vector.shape_cast %90 : vector<1x32x128xbf16> to vector<32x128xbf16>
    %cst_31 = arith.constant dense<0.000000e+00> : vector<32x128xf32>
    %92 = tpu.matmul %89, %91, %cst_31 {dimension_numbers = #tpu.dot_dimension_numbers<[1], [0], [0], [1], [0, 0, 1, 1], [], []>} : vector<32x32xbf16>, vector<32x128xbf16>, vector<32x128xf32> -> vector<32x128xf32>
    %93 = arith.addf %87, %92 : vector<32x128xf32>
    %94 = arith.addf %5, %93 : vector<32x128xf32>
    %95 = vector.broadcast %12 : vector<1x128xf32> to vector<32x128xf32>
    %96 = arith.addf %94, %95 : vector<32x128xf32>
    %cst_32 = arith.constant dense<0.000000e+00> : vector<32xf32>
    %97 = vector.multi_reduction <add>, %96, %cst_32 [1] : vector<32x128xf32> to vector<32xf32>
    %98 = vector.shape_cast %97 : vector<32xf32> to vector<32x1xf32>
    %cst_33 = arith.constant 1.280000e+02 : f32
    %99 = vector.broadcast %cst_33 : f32 to vector<32x1xf32>
    %100 = arith.divf %98, %99 : vector<32x1xf32>
    %101 = vector.broadcast %100 : vector<32x1xf32> to vector<32x128xf32>
    %102 = arith.subf %96, %101 : vector<32x128xf32>
    %103 = arith.mulf %102, %102 : vector<32x128xf32>
    %cst_34 = arith.constant dense<0.000000e+00> : vector<32xf32>
    %104 = vector.multi_reduction <add>, %103, %cst_34 [1] : vector<32x128xf32> to vector<32xf32>
    %105 = vector.shape_cast %104 : vector<32xf32> to vector<32x1xf32>
    %cst_35 = arith.constant 1.280000e+02 : f32
    %106 = vector.broadcast %cst_35 : f32 to vector<32x1xf32>
    %107 = arith.divf %105, %106 : vector<32x1xf32>
    %108 = vector.broadcast %100 : vector<32x1xf32> to vector<32x128xf32>
    %109 = arith.subf %96, %108 : vector<32x128xf32>
    %cst_36 = arith.constant 9.99999974E-6 : f32
    %110 = vector.broadcast %cst_36 : f32 to vector<32x1xf32>
    %111 = arith.addf %107, %110 : vector<32x1xf32>
    %112 = math.rsqrt %111 : vector<32x1xf32>
    %113 = vector.broadcast %112 : vector<32x1xf32> to vector<32x128xf32>
    %114 = arith.mulf %109, %113 : vector<32x128xf32>
    %115 = vector.broadcast %10 : vector<1x128xf32> to vector<32x128xf32>
    %116 = arith.mulf %114, %115 : vector<32x128xf32>
    %117 = vector.broadcast %11 : vector<1x128xf32> to vector<32x128xf32>
    %118 = arith.addf %116, %117 : vector<32x128xf32>
    %119 = arith.truncf %118 : vector<32x128xf32> to vector<32x128xbf16>
    %c0_37 = arith.constant 0 : index
    %c0_38 = arith.constant 0 : index
    %c0_39 = arith.constant 0 : index
    %120 = vector.load %arg7[%c0_37, %c0_38, %c0_39] : memref<1x128x512xbf16, #tpu.memory_space<vmem>>, vector<1x128x512xbf16>
    %121 = vector.shape_cast %120 : vector<1x128x512xbf16> to vector<128x512xbf16>
    %cst_40 = arith.constant dense<0.000000e+00> : vector<32x512xf32>
    %122 = tpu.matmul %119, %121, %cst_40 {dimension_numbers = #tpu.dot_dimension_numbers<[1], [0], [0], [1], [0, 0, 1, 1], [], []>} : vector<32x128xbf16>, vector<128x512xbf16>, vector<32x512xf32> -> vector<32x512xf32>
    %c0_41 = arith.constant 0 : index
    %c0_42 = arith.constant 0 : index
    %c0_43 = arith.constant 0 : index
    %123 = vector.load %arg10[%c0_41, %c0_42, %c0_43] : memref<1x1x512xf32, #tpu.memory_space<vmem>>, vector<1x1x512xf32>
    %124 = vector.shape_cast %123 : vector<1x1x512xf32> to vector<1x512xf32>
    %125 = vector.broadcast %124 : vector<1x512xf32> to vector<32x512xf32>
    %126 = arith.addf %122, %125 : vector<32x512xf32>
    %cst_44 = arith.constant 5.000000e-01 : f32
    %127 = vector.broadcast %cst_44 : f32 to vector<32x512xf32>
    %128 = arith.mulf %127, %126 : vector<32x512xf32>
    %cst_45 = arith.constant 4.471500e-02 : f32
    %129 = vector.broadcast %cst_45 : f32 to vector<32x512xf32>
    %130 = arith.mulf %129, %126 : vector<32x512xf32>
    %131 = arith.mulf %130, %126 : vector<32x512xf32>
    %132 = arith.mulf %131, %126 : vector<32x512xf32>
    %133 = arith.addf %126, %132 : vector<32x512xf32>
    %cst_46 = arith.constant 0.797884583 : f32
    %134 = vector.broadcast %cst_46 : f32 to vector<32x512xf32>
    %135 = arith.mulf %134, %133 : vector<32x512xf32>
    %136 = math.tanh %135 : vector<32x512xf32>
    %cst_47 = arith.constant 1.000000e+00 : f32
    %137 = vector.broadcast %cst_47 : f32 to vector<32x512xf32>
    %138 = arith.addf %137, %136 : vector<32x512xf32>
    %139 = arith.mulf %128, %138 : vector<32x512xf32>
    %140 = arith.truncf %139 : vector<32x512xf32> to vector<32x512xbf16>
    %c0_48 = arith.constant 0 : index
    %c0_49 = arith.constant 0 : index
    %c0_50 = arith.constant 0 : index
    %141 = vector.load %arg8[%c0_48, %c0_49, %c0_50] : memref<1x512x128xbf16, #tpu.memory_space<vmem>>, vector<1x512x128xbf16>
    %142 = vector.shape_cast %141 : vector<1x512x128xbf16> to vector<512x128xbf16>
    %cst_51 = arith.constant dense<0.000000e+00> : vector<32x128xf32>
    %143 = tpu.matmul %140, %142, %cst_51 {dimension_numbers = #tpu.dot_dimension_numbers<[1], [0], [0], [1], [0, 0, 1, 1], [], []>} : vector<32x512xbf16>, vector<512x128xbf16>, vector<32x128xf32> -> vector<32x128xf32>
    %144 = vector.broadcast %13 : vector<1x128xf32> to vector<32x128xf32>
    %145 = arith.addf %143, %144 : vector<32x128xf32>
    %146 = arith.addf %96, %145 : vector<32x128xf32>
    %c0_52 = arith.constant 0 : index
    %c0_53 = arith.constant 0 : index
    %147 = vector.load %arg13[%c0_52, %c0_53] : memref<32x128xf32, #tpu.memory_space<vmem>>, vector<32x128xf32>
    tpu.vector_store %arg13[%c0_52, %c0_53], %146 {strides = array<i32>} : memref<32x128xf32, #tpu.memory_space<vmem>>, vector<32x128xf32>,
    %c1_i32 = arith.constant 1 : i32
    %148 = arith.cmpi eq, %arg1, %c1_i32 : i32
    %149 = arith.extui %148 : i1 to i32
    %c0_i32_54 = arith.constant 0 : i32
    %150 = arith.cmpi ne, %149, %c0_i32_54 : i32
    scf.if %150 {
      %c0_55 = arith.constant 0 : index
      %c0_56 = arith.constant 0 : index
      %151 = vector.load %arg11[%c0_55, %c0_56] : memref<2x128xf32, #tpu.memory_space<vmem>>, vector<2x128xf32>
      %152 = vector.extract_strided_slice %151 {offsets = [0, 0], sizes = [1, 128], strides = [1, 1]} : vector<2x128xf32> to vector<1x128xf32>
      %153 = vector.extract_strided_slice %151 {offsets = [1, 0], sizes = [1, 128], strides = [1, 1]} : vector<2x128xf32> to vector<1x128xf32>
      %154 = vector.extract_strided_slice %146 {offsets = [8, 0], sizes = [8, 128], strides = [1, 1]} : vector<32x128xf32> to vector<8x128xf32>
      %cst_57 = arith.constant dense<0.000000e+00> : vector<8xf32>
      %155 = vector.multi_reduction <add>, %154, %cst_57 [1] : vector<8x128xf32> to vector<8xf32>
      %156 = vector.shape_cast %155 : vector<8xf32> to vector<8x1xf32>
      %cst_58 = arith.constant 1.280000e+02 : f32
      %157 = vector.broadcast %cst_58 : f32 to vector<8x1xf32>
      %158 = arith.divf %156, %157 : vector<8x1xf32>
      %159 = vector.broadcast %158 : vector<8x1xf32> to vector<8x128xf32>
      %160 = arith.subf %154, %159 : vector<8x128xf32>
      %161 = arith.mulf %160, %160 : vector<8x128xf32>
      %cst_59 = arith.constant dense<0.000000e+00> : vector<8xf32>
      %162 = vector.multi_reduction <add>, %161, %cst_59 [1] : vector<8x128xf32> to vector<8xf32>
      %163 = vector.shape_cast %162 : vector<8xf32> to vector<8x1xf32>
      %cst_60 = arith.constant 1.280000e+02 : f32
      %164 = vector.broadcast %cst_60 : f32 to vector<8x1xf32>
      %165 = arith.divf %163, %164 : vector<8x1xf32>
      %166 = vector.broadcast %158 : vector<8x1xf32> to vector<8x128xf32>
      %167 = arith.subf %154, %166 : vector<8x128xf32>
      %cst_61 = arith.constant 9.99999974E-6 : f32
      %168 = vector.broadcast %cst_61 : f32 to vector<8x1xf32>
      %169 = arith.addf %165, %168 : vector<8x1xf32>
      %170 = math.rsqrt %169 : vector<8x1xf32>
      %171 = vector.broadcast %170 : vector<8x1xf32> to vector<8x128xf32>
      %172 = arith.mulf %167, %171 : vector<8x128xf32>
      %173 = vector.broadcast %152 : vector<1x128xf32> to vector<8x128xf32>
      %174 = arith.mulf %172, %173 : vector<8x128xf32>
      %175 = vector.broadcast %153 : vector<1x128xf32> to vector<8x128xf32>
      %176 = arith.addf %174, %175 : vector<8x128xf32>
      %c0_62 = arith.constant 0 : index
      %c0_63 = arith.constant 0 : index
      %177 = vector.load %arg12[%c0_62, %c0_63] : memref<16x128xf32, #tpu.memory_space<vmem>>, vector<8x128xf32>
      tpu.vector_store %arg12[%c0_62, %c0_63], %176 {strides = array<i32>} : memref<16x128xf32, #tpu.memory_space<vmem>>, vector<8x128xf32>,
      %178 = vector.extract_strided_slice %146 {offsets = [24, 0], sizes = [8, 128], strides = [1, 1]} : vector<32x128xf32> to vector<8x128xf32>
      %cst_64 = arith.constant dense<0.000000e+00> : vector<8xf32>
      %179 = vector.multi_reduction <add>, %178, %cst_64 [1] : vector<8x128xf32> to vector<8xf32>
      %180 = vector.shape_cast %179 : vector<8xf32> to vector<8x1xf32>
      %cst_65 = arith.constant 1.280000e+02 : f32
      %181 = vector.broadcast %cst_65 : f32 to vector<8x1xf32>
      %182 = arith.divf %180, %181 : vector<8x1xf32>
      %183 = vector.broadcast %182 : vector<8x1xf32> to vector<8x128xf32>
      %184 = arith.subf %178, %183 : vector<8x128xf32>
      %185 = arith.mulf %184, %184 : vector<8x128xf32>
      %cst_66 = arith.constant dense<0.000000e+00> : vector<8xf32>
      %186 = vector.multi_reduction <add>, %185, %cst_66 [1] : vector<8x128xf32> to vector<8xf32>
      %187 = vector.shape_cast %186 : vector<8xf32> to vector<8x1xf32>
      %cst_67 = arith.constant 1.280000e+02 : f32
      %188 = vector.broadcast %cst_67 : f32 to vector<8x1xf32>
      %189 = arith.divf %187, %188 : vector<8x1xf32>
      %190 = vector.broadcast %182 : vector<8x1xf32> to vector<8x128xf32>
      %191 = arith.subf %178, %190 : vector<8x128xf32>
      %cst_68 = arith.constant 9.99999974E-6 : f32
      %192 = vector.broadcast %cst_68 : f32 to vector<8x1xf32>
      %193 = arith.addf %189, %192 : vector<8x1xf32>
      %194 = math.rsqrt %193 : vector<8x1xf32>
      %195 = vector.broadcast %194 : vector<8x1xf32> to vector<8x128xf32>
      %196 = arith.mulf %191, %195 : vector<8x128xf32>
      %197 = vector.broadcast %152 : vector<1x128xf32> to vector<8x128xf32>
      %198 = arith.mulf %196, %197 : vector<8x128xf32>
      %199 = vector.broadcast %153 : vector<1x128xf32> to vector<8x128xf32>
      %200 = arith.addf %198, %199 : vector<8x128xf32>
      %c8 = arith.constant 8 : index
      %c0_69 = arith.constant 0 : index
      %201 = vector.load %arg12[%c8, %c0_69] : memref<16x128xf32, #tpu.memory_space<vmem>>, vector<8x128xf32>
      tpu.vector_store %arg12[%c8, %c0_69], %200 {strides = array<i32>} : memref<16x128xf32, #tpu.memory_space<vmem>>, vector<8x128xf32>,
    } else {
    }
    return
  }
  func.func @transform_0(%arg0: i32, %arg1: i32) -> (i32, i32) {
    %c0_i32 = arith.constant 0 : i32
    %c0_i32_0 = arith.constant 0 : i32
    return %arg0, %c0_i32 : i32, i32
  }
  func.func @transform_1(%arg0: i32, %arg1: i32) -> (i32, i32) {
    %c0_i32 = arith.constant 0 : i32
    %c0_i32_0 = arith.constant 0 : i32
    return %arg0, %c0_i32 : i32, i32
  }
  func.func @transform_2(%arg0: i32, %arg1: i32) -> (i32, i32) {
    %c0_i32 = arith.constant 0 : i32
    %c0_i32_0 = arith.constant 0 : i32
    %c0_i32_1 = arith.constant 0 : i32
    return %c0_i32, %c0_i32_0 : i32, i32
  }
  func.func @transform_3(%arg0: i32, %arg1: i32) -> (i32, i32, i32, i32) {
    %c0_i32 = arith.constant 0 : i32
    %c0_i32_0 = arith.constant 0 : i32
    %c0_i32_1 = arith.constant 0 : i32
    %c0_i32_2 = arith.constant 0 : i32
    return %arg1, %c0_i32, %c0_i32_0, %c0_i32_1 : i32, i32, i32, i32
  }
  func.func @transform_4(%arg0: i32, %arg1: i32) -> (i32, i32, i32, i32) {
    %c0_i32 = arith.constant 0 : i32
    %c0_i32_0 = arith.constant 0 : i32
    %c0_i32_1 = arith.constant 0 : i32
    %c0_i32_2 = arith.constant 0 : i32
    return %arg1, %c0_i32, %c0_i32_0, %c0_i32_1 : i32, i32, i32, i32
  }
  func.func @transform_5(%arg0: i32, %arg1: i32) -> (i32, i32, i32) {
    %c0_i32 = arith.constant 0 : i32
    %c0_i32_0 = arith.constant 0 : i32
    %c0_i32_1 = arith.constant 0 : i32
    return %arg1, %c0_i32, %c0_i32_0 : i32, i32, i32
  }
  func.func @transform_6(%arg0: i32, %arg1: i32) -> (i32, i32, i32) {
    %c0_i32 = arith.constant 0 : i32
    %c0_i32_0 = arith.constant 0 : i32
    %c0_i32_1 = arith.constant 0 : i32
    return %arg1, %c0_i32, %c0_i32_0 : i32, i32, i32
  }
  func.func @transform_7(%arg0: i32, %arg1: i32) -> (i32, i32, i32) {
    %c0_i32 = arith.constant 0 : i32
    %c0_i32_0 = arith.constant 0 : i32
    %c0_i32_1 = arith.constant 0 : i32
    return %arg1, %c0_i32, %c0_i32_0 : i32, i32, i32
  }
  func.func @transform_8(%arg0: i32, %arg1: i32) -> (i32, i32, i32) {
    %c0_i32 = arith.constant 0 : i32
    %c0_i32_0 = arith.constant 0 : i32
    %c0_i32_1 = arith.constant 0 : i32
    return %arg1, %c0_i32, %c0_i32_0 : i32, i32, i32
  }
  func.func @transform_9(%arg0: i32, %arg1: i32) -> (i32, i32) {
    %c0_i32 = arith.constant 0 : i32
    %c0_i32_0 = arith.constant 0 : i32
    %c0_i32_1 = arith.constant 0 : i32
    return %c0_i32, %c0_i32_0 : i32, i32
  }
  func.func @transform_10(%arg0: i32, %arg1: i32) -> (i32, i32) {
    %c0_i32 = arith.constant 0 : i32
    %c0_i32_0 = arith.constant 0 : i32
    return %arg0, %c0_i32 : i32, i32
  }
}

</mosaic_0001>

<llo_original>
// kernel: tpu_custom_call.1
$region0: #{tpu_custom_call.1}
  #allocation0 [shape = 'u32[]', space=smem, size = 0x4, offset = 0x4, fixed_abs, tag = 'smem constant byte address 0x4 - core index']
  #allocation1 [shape = 'u32[144,128]{1,0:T(1,128)}', space=vmem, size = 0x12000, scoped, tag = 'internal scratch']
  #allocation2 [shape = 'f32[32,128]{1,0:T(8,128)}', space=vmem, size = 0x4000, scoped, tag = 'scratch operand']
  %s0 = inlined_call_operand.hbm [shape: f32[32,128], index: 0, kind: input, shape index: {}]
  %s1 = inlined_call_operand.hbm [shape: f32[32,128], index: 1, kind: input, shape index: {}]
  %s2 = inlined_call_operand.vmem [shape: f32[32,32], index: 2, kind: input, shape index: {}]
  %s3 = inlined_call_operand.hbm [shape: bf16[2,12,32,128], index: 3, kind: input, shape index: {}]
  %s4 = inlined_call_operand.hbm [shape: bf16[2,4,32,128], index: 4, kind: input, shape index: {}]
  %s5 = inlined_call_operand.hbm [shape: bf16[2,128,512], index: 5, kind: input, shape index: {}]
  %s6 = inlined_call_operand.hbm [shape: bf16[2,512,128], index: 6, kind: input, shape index: {}]
  %s7 = inlined_call_operand.vmem [shape: f32[2,6,128], index: 7, kind: input, shape index: {}]
  %s8 = inlined_call_operand.vmem [shape: f32[2,1,512], index: 8, kind: input, shape index: {}]
  %s9 = inlined_call_operand.vmem [shape: f32[2,128], index: 9, kind: input, shape index: {}]
  %s10 = inlined_call_operand.hbm [shape: f32[16,128], index: 10, kind: output, shape index: {}]
  %s11 = sld [smem:[#allocation0]]
  $region105: #{tpu_custom_call.1} parent=0
    _
  %s13 = ssub.s32 1, %s11
  %s14 = scalar_select 0, %s13, %s11
  $region1: #{tpu_custom_call.1} parent=0
    #allocation3 [shape = 'u8[16384]{0}', space=vmem, size = 0x4000, scoped, tag = 'input window, operand 0, single buffered']
    #allocation4 [shape = 's32[2]{0}', space=sflag, size = 0x8, scoped, tag = 'scoped memory for tpu_custom_call.1']
    #allocation5 [shape = 's32[2]{0}', space=sflag, size = 0x8, scoped, tag = 'scoped memory for tpu_custom_call.1']
    #allocation6 [shape = 'u8[16384]{0}', space=vmem, size = 0x4000, scoped, tag = 'input window, operand 1, single buffered']
    #allocation7 [shape = 's32[1]{0}', space=sflag, size = 0x4, scoped, tag = 'scoped memory for tpu_custom_call.1']
    #allocation8 [shape = 'u8[196608]{0}', space=vmem, size = 0x30000, scoped, tag = 'input window, operand 3']
    #allocation9 [shape = 'u8[65536]{0}', space=vmem, size = 0x10000, scoped, tag = 'input window, operand 4']
    #allocation10 [shape = 'u8[262144]{0}', space=vmem, size = 0x40000, scoped, tag = 'input window, operand 5']
    #allocation11 [shape = 'u8[262144]{0}', space=vmem, size = 0x40000, scoped, tag = 'input window, operand 6']
    #allocation12 [shape = 'u8[8192]{0}', space=vmem, size = 0x2000, scoped, tag = 'output window, operand 0, single buffered']
    %15 = vsyncpa [#allocation4], 0
    %16 = vsyncpa [#allocation7], 0
    %17 = vsyncpa [#allocation5], 0
    loop: start=0, step=1, limit=4
    $region2: #{tpu_custom_call.1} parent=1 // loop_pre_header
      _
    $region3: #{tpu_custom_call.1} parent=1 // loop_header
      %s19 = sphi 0, %s23
      %p20 = scmp.ge.s32.totalorder %s19, 4
      %s26 = sphi 0, %s38
      %s27 = sphi 0, %s34
      %s28 = sphi 0, %s26
      %s29 = sphi 0, %s27
      %s30 = sphi 0, %s28
      %s31 = sphi 0, %s29
      %s41 = sphi 0, %s43
      %s44 = sphi 0, %s41
      %s45 = sphi 0, %s44
      %s61 = sphi 0, %s45
      %s67 = sphi 0, %s69
      %s70 = sphi 0, %s67
      %s71 = sphi 0, %s70
      %s87 = sphi 0, %s71
      %s91 = sphi 0, %s91
      %s93 = sphi 0, %s91
      %s94 = sphi 0, %s93
      %s108 = sphi 0, %s94
      %s114 = sphi 0, %s116
      %s117 = sphi 0, %s114
      %s118 = sphi 0, %s117
      %s134 = sphi 0, %s118
      %s140 = sphi 0, %s142
      %s143 = sphi 0, %s140
      %s144 = sphi 0, %s143
      %s160 = sphi 0, %s144
      %s166 = sphi 0, %s168
      %s169 = sphi 0, %s166
      %s170 = sphi 0, %s169
      %s186 = sphi 0, %s170
      %s192 = sphi 0, %s194
      %s195 = sphi 0, %s192
      %s196 = sphi 0, %s195
      %s212 = sphi 0, %s196
      %s218 = sphi 0, %s220
      %s221 = sphi 0, %s218
      %s222 = sphi 0, %s221
      %s238 = sphi 0, %s222
      %s244 = sphi 0, %s246
      %s247 = sphi 0, %s244
      %s248 = sphi 0, %s247
      %s264 = sphi 0, %s248
      %s268 = sphi 0, %s268
      %s270 = sphi 0, %s268
      %s271 = sphi 0, %s270
      %s285 = sphi 0, %s271
      %s291 = sphi 0, %s293
      %s294 = sphi 0, %s291
      %s295 = sphi 0, %s294
      %s311 = sphi 0, %s295
    $region4: #{tpu_custom_call.1} parent=1 // loop_header_branch
      %22 = sbr.rel (%p20) target = $region8
    $region5: #{tpu_custom_call.1} parent=1 // loop_body
      %s24 = ssub.s32 %s19, 1
      %s25 = ssub.s32 %s19, 2
      %s32 = sadd.s32 1, %s27
      %p33 = scmp.ge.s32.totalorder %s32, 2
      %s34 = scalar_select %p33, 0, %s32
      %s35 = sadd.s32 1, %s26
      %s36 = scalar_select %p33, %s35, %s26
      %p37 = scmp.ge.s32.totalorder %s36, 1
      %s38 = scalar_select %p37, 0, %s36
      %s39 = ssub.s32 %s26, %s38
      %p40 = scmp.eq.s32.totalorder %s39, 0
      %s42 = sadd.s32 %s41, 1
      %s43 = scalar_select %p40, %s41, %s42
      %p46 = pneg %p40
      %p47 = scmp.eq.s32.totalorder %s19, 1
      %p48 = por %p46, %p47
      %p49 = scmp.ne.s32.totalorder %s41, %s44
      %p50 = scmp.eq.s32.totalorder %s19, 0
      %p51 = por %p49, %p50
      %p52 = scmp.ne.s32.totalorder %s41, %s44
      %p53 = scmp.eq.s32.totalorder %s24, 1
      %p54 = por %p52, %p53
      %p55 = scmp.ne.s32.totalorder %s44, %s45
      %p56 = scmp.eq.s32.totalorder %s24, 0
      %p57 = por %p55, %p56
      %p58 = scmp.ne.s32.totalorder %s44, %s45
      %p59 = scmp.eq.s32.totalorder %s25, 1
      %p60 = por %p58, %p59
      %p62 = scmp.ne.s32.totalorder %s45, %s61
      %p63 = scmp.eq.s32.totalorder %s25, 0
      %p64 = por %p62, %p63
      %s65 = ssub.s32 %s26, %s38
      %p66 = scmp.eq.s32.totalorder %s65, 0
      %s68 = sadd.s32 %s67, 1
      %s69 = scalar_select %p66, %s67, %s68
      %p72 = pneg %p66
      %p73 = scmp.eq.s32.totalorder %s19, 1
      %p74 = por %p72, %p73
      %p75 = scmp.ne.s32.totalorder %s67, %s70
      %p76 = scmp.eq.s32.totalorder %s19, 0
      %p77 = por %p75, %p76
      %p78 = scmp.ne.s32.totalorder %s67, %s70
      %p79 = scmp.eq.s32.totalorder %s24, 1
      %p80 = por %p78, %p79
      %p81 = scmp.ne.s32.totalorder %s70, %s71
      %p82 = scmp.eq.s32.totalorder %s24, 0
      %p83 = por %p81, %p82
      %p84 = scmp.ne.s32.totalorder %s70, %s71
      %p85 = scmp.eq.s32.totalorder %s25, 1
      %p86 = por %p84, %p85
      %p88 = scmp.ne.s32.totalorder %s71, %s87
      %p89 = scmp.eq.s32.totalorder %s25, 0
      %p90 = por %p88, %p89
      %s92 = sadd.s32 %s91, 1
      %p95 = scmp.eq.s32.totalorder %s19, 1
      %p96 = scmp.ne.s32.totalorder %s91, %s93
      %p97 = scmp.eq.s32.totalorder %s19, 0
      %p98 = por %p96, %p97
      %p99 = scmp.ne.s32.totalorder %s91, %s93
      %p100 = scmp.eq.s32.totalorder %s24, 1
      %p101 = por %p99, %p100
      %p102 = scmp.ne.s32.totalorder %s93, %s94
      %p103 = scmp.eq.s32.totalorder %s24, 0
      %p104 = por %p102, %p103
      %p105 = scmp.ne.s32.totalorder %s93, %s94
      %p106 = scmp.eq.s32.totalorder %s25, 1
      %p107 = por %p105, %p106
      %p109 = scmp.ne.s32.totalorder %s94, %s108
      %p110 = scmp.eq.s32.totalorder %s25, 0
      %p111 = por %p109, %p110
      %s112 = ssub.s32 %s27, %s34
      %p113 = scmp.eq.s32.totalorder %s112, 0
      %s115 = sadd.s32 %s114, 1
      %s116 = scalar_select %p113, %s114, %s115
      %p119 = pneg %p113
      %p120 = scmp.eq.s32.totalorder %s19, 1
      %p121 = por %p119, %p120
      %p122 = scmp.ne.s32.totalorder %s114, %s117
      %p123 = scmp.eq.s32.totalorder %s19, 0
      %p124 = por %p122, %p123
      %p125 = scmp.ne.s32.totalorder %s114, %s117
      %p126 = scmp.eq.s32.totalorder %s24, 1
      %p127 = por %p125, %p126
      %p128 = scmp.ne.s32.totalorder %s117, %s118
      %p129 = scmp.eq.s32.totalorder %s24, 0
      %p130 = por %p128, %p129
      %p131 = scmp.ne.s32.totalorder %s117, %s118
      %p132 = scmp.eq.s32.totalorder %s25, 1
      %p133 = por %p131, %p132
      %p135 = scmp.ne.s32.totalorder %s118, %s134
      %p136 = scmp.eq.s32.totalorder %s25, 0
      %p137 = por %p135, %p136
      %s138 = ssub.s32 %s27, %s34
      %p139 = scmp.eq.s32.totalorder %s138, 0
      %s141 = sadd.s32 %s140, 1
      %s142 = scalar_select %p139, %s140, %s141
      %p145 = pneg %p139
      %p146 = scmp.eq.s32.totalorder %s19, 1
      %p147 = por %p145, %p146
      %p148 = scmp.ne.s32.totalorder %s140, %s143
      %p149 = scmp.eq.s32.totalorder %s19, 0
      %p150 = por %p148, %p149
      %p151 = scmp.ne.s32.totalorder %s140, %s143
      %p152 = scmp.eq.s32.totalorder %s24, 1
      %p153 = por %p151, %p152
      %p154 = scmp.ne.s32.totalorder %s143, %s144
      %p155 = scmp.eq.s32.totalorder %s24, 0
      %p156 = por %p154, %p155
      %p157 = scmp.ne.s32.totalorder %s143, %s144
      %p158 = scmp.eq.s32.totalorder %s25, 1
      %p159 = por %p157, %p158
      %p161 = scmp.ne.s32.totalorder %s144, %s160
      %p162 = scmp.eq.s32.totalorder %s25, 0
      %p163 = por %p161, %p162
      %s164 = ssub.s32 %s27, %s34
      %p165 = scmp.eq.s32.totalorder %s164, 0
      %s167 = sadd.s32 %s166, 1
      %s168 = scalar_select %p165, %s166, %s167
      %p171 = pneg %p165
      %p172 = scmp.eq.s32.totalorder %s19, 1
      %p173 = por %p171, %p172
      %p174 = scmp.ne.s32.totalorder %s166, %s169
      %p175 = scmp.eq.s32.totalorder %s19, 0
      %p176 = por %p174, %p175
      %p177 = scmp.ne.s32.totalorder %s166, %s169
      %p178 = scmp.eq.s32.totalorder %s24, 1
      %p179 = por %p177, %p178
      %p180 = scmp.ne.s32.totalorder %s169, %s170
      %p181 = scmp.eq.s32.totalorder %s24, 0
      %p182 = por %p180, %p181
      %p183 = scmp.ne.s32.totalorder %s169, %s170
      %p184 = scmp.eq.s32.totalorder %s25, 1
      %p185 = por %p183, %p184
      %p187 = scmp.ne.s32.totalorder %s170, %s186
      %p188 = scmp.eq.s32.totalorder %s25, 0
      %p189 = por %p187, %p188
      %s190 = ssub.s32 %s27, %s34
      %p191 = scmp.eq.s32.totalorder %s190, 0
      %s193 = sadd.s32 %s192, 1
      %s194 = scalar_select %p191, %s192, %s193
      %p197 = pneg %p191
      %p198 = scmp.eq.s32.totalorder %s19, 1
      %p199 = por %p197, %p198
      %p200 = scmp.ne.s32.totalorder %s192, %s195
      %p201 = scmp.eq.s32.totalorder %s19, 0
      %p202 = por %p200, %p201
      %p203 = scmp.ne.s32.totalorder %s192, %s195
      %p204 = scmp.eq.s32.totalorder %s24, 1
      %p205 = por %p203, %p204
      %p206 = scmp.ne.s32.totalorder %s195, %s196
      %p207 = scmp.eq.s32.totalorder %s24, 0
      %p208 = por %p206, %p207
      %p209 = scmp.ne.s32.totalorder %s195, %s196
      %p210 = scmp.eq.s32.totalorder %s25, 1
      %p211 = por %p209, %p210
      %p213 = scmp.ne.s32.totalorder %s196, %s212
      %p214 = scmp.eq.s32.totalorder %s25, 0
      %p215 = por %p213, %p214
      %s216 = ssub.s32 %s27, %s34
      %p217 = scmp.eq.s32.totalorder %s216, 0
      %s219 = sadd.s32 %s218, 1
      %s220 = scalar_select %p217, %s218, %s219
      %p223 = pneg %p217
      %p224 = scmp.eq.s32.totalorder %s19, 1
      %p225 = por %p223, %p224
      %p226 = scmp.ne.s32.totalorder %s218, %s221
      %p227 = scmp.eq.s32.totalorder %s19, 0
      %p228 = por %p226, %p227
      %p229 = scmp.ne.s32.totalorder %s218, %s221
      %p230 = scmp.eq.s32.totalorder %s24, 1
      %p231 = por %p229, %p230
      %p232 = scmp.ne.s32.totalorder %s221, %s222
      %p233 = scmp.eq.s32.totalorder %s24, 0
      %p234 = por %p232, %p233
      %p235 = scmp.ne.s32.totalorder %s221, %s222
      %p236 = scmp.eq.s32.totalorder %s25, 1
      %p237 = por %p235, %p236
      %p239 = scmp.ne.s32.totalorder %s222, %s238
      %p240 = scmp.eq.s32.totalorder %s25, 0
      %p241 = por %p239, %p240
      %s242 = ssub.s32 %s27, %s34
      %p243 = scmp.eq.s32.totalorder %s242, 0
      %s245 = sadd.s32 %s244, 1
      %s246 = scalar_select %p243, %s244, %s245
      %p249 = pneg %p243
      %p250 = scmp.eq.s32.totalorder %s19, 1
      %p251 = por %p249, %p250
      %p252 = scmp.ne.s32.totalorder %s244, %s247
      %p253 = scmp.eq.s32.totalorder %s19, 0
      %p254 = por %p252, %p253
      %p255 = scmp.ne.s32.totalorder %s244, %s247
      %p256 = scmp.eq.s32.totalorder %s24, 1
      %p257 = por %p255, %p256
      %p258 = scmp.ne.s32.totalorder %s247, %s248
      %p259 = scmp.eq.s32.totalorder %s24, 0
      %p260 = por %p258, %p259
      %p261 = scmp.ne.s32.totalorder %s247, %s248
      %p262 = scmp.eq.s32.totalorder %s25, 1
      %p263 = por %p261, %p262
      %p265 = scmp.ne.s32.totalorder %s248, %s264
      %p266 = scmp.eq.s32.totalorder %s25, 0
      %p267 = por %p265, %p266
      %s269 = sadd.s32 %s268, 1
      %p272 = scmp.eq.s32.totalorder %s19, 1
      %p273 = scmp.ne.s32.totalorder %s268, %s270
      %p274 = scmp.eq.s32.totalorder %s19, 0
      %p275 = por %p273, %p274
      %p276 = scmp.ne.s32.totalorder %s268, %s270
      %p277 = scmp.eq.s32.totalorder %s24, 1
      %p278 = por %p276, %p277
      %p279 = scmp.ne.s32.totalorder %s270, %s271
      %p280 = scmp.eq.s32.totalorder %s24, 0
      %p281 = por %p279, %p280
      %p282 = scmp.ne.s32.totalorder %s270, %s271
      %p283 = scmp.eq.s32.totalorder %s25, 1
      %p284 = por %p282, %p283
      %p286 = scmp.ne.s32.totalorder %s271, %s285
      %p287 = scmp.eq.s32.totalorder %s25, 0
      %p288 = por %p286, %p287
      %s289 = ssub.s32 %s26, %s38
      %p290 = scmp.eq.s32.totalorder %s289, 0
      %s292 = sadd.s32 %s291, 1
      %s293 = scalar_select %p290, %s291, %s292
      %p296 = pneg %p290
      %p297 = scmp.eq.s32.totalorder %s19, 1
      %p298 = por %p296, %p297
      %p299 = scmp.ne.s32.totalorder %s291, %s294
      %p300 = scmp.eq.s32.totalorder %s19, 0
      %p301 = por %p299, %p300
      %p302 = scmp.ne.s32.totalorder %s291, %s294
      %p303 = scmp.eq.s32.totalorder %s24, 1
      %p304 = por %p302, %p303
      %p305 = scmp.ne.s32.totalorder %s294, %s295
      %p306 = scmp.eq.s32.totalorder %s24, 0
      %p307 = por %p305, %p306
      %p308 = scmp.ne.s32.totalorder %s294, %s295
      %p309 = scmp.eq.s32.totalorder %s25, 1
      %p310 = por %p308, %p309
      %p312 = scmp.ne.s32.totalorder %s295, %s311
      %p313 = scmp.eq.s32.totalorder %s25, 0
      %p314 = por %p312, %p313
      %p315 = scmp.le.s32.totalorder 1, %s19
      %p316 = scmp.lt.s32.totalorder %s19, 3
      %p317 = pnand %p315, %p316
      %p318 = pneg %p317
      // Predicated region
      $region9: #{tpu_custom_call.1} parent=5 // pred_check
        _
      $region10: #{tpu_custom_call.1} parent=5 // pred_check_branch
        %320 = sbr.rel (%p317) target = $region12
      $region11: #{tpu_custom_call.1} parent=5 // pred_region
        %s321 = ssub.s32 %s19, 1
        // Predicated region
        $region13: #{tpu_custom_call.1} parent=11 // pred_check
          %p322 = pneg %p57
        $region14: #{tpu_custom_call.1} parent=11 // pred_check_branch
          %324 = sbr.rel (%p322) target = $region16
        $region15: #{tpu_custom_call.1} parent=11 // pred_region
          %s325 = smul.u32 4, %s28
          %s327 = ssub.s32 512, 512
          %328 = vsyncadd [#allocation4], %s327
          %s329 = smul.addr %s325, 128
          %s330 = scalar_lea.hbm %s0, %s329
          %s331 = sshll.u32 [#allocation3], 4
          %s332 = int_to_ptr.vmem [resolvable:$true] %s331
          %337 = dma.hbm_to_vmem [thread:$0]  %s330, 512, %s332, [#allocation4], 128, 128, 8
        $region16: #{tpu_custom_call.1} parent=11 // pred_fallthru
          _
        // Predicated region
        $region17: #{tpu_custom_call.1} parent=11 // pred_check
          %p338 = pneg %p83
        $region18: #{tpu_custom_call.1} parent=11 // pred_check_branch
          %340 = sbr.rel (%p338) target = $region20
        $region19: #{tpu_custom_call.1} parent=11 // pred_region
          %s341 = smul.u32 4, %s28
          %s343 = ssub.s32 512, 512
          %344 = vsyncadd [#allocation7], %s343
          %s345 = smul.addr %s341, 128
          %s346 = scalar_lea.hbm %s1, %s345
          %s347 = sshll.u32 [#allocation6], 4
          %s348 = int_to_ptr.vmem [resolvable:$true] %s347
          %353 = dma.hbm_to_vmem [thread:$0]  %s346, 512, %s348, [#allocation7], 128, 128, 8
        $region20: #{tpu_custom_call.1} parent=11 // pred_fallthru
          _
        // Predicated region
        $region21: #{tpu_custom_call.1} parent=11 // pred_check
          %p354 = pneg %p104
        $region22: #{tpu_custom_call.1} parent=11 // pred_check_branch
          %356 = sbr.rel (%p354) target = $region24
        $region23: #{tpu_custom_call.1} parent=11 // pred_region
          _
        $region24: #{tpu_custom_call.1} parent=11 // pred_fallthru
          _
        // Predicated region
        $region25: #{tpu_custom_call.1} parent=11 // pred_check
          %p357 = pneg %p281
        $region26: #{tpu_custom_call.1} parent=11 // pred_check_branch
          %359 = sbr.rel (%p357) target = $region28
        $region27: #{tpu_custom_call.1} parent=11 // pred_region
          _
        $region28: #{tpu_custom_call.1} parent=11 // pred_fallthru
          _
      $region12: #{tpu_custom_call.1} parent=5 // pred_fallthru
        _
      %p360 = scmp.lt.s32.totalorder %s19, 2
      // Predicated region
      $region29: #{tpu_custom_call.1} parent=5 // pred_check
        %p361 = pneg %p360
      $region30: #{tpu_custom_call.1} parent=5 // pred_check_branch
        %363 = sbr.rel (%p361) target = $region32
      $region31: #{tpu_custom_call.1} parent=5 // pred_region
        // Predicated region
        $region33: #{tpu_custom_call.1} parent=31 // pred_check
          %p364 = pneg %p124
        $region34: #{tpu_custom_call.1} parent=31 // pred_check_branch
          %366 = sbr.rel (%p364) target = $region36
        $region35: #{tpu_custom_call.1} parent=31 // pred_region
          %s367 = sand.u32 %s19, 1
          %s368 = scalar_lea.sflag [#allocation4], %s367
          %s369 = sand.u32 %s114, 1
          %s370 = smul.addr %s369, 192
          %s371 = scalar_lea.vmem [#allocation8], %s370
          %s373 = ssub.s32 3072, 3072
          %374 = vsyncadd %s368, %s373
          %s375 = smul.addr %s27, 48
          %s376 = smul.addr %s375, 64
          %s377 = scalar_lea.hbm %s3, %s376
          %s378 = sshll.u32 %s371, 4
          %s379 = int_to_ptr.vmem [resolvable:$true] %s378
          %384 = dma.hbm_to_vmem [thread:$0]  %s377, 3072, %s379, %s368, 64, 64, 4
        $region36: #{tpu_custom_call.1} parent=31 // pred_fallthru
          _
        // Predicated region
        $region37: #{tpu_custom_call.1} parent=31 // pred_check
          %p385 = pneg %p150
        $region38: #{tpu_custom_call.1} parent=31 // pred_check_branch
          %387 = sbr.rel (%p385) target = $region40
        $region39: #{tpu_custom_call.1} parent=31 // pred_region
          %s388 = sand.u32 %s19, 1
          %s389 = scalar_lea.sflag [#allocation4], %s388
          %s390 = sand.u32 %s140, 1
          %s391 = smul.addr %s390, 64
          %s392 = scalar_lea.vmem [#allocation9], %s391
          %s394 = ssub.s32 1024, 1024
          %395 = vsyncadd %s389, %s394
          %s396 = smul.addr %s27, 16
          %s397 = smul.addr %s396, 64
          %s398 = scalar_lea.hbm %s4, %s397
          %s399 = sshll.u32 %s392, 4
          %s400 = int_to_ptr.vmem [resolvable:$true] %s399
          %405 = dma.hbm_to_vmem [thread:$0]  %s398, 1024, %s400, %s389, 64, 64, 4
        $region40: #{tpu_custom_call.1} parent=31 // pred_fallthru
          _
        // Predicated region
        $region41: #{tpu_custom_call.1} parent=31 // pred_check
          %p406 = pneg %p176
        $region42: #{tpu_custom_call.1} parent=31 // pred_check_branch
          %408 = sbr.rel (%p406) target = $region44
        $region43: #{tpu_custom_call.1} parent=31 // pred_region
          %s409 = sand.u32 %s19, 1
          %s410 = scalar_lea.sflag [#allocation4], %s409
          %s411 = sand.u32 %s166, 1
          %s412 = smul.addr %s411, 256
          %s413 = scalar_lea.vmem [#allocation10], %s412
          %s415 = ssub.s32 4096, 4096
          %416 = vsyncadd %s410, %s415
          %s417 = smul.addr %s27, 64
          %s418 = smul.addr %s417, 64
          %s419 = scalar_lea.hbm %s5, %s418
          %s420 = sshll.u32 %s413, 4
          %s421 = int_to_ptr.vmem [resolvable:$true] %s420
          %426 = dma.hbm_to_vmem [thread:$0]  %s419, 4096, %s421, %s410, 256, 256, 16
        $region44: #{tpu_custom_call.1} parent=31 // pred_fallthru
          _
        // Predicated region
        $region45: #{tpu_custom_call.1} parent=31 // pred_check
          %p427 = pneg %p202
        $region46: #{tpu_custom_call.1} parent=31 // pred_check_branch
          %429 = sbr.rel (%p427) target = $region48
        $region47: #{tpu_custom_call.1} parent=31 // pred_region
          %s430 = sand.u32 %s19, 1
          %s431 = scalar_lea.sflag [#allocation4], %s430
          %s432 = sand.u32 %s192, 1
          %s433 = smul.addr %s432, 256
          %s434 = scalar_lea.vmem [#allocation11], %s433
          %s436 = ssub.s32 4096, 4096
          %437 = vsyncadd %s431, %s436
          %s438 = smul.addr %s27, 64
          %s439 = smul.addr %s438, 64
          %s440 = scalar_lea.hbm %s6, %s439
          %s441 = sshll.u32 %s434, 4
          %s442 = int_to_ptr.vmem [resolvable:$true] %s441
          %447 = dma.hbm_to_vmem [thread:$0]  %s440, 4096, %s442, %s431, 64, 64, 4
        $region48: #{tpu_custom_call.1} parent=31 // pred_fallthru
          _
        // Predicated region
        $region49: #{tpu_custom_call.1} parent=31 // pred_check
          %p448 = pneg %p228
        $region50: #{tpu_custom_call.1} parent=31 // pred_check_branch
          %450 = sbr.rel (%p448) target = $region52
        $region51: #{tpu_custom_call.1} parent=31 // pred_region
          %p451 = scmp.lt.s32.totalorder %s27, 1
          %s452 = scalar_select %p451, %s27, 1
          %s453 = smul.addr %s452, 8
          %s454 = scalar_lea.vmem %s7, %s453
        $region52: #{tpu_custom_call.1} parent=31 // pred_fallthru
          _
        // Predicated region
        $region53: #{tpu_custom_call.1} parent=31 // pred_check
          %p455 = pneg %p254
        $region54: #{tpu_custom_call.1} parent=31 // pred_check_branch
          %457 = sbr.rel (%p455) target = $region56
        $region55: #{tpu_custom_call.1} parent=31 // pred_region
          %p458 = scmp.lt.s32.totalorder %s27, 1
          %s459 = scalar_select %p458, %s27, 1
          %s460 = smul.addr %s459, 4
          %s461 = scalar_lea.vmem %s8, %s460
        $region56: #{tpu_custom_call.1} parent=31 // pred_fallthru
          _
      $region32: #{tpu_custom_call.1} parent=5 // pred_fallthru
        _
      %p462 = scmp.le.s32.totalorder 1, %s19
      %p463 = scmp.lt.s32.totalorder %s19, 3
      %p464 = pnand %p462, %p463
      %p465 = pneg %p464
      // Predicated region
      $region57: #{tpu_custom_call.1} parent=5 // pred_check
        _
      $region58: #{tpu_custom_call.1} parent=5 // pred_check_branch
        %467 = sbr.rel (%p464) target = $region60
      $region59: #{tpu_custom_call.1} parent=5 // pred_region
        %s468 = ssub.s32 %s19, 1
        // Predicated region
        $region61: #{tpu_custom_call.1} parent=59 // pred_check
          %p469 = pneg %p57
        $region62: #{tpu_custom_call.1} parent=59 // pred_check_branch
          %471 = sbr.rel (%p469) target = $region64
        $region63: #{tpu_custom_call.1} parent=59 // pred_region
          %472 = dma.done [#allocation4], 512
        $region64: #{tpu_custom_call.1} parent=59 // pred_fallthru
          _
        // Predicated region
        $region65: #{tpu_custom_call.1} parent=59 // pred_check
          %p473 = pneg %p83
        $region66: #{tpu_custom_call.1} parent=59 // pred_check_branch
          %475 = sbr.rel (%p473) target = $region68
        $region67: #{tpu_custom_call.1} parent=59 // pred_region
          %476 = dma.done [#allocation7], 512
        $region68: #{tpu_custom_call.1} parent=59 // pred_fallthru
          _
        %s477 = sand.u32 %s24, 1
        %s478 = scalar_lea.sflag [#allocation4], %s477
        %s479 = sand.u32 %s117, 1
        %s480 = smul.addr %s479, 192
        %s481 = scalar_lea.vmem [#allocation8], %s480
        // Predicated region
        $region69: #{tpu_custom_call.1} parent=59 // pred_check
          %p482 = pneg %p130
        $region70: #{tpu_custom_call.1} parent=59 // pred_check_branch
          %484 = sbr.rel (%p482) target = $region72
        $region71: #{tpu_custom_call.1} parent=59 // pred_region
          %485 = dma.done %s478, 3072
        $region72: #{tpu_custom_call.1} parent=59 // pred_fallthru
          _
        %s486 = sand.u32 %s24, 1
        %s487 = scalar_lea.sflag [#allocation4], %s486
        %s488 = sand.u32 %s143, 1
        %s489 = smul.addr %s488, 64
        %s490 = scalar_lea.vmem [#allocation9], %s489
        // Predicated region
        $region73: #{tpu_custom_call.1} parent=59 // pred_check
          %p491 = pneg %p156
        $region74: #{tpu_custom_call.1} parent=59 // pred_check_branch
          %493 = sbr.rel (%p491) target = $region76
        $region75: #{tpu_custom_call.1} parent=59 // pred_region
          %494 = dma.done %s487, 1024
        $region76: #{tpu_custom_call.1} parent=59 // pred_fallthru
          _
        %s495 = sand.u32 %s24, 1
        %s496 = scalar_lea.sflag [#allocation4], %s495
        %s497 = sand.u32 %s169, 1
        %s498 = smul.addr %s497, 256
        %s499 = scalar_lea.vmem [#allocation10], %s498
        // Predicated region
        $region77: #{tpu_custom_call.1} parent=59 // pred_check
          %p500 = pneg %p182
        $region78: #{tpu_custom_call.1} parent=59 // pred_check_branch
          %502 = sbr.rel (%p500) target = $region80
        $region79: #{tpu_custom_call.1} parent=59 // pred_region
          %503 = dma.done %s496, 4096
        $region80: #{tpu_custom_call.1} parent=59 // pred_fallthru
          _
        %s504 = sand.u32 %s24, 1
        %s505 = scalar_lea.sflag [#allocation4], %s504
        %s506 = sand.u32 %s195, 1
        %s507 = smul.addr %s506, 256
        %s508 = scalar_lea.vmem [#allocation11], %s507
        // Predicated region
        $region81: #{tpu_custom_call.1} parent=59 // pred_check
          %p509 = pneg %p208
        $region82: #{tpu_custom_call.1} parent=59 // pred_check_branch
          %511 = sbr.rel (%p509) target = $region84
        $region83: #{tpu_custom_call.1} parent=59 // pred_region
          %512 = dma.done %s505, 4096
        $region84: #{tpu_custom_call.1} parent=59 // pred_fallthru
          _
        %p513 = pneg %p57
        %p514 = pneg %p54
        %p515 = pneg %p83
        %p516 = pneg %p80
        %p517 = pneg %p104
        %p518 = pneg %p101
        %s519 = sand.u32 %s24, 1
        %s520 = scalar_lea.sflag [#allocation4], %s519
        %s521 = sand.u32 %s117, 1
        %s522 = smul.addr %s521, 192
        %s523 = scalar_lea.vmem [#allocation8], %s522
        %p524 = pneg %p130
        %p525 = pneg %p127
        %s526 = sand.u32 %s24, 1
        %s527 = scalar_lea.sflag [#allocation4], %s526
        %s528 = sand.u32 %s143, 1
        %s529 = smul.addr %s528, 64
        %s530 = scalar_lea.vmem [#allocation9], %s529
        %p531 = pneg %p156
        %p532 = pneg %p153
        %s533 = sand.u32 %s24, 1
        %s534 = scalar_lea.sflag [#allocation4], %s533
        %s535 = sand.u32 %s169, 1
        %s536 = smul.addr %s535, 256
        %s537 = scalar_lea.vmem [#allocation10], %s536
        %p538 = pneg %p182
        %p539 = pneg %p179
        %s540 = sand.u32 %s24, 1
        %s541 = scalar_lea.sflag [#allocation4], %s540
        %s542 = sand.u32 %s195, 1
        %s543 = smul.addr %s542, 256
        %s544 = scalar_lea.vmem [#allocation11], %s543
        %p545 = pneg %p208
        %p546 = pneg %p205
        %p547 = scmp.lt.s32.totalorder %s29, 1
        %s548 = scalar_select %p547, %s29, 1
        %s549 = smul.addr %s548, 8
        %s550 = scalar_lea.vmem %s7, %s549
        %p551 = pneg %p234
        %p552 = pneg %p231
        %p553 = scmp.lt.s32.totalorder %s29, 1
        %s554 = scalar_select %p553, %s29, 1
        %s555 = smul.addr %s554, 4
        %s556 = scalar_lea.vmem %s8, %s555
        %p557 = pneg %p260
        %p558 = pneg %p257
        %p559 = pneg %p281
        %p560 = pneg %p278
        %p561 = pneg %p307
        %p562 = pneg %p304
        %s563 = smul.u32 4, %s28
        %s564 = smul.u32 4, %s28
        %p565 = scmp.lt.s32.totalorder %s29, 1
        %s566 = scalar_select %p565, %s29, 1
        %s567 = smul.addr %s566, 8
        %s568 = scalar_lea.vmem %s7, %s567
        %p569 = scmp.lt.s32.totalorder %s29, 1
        %s570 = scalar_select %p569, %s29, 1
        %s571 = smul.addr %s570, 4
        %s572 = scalar_lea.vmem %s8, %s571
        %s573 = smul.u32 2, %s28
        %p575 = scmp.eq.s32.totalorder %s29, 0
        // Predicated region
        $region85: #{tpu_custom_call.1} parent=59 // pred_check
          %p576 = pneg %p575
        $region86: #{tpu_custom_call.1} parent=59 // pred_check_branch
          %578 = sbr.rel (%p576) target = $region88
        $region87: #{tpu_custom_call.1} parent=59 // pred_region
          %v579 = vld [vmem:[#allocation3] sm:$0xff]
          %v580 = vld [vmem:[#allocation3 + $0x8] sm:$0xff]
          %v581 = vld [vmem:[#allocation3 + $0x10] sm:$0xff]
          %v582 = vld [vmem:[#allocation3 + $0x18] sm:$0xff]
          %583 = vst [vmem:[#allocation2] sm:$0xff] %v579
          %584 = vst [vmem:[#allocation2 + $0x8] sm:$0xff] %v580
          %585 = vst [vmem:[#allocation2 + $0x10] sm:$0xff] %v581
          %586 = vst [vmem:[#allocation2 + $0x18] sm:$0xff] %v582
        $region88: #{tpu_custom_call.1} parent=59 // pred_fallthru
          _
        %v587 = vld [vmem:[#allocation2] sm:$0xff]
        %v588 = vld [vmem:[#allocation2 + $0x8] sm:$0xff]
        %v589 = vld [vmem:[#allocation2 + $0x10] sm:$0xff]
        %v590 = vld [vmem:[#allocation2 + $0x18] sm:$0xff]
        %v591 = vld [vmem:[#allocation6] sm:$0xff]
        %v592 = vld [vmem:[#allocation6 + $0x8] sm:$0xff]
        %v593 = vld [vmem:[#allocation6 + $0x10] sm:$0xff]
        %v594 = vld [vmem:[#allocation6 + $0x18] sm:$0xff]
        %v595 = vadd.f32 %v587, %v591
        %v596 = vadd.f32 %v588, %v592
        %v597 = vadd.f32 %v589, %v593
        %v598 = vadd.f32 %v590, %v594
        %v599 = vld [vmem:[%s568] sm:$0x3f]
        %600 = vadd.xlane.f32.xlu0 %v595
        %v601 = vpop.xlane.xlu0 %600
        %602 = vadd.xlane.f32.xlu0 %v596
        %v603 = vpop.xlane.xlu0 %602
        %604 = vadd.xlane.f32.xlu0 %v597
        %v605 = vpop.xlane.xlu0 %604
        %606 = vadd.xlane.f32.xlu0 %v598
        %v607 = vpop.xlane.xlu0 %606
        %v608 = vrcp.pop 128.0
        %v609 = vmul.f32 %v601, %v608
        %v610 = vmul.f32 %v603, %v608
        %v611 = vmul.f32 %v605, %v608
        %v612 = vmul.f32 %v607, %v608
        %v613 = vsub.f32 %v595, %v609
        %v614 = vsub.f32 %v596, %v610
        %v615 = vsub.f32 %v597, %v611
        %v616 = vsub.f32 %v598, %v612
        %v617 = vmul.f32 %v613, %v613
        %v618 = vmul.f32 %v614, %v614
        %v619 = vmul.f32 %v615, %v615
        %v620 = vmul.f32 %v616, %v616
        %621 = vadd.xlane.f32.xlu0 %v617
        %v622 = vpop.xlane.xlu0 %621
        %623 = vadd.xlane.f32.xlu0 %v618
        %v624 = vpop.xlane.xlu0 %623
        %625 = vadd.xlane.f32.xlu0 %v619
        %v626 = vpop.xlane.xlu0 %625
        %627 = vadd.xlane.f32.xlu0 %v620
        %v628 = vpop.xlane.xlu0 %627
        %v629 = vmul.f32 %v622, %v608
        %v630 = vmul.f32 %v624, %v608
        %v631 = vmul.f32 %v626, %v608
        %v632 = vmul.f32 %v628, %v608
        %v633 = vadd.f32 %v629, 1e-05
        %v634 = vadd.f32 %v630, 1e-05
        %v635 = vadd.f32 %v631, 1e-05
        %v636 = vadd.f32 %v632, 1e-05
        %v637 = vrsqrt.pop %v633
        %v638 = vrsqrt.pop %v634
        %v639 = vrsqrt.pop %v635
        %v640 = vrsqrt.pop %v636
        %v641 = vmul.f32 %v613, %v637
        %v642 = vmul.f32 %v614, %v638
        %v643 = vmul.f32 %v615, %v639
        %v644 = vmul.f32 %v616, %v640
        %v645 = vlaneseq
        %v646 = vshrl.u32 %v645, 7
        %v647 = vsub.s32 0, %v646
        %v648 = vrot.slane %v599, %v647
        %v649 = vmul.f32 %v641, %v648
        %v650 = vmul.f32 %v642, %v648
        %v651 = vmul.f32 %v643, %v648
        %v652 = vmul.f32 %v644, %v648
        %v653 = vlaneseq
        %v654 = vshrl.u32 %v653, 7
        %v655 = vsub.s32 1, %v654
        %v656 = vrot.slane %v599, %v655
        %v657 = vadd.f32 %v649, %v656
        %v658 = vadd.f32 %v650, %v656
        %v659 = vadd.f32 %v651, %v656
        %v660 = vadd.f32 %v652, %v656
        %v661 = vpack.c.bf16 %v658, %v657
        %v662 = vpack.c.bf16 %v660, %v659
        %v663 = vld [vmem:[%s481] sm:$0xf]
        %v664 = vld [vmem:[%s481 + $0x4] sm:$0xf]
        %v665 = vld [vmem:[%s481 + $0x8] sm:$0xf]
        %v666 = vld [vmem:[%s481 + $0xc] sm:$0xf]
        %v667 = vld [vmem:[%s481 + $0x10] sm:$0xf]
        %v668 = vld [vmem:[%s481 + $0x14] sm:$0xf]
        %v669 = vld [vmem:[%s481 + $0x18] sm:$0xf]
        %v670 = vld [vmem:[%s481 + $0x1c] sm:$0xf]
        %v671 = vld [vmem:[%s481 + $0x20] sm:$0xf]
        %v672 = vld [vmem:[%s481 + $0x24] sm:$0xf]
        %v673 = vld [vmem:[%s481 + $0x28] sm:$0xf]
        %v674 = vld [vmem:[%s481 + $0x2c] sm:$0xf]
        %v675 = vld [vmem:[%s481 + $0x30] sm:$0xf]
        %v676 = vld [vmem:[%s481 + $0x34] sm:$0xf]
        %v677 = vld [vmem:[%s481 + $0x38] sm:$0xf]
        %v678 = vld [vmem:[%s481 + $0x3c] sm:$0xf]
        %v679 = vld [vmem:[%s481 + $0x40] sm:$0xf]
        %v680 = vld [vmem:[%s481 + $0x44] sm:$0xf]
        %v681 = vld [vmem:[%s481 + $0x48] sm:$0xf]
        %v682 = vld [vmem:[%s481 + $0x4c] sm:$0xf]
        %v683 = vld [vmem:[%s481 + $0x50] sm:$0xf]
        %v684 = vld [vmem:[%s481 + $0x54] sm:$0xf]
        %v685 = vld [vmem:[%s481 + $0x58] sm:$0xf]
        %v686 = vld [vmem:[%s481 + $0x5c] sm:$0xf]
        %v687 = vld [vmem:[%s481 + $0x60] sm:$0xf]
        %v688 = vld [vmem:[%s481 + $0x64] sm:$0xf]
        %v689 = vld [vmem:[%s481 + $0x68] sm:$0xf]
        %v690 = vld [vmem:[%s481 + $0x6c] sm:$0xf]
        %v691 = vld [vmem:[%s481 + $0x70] sm:$0xf]
        %v692 = vld [vmem:[%s481 + $0x74] sm:$0xf]
        %v693 = vld [vmem:[%s481 + $0x78] sm:$0xf]
        %v694 = vld [vmem:[%s481 + $0x7c] sm:$0xf]
        %v695 = vld [vmem:[%s481 + $0x80] sm:$0xf]
        %v696 = vld [vmem:[%s481 + $0x84] sm:$0xf]
        %v697 = vld [vmem:[%s481 + $0x88] sm:$0xf]
        %v698 = vld [vmem:[%s481 + $0x8c] sm:$0xf]
        %v699 = vld [vmem:[%s481 + $0x90] sm:$0xf]
        %v700 = vld [vmem:[%s481 + $0x94] sm:$0xf]
        %v701 = vld [vmem:[%s481 + $0x98] sm:$0xf]
        %v702 = vld [vmem:[%s481 + $0x9c] sm:$0xf]
        %v703 = vld [vmem:[%s481 + $0xa0] sm:$0xf]
        %v704 = vld [vmem:[%s481 + $0xa4] sm:$0xf]
        %v705 = vld [vmem:[%s481 + $0xa8] sm:$0xf]
        %v706 = vld [vmem:[%s481 + $0xac] sm:$0xf]
        %v707 = vld [vmem:[%s481 + $0xb0] sm:$0xf]
        %v708 = vld [vmem:[%s481 + $0xb4] sm:$0xf]
        %v709 = vld [vmem:[%s481 + $0xb8] sm:$0xf]
        %v710 = vld [vmem:[%s481 + $0xbc] sm:$0xf]
        %v715 = vunpack.c.l.b16 %v663
        %v716 = vunpack.c.l.b16 %v664
        %v717 = vunpack.c.l.b16 %v665
        %v718 = vunpack.c.l.b16 %v666
        %v719 = vpack.c.b16 %v716, %v715
        %v720 = vpack.c.b16 %v718, %v717
        %723 = vmatprep.subr.bf16.mxu0 0
        %724 = vmatpush1.bf16.xpose.msra.mxu0 %v719
        %725 = vmatprep.subr.bf16.mxu0 0
        %726 = vmatpush1.bf16.xpose.msra.mxu0 %v720
        %727 = vmatprep.subr.bf16.mxu0 0
        %728 = vmatpush1.bf16.xpose.msra.mxu0 0
        %729 = vmatprep.subr.bf16.mxu0 0
        %730 = vmatpush1.bf16.xpose.msra.mxu0 0
        %731 = vmatprep.subr.bf16.mxu0 0
        %732 = vmatpush1.bf16.xpose.msra.mxu0 0
        %733 = vmatprep.subr.bf16.mxu0 0
        %734 = vmatpush1.bf16.xpose.msra.mxu0 0
        %735 = vmatprep.subr.bf16.mxu0 0
        %736 = vmatpush1.bf16.xpose.msra.mxu0 0
        %737 = vmatprep.subr.bf16.mxu0 0
        %738 = vmatpush1.bf16.xpose.msra.mxu0 0
        %739 = vmatprep.subr.bf16.mxu0 0
        %740 = vmatpush1.bf16.xpose.msra.mxu0 0
        %741 = vmatprep.subr.bf16.mxu0 0
        %742 = vmatpush1.bf16.xpose.msra.mxu0 0
        %743 = vmatprep.subr.bf16.mxu0 0
        %744 = vmatpush1.bf16.xpose.msra.mxu0 0
        %745 = vmatprep.subr.bf16.mxu0 0
        %746 = vmatpush1.bf16.xpose.msra.mxu0 0
        %747 = vmatprep.subr.bf16.mxu0 0
        %748 = vmatpush1.bf16.xpose.msra.mxu0 0
        %749 = vmatprep.subr.bf16.mxu0 0
        %750 = vmatpush1.bf16.xpose.msra.mxu0 0
        %751 = vmatprep.subr.bf16.mxu0 0
        %752 = vmatpush1.bf16.xpose.msra.mxu0 0
        %753 = vmatprep.subr.bf16.mxu0 0
        %754 = vmatpush1.bf16.xpose.msra.mxu0 0
        %755 = vmatprep.mubr.bf16.mxu0 0
        %756 = vmatmul.mubr.bf16.gmra.mrb[0].mxu0 %v661
        %v757 = vpop.f32.mrb[0].mxu0
        %v758 = vadd.f32 0.0, %v757
        %v759 = vpop.f32.mrb[0].mxu0
        %v760 = vpop.f32.mrb[0].mxu0
        %v761 = vadd.f32 0.0, %v760
        %v762 = vpop.f32.mrb[0].mxu0
        %763 = vmatprep.mubr.bf16.mxu0 0
        %764 = vmatmul.mubr.bf16.gmra.mrb[0].mxu0 %v662
        %v765 = vpop.f32.mrb[0].mxu0
        %v766 = vadd.f32 0.0, %v765
        %v767 = vpop.f32.mrb[0].mxu0
        %v768 = vpop.f32.mrb[0].mxu0
        %v769 = vadd.f32 0.0, %v768
        %v770 = vpop.f32.mrb[0].mxu0
        %771 = vdwg.mxu0
        %v776 = vunpack.c.l.b16 %v667
        %v777 = vunpack.c.l.b16 %v668
        %v778 = vunpack.c.l.b16 %v669
        %v779 = vunpack.c.l.b16 %v670
        %v780 = vpack.c.b16 %v777, %v776
        %v781 = vpack.c.b16 %v779, %v778
        %784 = vmatprep.subr.bf16.mxu0 0
        %785 = vmatpush1.bf16.xpose.msra.mxu0 %v780
        %786 = vmatprep.subr.bf16.mxu0 0
        %787 = vmatpush1.bf16.xpose.msra.mxu0 %v781
        %788 = vmatprep.subr.bf16.mxu0 0
        %789 = vmatpush1.bf16.xpose.msra.mxu0 0
        %790 = vmatprep.subr.bf16.mxu0 0
        %791 = vmatpush1.bf16.xpose.msra.mxu0 0
        %792 = vmatprep.subr.bf16.mxu0 0
        %793 = vmatpush1.bf16.xpose.msra.mxu0 0
        %794 = vmatprep.subr.bf16.mxu0 0
        %795 = vmatpush1.bf16.xpose.msra.mxu0 0
        %796 = vmatprep.subr.bf16.mxu0 0
        %797 = vmatpush1.bf16.xpose.msra.mxu0 0
        %798 = vmatprep.subr.bf16.mxu0 0
        %799 = vmatpush1.bf16.xpose.msra.mxu0 0
        %800 = vmatprep.subr.bf16.mxu0 0
        %801 = vmatpush1.bf16.xpose.msra.mxu0 0
        %802 = vmatprep.subr.bf16.mxu0 0
        %803 = vmatpush1.bf16.xpose.msra.mxu0 0
        %804 = vmatprep.subr.bf16.mxu0 0
        %805 = vmatpush1.bf16.xpose.msra.mxu0 0
        %806 = vmatprep.subr.bf16.mxu0 0
        %807 = vmatpush1.bf16.xpose.msra.mxu0 0
        %808 = vmatprep.subr.bf16.mxu0 0
        %809 = vmatpush1.bf16.xpose.msra.mxu0 0
        %810 = vmatprep.subr.bf16.mxu0 0
        %811 = vmatpush1.bf16.xpose.msra.mxu0 0
        %812 = vmatprep.subr.bf16.mxu0 0
        %813 = vmatpush1.bf16.xpose.msra.mxu0 0
        %814 = vmatprep.subr.bf16.mxu0 0
        %815 = vmatpush1.bf16.xpose.msra.mxu0 0
        %816 = vmatprep.mubr.bf16.mxu0 0
        %817 = vmatmul.mubr.bf16.gmra.mrb[0].mxu0 %v661
        %v818 = vpop.f32.mrb[0].mxu0
        %v819 = vadd.f32 0.0, %v818
        %v820 = vpop.f32.mrb[0].mxu0
        %v821 = vpop.f32.mrb[0].mxu0
        %v822 = vadd.f32 0.0, %v821
        %v823 = vpop.f32.mrb[0].mxu0
        %824 = vmatprep.mubr.bf16.mxu0 0
        %825 = vmatmul.mubr.bf16.gmra.mrb[0].mxu0 %v662
        %v826 = vpop.f32.mrb[0].mxu0
        %v827 = vadd.f32 0.0, %v826
        %v828 = vpop.f32.mrb[0].mxu0
        %v829 = vpop.f32.mrb[0].mxu0
        %v830 = vadd.f32 0.0, %v829
        %v831 = vpop.f32.mrb[0].mxu0
        %832 = vdwg.mxu0
        %v837 = vunpack.c.l.b16 %v671
        %v838 = vunpack.c.l.b16 %v672
        %v839 = vunpack.c.l.b16 %v673
        %v840 = vunpack.c.l.b16 %v674
        %v841 = vpack.c.b16 %v838, %v837
        %v842 = vpack.c.b16 %v840, %v839
        %845 = vmatprep.subr.bf16.mxu0 0
        %846 = vmatpush1.bf16.xpose.msra.mxu0 %v841
        %847 = vmatprep.subr.bf16.mxu0 0
        %848 = vmatpush1.bf16.xpose.msra.mxu0 %v842
        %849 = vmatprep.subr.bf16.mxu0 0
        %850 = vmatpush1.bf16.xpose.msra.mxu0 0
        %851 = vmatprep.subr.bf16.mxu0 0
        %852 = vmatpush1.bf16.xpose.msra.mxu0 0
        %853 = vmatprep.subr.bf16.mxu0 0
        %854 = vmatpush1.bf16.xpose.msra.mxu0 0
        %855 = vmatprep.subr.bf16.mxu0 0
        %856 = vmatpush1.bf16.xpose.msra.mxu0 0
        %857 = vmatprep.subr.bf16.mxu0 0
        %858 = vmatpush1.bf16.xpose.msra.mxu0 0
        %859 = vmatprep.subr.bf16.mxu0 0
        %860 = vmatpush1.bf16.xpose.msra.mxu0 0
        %861 = vmatprep.subr.bf16.mxu0 0
        %862 = vmatpush1.bf16.xpose.msra.mxu0 0
        %863 = vmatprep.subr.bf16.mxu0 0
        %864 = vmatpush1.bf16.xpose.msra.mxu0 0
        %865 = vmatprep.subr.bf16.mxu0 0
        %866 = vmatpush1.bf16.xpose.msra.mxu0 0
        %867 = vmatprep.subr.bf16.mxu0 0
        %868 = vmatpush1.bf16.xpose.msra.mxu0 0
        %869 = vmatprep.subr.bf16.mxu0 0
        %870 = vmatpush1.bf16.xpose.msra.mxu0 0
        %871 = vmatprep.subr.bf16.mxu0 0
        %872 = vmatpush1.bf16.xpose.msra.mxu0 0
        %873 = vmatprep.subr.bf16.mxu0 0
        %874 = vmatpush1.bf16.xpose.msra.mxu0 0
        %875 = vmatprep.subr.bf16.mxu0 0
        %876 = vmatpush1.bf16.xpose.msra.mxu0 0
        %877 = vmatprep.mubr.bf16.mxu0 0
        %878 = vmatmul.mubr.bf16.gmra.mrb[0].mxu0 %v661
        %v879 = vpop.f32.mrb[0].mxu0
        %v880 = vadd.f32 0.0, %v879
        %v881 = vpop.f32.mrb[0].mxu0
        %v882 = vpop.f32.mrb[0].mxu0
        %v883 = vadd.f32 0.0, %v882
        %v884 = vpop.f32.mrb[0].mxu0
        %885 = vmatprep.mubr.bf16.mxu0 0
        %886 = vmatmul.mubr.bf16.gmra.mrb[0].mxu0 %v662
        %v887 = vpop.f32.mrb[0].mxu0
        %v888 = vadd.f32 0.0, %v887
        %v889 = vpop.f32.mrb[0].mxu0
        %v890 = vpop.f32.mrb[0].mxu0
        %v891 = vadd.f32 0.0, %v890
        %v892 = vpop.f32.mrb[0].mxu0
        %893 = vdwg.mxu0
        %v898 = vunpack.c.l.b16 %v675
        %v899 = vunpack.c.l.b16 %v676
        %v900 = vunpack.c.l.b16 %v677
        %v901 = vunpack.c.l.b16 %v678
        %v902 = vpack.c.b16 %v899, %v898
        %v903 = vpack.c.b16 %v901, %v900
        %906 = vmatprep.subr.bf16.mxu0 0
        %907 = vmatpush1.bf16.xpose.msra.mxu0 %v902
        %908 = vmatprep.subr.bf16.mxu0 0
        %909 = vmatpush1.bf16.xpose.msra.mxu0 %v903
        %910 = vmatprep.subr.bf16.mxu0 0
        %911 = vmatpush1.bf16.xpose.msra.mxu0 0
        %912 = vmatprep.subr.bf16.mxu0 0
        %913 = vmatpush1.bf16.xpose.msra.mxu0 0
        %914 = vmatprep.subr.bf16.mxu0 0
        %915 = vmatpush1.bf16.xpose.msra.mxu0 0
        %916 = vmatprep.subr.bf16.mxu0 0
        %917 = vmatpush1.bf16.xpose.msra.mxu0 0
        %918 = vmatprep.subr.bf16.mxu0 0
        %919 = vmatpush1.bf16.xpose.msra.mxu0 0
        %920 = vmatprep.subr.bf16.mxu0 0
        %921 = vmatpush1.bf16.xpose.msra.mxu0 0
        %922 = vmatprep.subr.bf16.mxu0 0
        %923 = vmatpush1.bf16.xpose.msra.mxu0 0
        %924 = vmatprep.subr.bf16.mxu0 0
        %925 = vmatpush1.bf16.xpose.msra.mxu0 0
        %926 = vmatprep.subr.bf16.mxu0 0
        %927 = vmatpush1.bf16.xpose.msra.mxu0 0
        %928 = vmatprep.subr.bf16.mxu0 0
        %929 = vmatpush1.bf16.xpose.msra.mxu0 0
        %930 = vmatprep.subr.bf16.mxu0 0
        %931 = vmatpush1.bf16.xpose.msra.mxu0 0
        %932 = vmatprep.subr.bf16.mxu0 0
        %933 = vmatpush1.bf16.xpose.msra.mxu0 0
        %934 = vmatprep.subr.bf16.mxu0 0
        %935 = vmatpush1.bf16.xpose.msra.mxu0 0
        %936 = vmatprep.subr.bf16.mxu0 0
        %937 = vmatpush1.bf16.xpose.msra.mxu0 0
        %938 = vmatprep.mubr.bf16.mxu0 0
        %939 = vmatmul.mubr.bf16.gmra.mrb[0].mxu0 %v661
        %v940 = vpop.f32.mrb[0].mxu0
        %v941 = vadd.f32 0.0, %v940
        %v942 = vpop.f32.mrb[0].mxu0
        %v943 = vpop.f32.mrb[0].mxu0
        %v944 = vadd.f32 0.0, %v943
        %v945 = vpop.f32.mrb[0].mxu0
        %946 = vmatprep.mubr.bf16.mxu0 0
        %947 = vmatmul.mubr.bf16.gmra.mrb[0].mxu0 %v662
        %v948 = vpop.f32.mrb[0].mxu0
        %v949 = vadd.f32 0.0, %v948
        %v950 = vpop.f32.mrb[0].mxu0
        %v951 = vpop.f32.mrb[0].mxu0
        %v952 = vadd.f32 0.0, %v951
        %v953 = vpop.f32.mrb[0].mxu0
        %954 = vdwg.mxu0
        %v959 = vunpack.c.l.b16 %v679
        %v960 = vunpack.c.l.b16 %v680
        %v961 = vunpack.c.l.b16 %v681
        %v962 = vunpack.c.l.b16 %v682
        %v963 = vpack.c.b16 %v960, %v959
        %v964 = vpack.c.b16 %v962, %v961
        %967 = vmatprep.subr.bf16.mxu0 0
        %968 = vmatpush1.bf16.xpose.msra.mxu0 %v963
        %969 = vmatprep.subr.bf16.mxu0 0
        %970 = vmatpush1.bf16.xpose.msra.mxu0 %v964
        %971 = vmatprep.subr.bf16.mxu0 0
        %972 = vmatpush1.bf16.xpose.msra.mxu0 0
        %973 = vmatprep.subr.bf16.mxu0 0
        %974 = vmatpush1.bf16.xpose.msra.mxu0 0
        %975 = vmatprep.subr.bf16.mxu0 0
        %976 = vmatpush1.bf16.xpose.msra.mxu0 0
        %977 = vmatprep.subr.bf16.mxu0 0
        %978 = vmatpush1.bf16.xpose.msra.mxu0 0
        %979 = vmatprep.subr.bf16.mxu0 0
        %980 = vmatpush1.bf16.xpose.msra.mxu0 0
        %981 = vmatprep.subr.bf16.mxu0 0
        %982 = vmatpush1.bf16.xpose.msra.mxu0 0
        %983 = vmatprep.subr.bf16.mxu0 0
        %984 = vmatpush1.bf16.xpose.msra.mxu0 0
        %985 = vmatprep.subr.bf16.mxu0 0
        %986 = vmatpush1.bf16.xpose.msra.mxu0 0
        %987 = vmatprep.subr.bf16.mxu0 0
        %988 = vmatpush1.bf16.xpose.msra.mxu0 0
        %989 = vmatprep.subr.bf16.mxu0 0
        %990 = vmatpush1.bf16.xpose.msra.mxu0 0
        %991 = vmatprep.subr.bf16.mxu0 0
        %992 = vmatpush1.bf16.xpose.msra.mxu0 0
        %993 = vmatprep.subr.bf16.mxu0 0
        %994 = vmatpush1.bf16.xpose.msra.mxu0 0
        %995 = vmatprep.subr.bf16.mxu0 0
        %996 = vmatpush1.bf16.xpose.msra.mxu0 0
        %997 = vmatprep.subr.bf16.mxu0 0
        %998 = vmatpush1.bf16.xpose.msra.mxu0 0
        %999 = vmatprep.mubr.bf16.mxu0 0
        %1000 = vmatmul.mubr.bf16.gmra.mrb[0].mxu0 %v661
        %v1001 = vpop.f32.mrb[0].mxu0
        %v1002 = vadd.f32 0.0, %v1001
        %v1003 = vpop.f32.mrb[0].mxu0
        %v1004 = vpop.f32.mrb[0].mxu0
        %v1005 = vadd.f32 0.0, %v1004
        %v1006 = vpop.f32.mrb[0].mxu0
        %1007 = vmatprep.mubr.bf16.mxu0 0
        %1008 = vmatmul.mubr.bf16.gmra.mrb[0].mxu0 %v662
        %v1009 = vpop.f32.mrb[0].mxu0
        %v1010 = vadd.f32 0.0, %v1009
        %v1011 = vpop.f32.mrb[0].mxu0
        %v1012 = vpop.f32.mrb[0].mxu0
        %v1013 = vadd.f32 0.0, %v1012
        %v1014 = vpop.f32.mrb[0].mxu0
        %1015 = vdwg.mxu0
        %v1020 = vunpack.c.l.b16 %v683
        %v1021 = vunpack.c.l.b16 %v684
        %v1022 = vunpack.c.l.b16 %v685
        %v1023 = vunpack.c.l.b16 %v686
        %v1024 = vpack.c.b16 %v1021, %v1020
        %v1025 = vpack.c.b16 %v1023, %v1022
        %1028 = vmatprep.subr.bf16.mxu0 0
        %1029 = vmatpush1.bf16.xpose.msra.mxu0 %v1024
        %1030 = vmatprep.subr.bf16.mxu0 0
        %1031 = vmatpush1.bf16.xpose.msra.mxu0 %v1025
        %1032 = vmatprep.subr.bf16.mxu0 0
        %1033 = vmatpush1.bf16.xpose.msra.mxu0 0
        %1034 = vmatprep.subr.bf16.mxu0 0
        %1035 = vmatpush1.bf16.xpose.msra.mxu0 0
        %1036 = vmatprep.subr.bf16.mxu0 0
        %1037 = vmatpush1.bf16.xpose.msra.mxu0 0
        %1038 = vmatprep.subr.bf16.mxu0 0
        %1039 = vmatpush1.bf16.xpose.msra.mxu0 0
        %1040 = vmatprep.subr.bf16.mxu0 0
        %1041 = vmatpush1.bf16.xpose.msra.mxu0 0
        %1042 = vmatprep.subr.bf16.mxu0 0
        %1043 = vmatpush1.bf16.xpose.msra.mxu0 0
        %1044 = vmatprep.subr.bf16.mxu0 0
        %1045 = vmatpush1.bf16.xpose.msra.mxu0 0
        %1046 = vmatprep.subr.bf16.mxu0 0
        %1047 = vmatpush1.bf16.xpose.msra.mxu0 0
        %1048 = vmatprep.subr.bf16.mxu0 0
        %1049 = vmatpush1.bf16.xpose.msra.mxu0 0
        %1050 = vmatprep.subr.bf16.mxu0 0
        %1051 = vmatpush1.bf16.xpose.msra.mxu0 0
        %1052 = vmatprep.subr.bf16.mxu0 0
        %1053 = vmatpush1.bf16.xpose.msra.mxu0 0
        %1054 = vmatprep.subr.bf16.mxu0 0
        %1055 = vmatpush1.bf16.xpose.msra.mxu0 0
        %1056 = vmatprep.subr.bf16.mxu0 0
        %1057 = vmatpush1.bf16.xpose.msra.mxu0 0
        %1058 = vmatprep.subr.bf16.mxu0 0
        %1059 = vmatpush1.bf16.xpose.msra.mxu0 0
        %1060 = vmatprep.mubr.bf16.mxu0 0
        %1061 = vmatmul.mubr.bf16.gmra.mrb[0].mxu0 %v661
        %v1062 = vpop.f32.mrb[0].mxu0
        %v1063 = vadd.f32 0.0, %v1062
        %v1064 = vpop.f32.mrb[0].mxu0
        %v1065 = vpop.f32.mrb[0].mxu0
        %v1066 = vadd.f32 0.0, %v1065
        %v1067 = vpop.f32.mrb[0].mxu0
        %1068 = vmatprep.mubr.bf16.mxu0 0
        %1069 = vmatmul.mubr.bf16.gmra.mrb[0].mxu0 %v662
        %v1070 = vpop.f32.mrb[0].mxu0
        %v1071 = vadd.f32 0.0, %v1070
        %v1072 = vpop.f32.mrb[0].mxu0
        %v1073 = vpop.f32.mrb[0].mxu0
        %v1074 = vadd.f32 0.0, %v1073
        %v1075 = vpop.f32.mrb[0].mxu0
        %1076 = vdwg.mxu0
        %v1081 = vunpack.c.l.b16 %v687
        %v1082 = vunpack.c.l.b16 %v688
        %v1083 = vunpack.c.l.b16 %v689
        %v1084 = vunpack.c.l.b16 %v690
        %v1085 = vpack.c.b16 %v1082, %v1081
        %v1086 = vpack.c.b16 %v1084, %v1083
        %1089 = vmatprep.subr.bf16.mxu0 0
        %1090 = vmatpush1.bf16.xpose.msra.mxu0 %v1085
        %1091 = vmatprep.subr.bf16.mxu0 0
        %1092 = vmatpush1.bf16.xpose.msra.mxu0 %v1086
        %1093 = vmatprep.subr.bf16.mxu0 0
        %1094 = vmatpush1.bf16.xpose.msra.mxu0 0
        %1095 = vmatprep.subr.bf16.mxu0 0
        %1096 = vmatpush1.bf16.xpose.msra.mxu0 0
        %1097 = vmatprep.subr.bf16.mxu0 0
        %1098 = vmatpush1.bf16.xpose.msra.mxu0 0
        %1099 = vmatprep.subr.bf16.mxu0 0
        %1100 = vmatpush1.bf16.xpose.msra.mxu0 0
        %1101 = vmatprep.subr.bf16.mxu0 0
        %1102 = vmatpush1.bf16.xpose.msra.mxu0 0
        %1103 = vmatprep.subr.bf16.mxu0 0
        %1104 = vmatpush1.bf16.xpose.msra.mxu0 0
        %1105 = vmatprep.subr.bf16.mxu0 0
        %1106 = vmatpush1.bf16.xpose.msra.mxu0 0
        %1107 = vmatprep.subr.bf16.mxu0 0
        %1108 = vmatpush1.bf16.xpose.msra.mxu0 0
        %1109 = vmatprep.subr.bf16.mxu0 0
        %1110 = vmatpush1.bf16.xpose.msra.mxu0 0
        %1111 = vmatprep.subr.bf16.mxu0 0
        %1112 = vmatpush1.bf16.xpose.msra.mxu0 0
        %1113 = vmatprep.subr.bf16.mxu0 0
        %1114 = vmatpush1.bf16.xpose.msra.mxu0 0
        %1115 = vmatprep.subr.bf16.mxu0 0
        %1116 = vmatpush1.bf16.xpose.msra.mxu0 0
        %1117 = vmatprep.subr.bf16.mxu0 0
        %1118 = vmatpush1.bf16.xpose.msra.mxu0 0
        %1119 = vmatprep.subr.bf16.mxu0 0
        %1120 = vmatpush1.bf16.xpose.msra.mxu0 0
        %1121 = vmatprep.mubr.bf16.mxu0 0
        %1122 = vmatmul.mubr.bf16.gmra.mrb[0].mxu0 %v661
        %v1123 = vpop.f32.mrb[0].mxu0
        %v1124 = vadd.f32 0.0, %v1123
        %v1125 = vpop.f32.mrb[0].mxu0
        %v1126 = vpop.f32.mrb[0].mxu0
        %v1127 = vadd.f32 0.0, %v1126
        %v1128 = vpop.f32.mrb[0].mxu0
        %1129 = vmatprep.mubr.bf16.mxu0 0
        %1130 = vmatmul.mubr.bf16.gmra.mrb[0].mxu0 %v662
        %v1131 = vpop.f32.mrb[0].mxu0
        %v1132 = vadd.f32 0.0, %v1131
        %v1133 = vpop.f32.mrb[0].mxu0
        %v1134 = vpop.f32.mrb[0].mxu0
        %v1135 = vadd.f32 0.0, %v1134
        %v1136 = vpop.f32.mrb[0].mxu0
        %1137 = vdwg.mxu0
        %v1142 = vunpack.c.l.b16 %v691
        %v1143 = vunpack.c.l.b16 %v692
        %v1144 = vunpack.c.l.b16 %v693
        %v1145 = vunpack.c.l.b16 %v694
        %v1146 = vpack.c.b16 %v1143, %v1142
        %v1147 = vpack.c.b16 %v1145, %v1144
        %1150 = vmatprep.subr.bf16.mxu0 0
        %1151 = vmatpush1.bf16.xpose.msra.mxu0 %v1146
        %1152 = vmatprep.subr.bf16.mxu0 0
        %1153 = vmatpush1.bf16.xpose.msra.mxu0 %v1147
        %1154 = vmatprep.subr.bf16.mxu0 0
        %1155 = vmatpush1.bf16.xpose.msra.mxu0 0
        %1156 = vmatprep.subr.bf16.mxu0 0
        %1157 = vmatpush1.bf16.xpose.msra.mxu0 0
        %1158 = vmatprep.subr.bf16.mxu0 0
        %1159 = vmatpush1.bf16.xpose.msra.mxu0 0
        %1160 = vmatprep.subr.bf16.mxu0 0
        %1161 = vmatpush1.bf16.xpose.msra.mxu0 0
        %1162 = vmatprep.subr.bf16.mxu0 0
        %1163 = vmatpush1.bf16.xpose.msra.mxu0 0
        %1164 = vmatprep.subr.bf16.mxu0 0
        %1165 = vmatpush1.bf16.xpose.msra.mxu0 0
        %1166 = vmatprep.subr.bf16.mxu0 0
        %1167 = vmatpush1.bf16.xpose.msra.mxu0 0
        %1168 = vmatprep.subr.bf16.mxu0 0
        %1169 = vmatpush1.bf16.xpose.msra.mxu0 0
        %1170 = vmatprep.subr.bf16.mxu0 0
        %1171 = vmatpush1.bf16.xpose.msra.mxu0 0
        %1172 = vmatprep.subr.bf16.mxu0 0
        %1173 = vmatpush1.bf16.xpose.msra.mxu0 0
        %1174 = vmatprep.subr.bf16.mxu0 0
        %1175 = vmatpush1.bf16.xpose.msra.mxu0 0
        %1176 = vmatprep.subr.bf16.mxu0 0
        %1177 = vmatpush1.bf16.xpose.msra.mxu0 0
        %1178 = vmatprep.subr.bf16.mxu0 0
        %1179 = vmatpush1.bf16.xpose.msra.mxu0 0
        %1180 = vmatprep.subr.bf16.mxu0 0
        %1181 = vmatpush1.bf16.xpose.msra.mxu0 0
        %1182 = vmatprep.mubr.bf16.mxu0 0
        %1183 = vmatmul.mubr.bf16.gmra.mrb[0].mxu0 %v661
        %v1184 = vpop.f32.mrb[0].mxu0
        %v1185 = vadd.f32 0.0, %v1184
        %v1186 = vpop.f32.mrb[0].mxu0
        %v1187 = vpop.f32.mrb[0].mxu0
        %v1188 = vadd.f32 0.0, %v1187
        %v1189 = vpop.f32.mrb[0].mxu0
        %1190 = vmatprep.mubr.bf16.mxu0 0
        %1191 = vmatmul.mubr.bf16.gmra.mrb[0].mxu0 %v662
        %v1192 = vpop.f32.mrb[0].mxu0
        %v1193 = vadd.f32 0.0, %v1192
        %v1194 = vpop.f32.mrb[0].mxu0
        %v1195 = vpop.f32.mrb[0].mxu0
        %v1196 = vadd.f32 0.0, %v1195
        %v1197 = vpop.f32.mrb[0].mxu0
        %1198 = vdwg.mxu0
        %v1203 = vunpack.c.l.b16 %v695
        %v1204 = vunpack.c.l.b16 %v696
        %v1205 = vunpack.c.l.b16 %v697
        %v1206 = vunpack.c.l.b16 %v698
        %v1207 = vpack.c.b16 %v1204, %v1203
        %v1208 = vpack.c.b16 %v1206, %v1205
        %1211 = vmatprep.subr.bf16.mxu0 0
        %1212 = vmatpush1.bf16.xpose.msra.mxu0 %v1207
        %1213 = vmatprep.subr.bf16.mxu0 0
        %1214 = vmatpush1.bf16.xpose.msra.mxu0 %v1208
        %1215 = vmatprep.subr.bf16.mxu0 0
        %1216 = vmatpush1.bf16.xpose.msra.mxu0 0
        %1217 = vmatprep.subr.bf16.mxu0 0
        %1218 = vmatpush1.bf16.xpose.msra.mxu0 0
        %1219 = vmatprep.subr.bf16.mxu0 0
        %1220 = vmatpush1.bf16.xpose.msra.mxu0 0
        %1221 = vmatprep.subr.bf16.mxu0 0
        %1222 = vmatpush1.bf16.xpose.msra.mxu0 0
        %1223 = vmatprep.subr.bf16.mxu0 0
        %1224 = vmatpush1.bf16.xpose.msra.mxu0 0
        %1225 = vmatprep.subr.bf16.mxu0 0
        %1226 = vmatpush1.bf16.xpose.msra.mxu0 0
        %1227 = vmatprep.subr.bf16.mxu0 0
        %1228 = vmatpush1.bf16.xpose.msra.mxu0 0
        %1229 = vmatprep.subr.bf16.mxu0 0
        %1230 = vmatpush1.bf16.xpose.msra.mxu0 0
        %1231 = vmatprep.subr.bf16.mxu0 0
        %1232 = vmatpush1.bf16.xpose.msra.mxu0 0
        %1233 = vmatprep.subr.bf16.mxu0 0
        %1234 = vmatpush1.bf16.xpose.msra.mxu0 0
        %1235 = vmatprep.subr.bf16.mxu0 0
        %1236 = vmatpush1.bf16.xpose.msra.mxu0 0
        %1237 = vmatprep.subr.bf16.mxu0 0
        %1238 = vmatpush1.bf16.xpose.msra.mxu0 0
        %1239 = vmatprep.subr.bf16.mxu0 0
        %1240 = vmatpush1.bf16.xpose.msra.mxu0 0
        %1241 = vmatprep.subr.bf16.mxu0 0
        %1242 = vmatpush1.bf16.xpose.msra.mxu0 0
        %1243 = vmatprep.mubr.bf16.mxu0 0
        %1244 = vmatmul.mubr.bf16.gmra.mrb[0].mxu0 %v661
        %v1245 = vpop.f32.mrb[0].mxu0
        %v1246 = vadd.f32 0.0, %v1245
        %v1247 = vpop.f32.mrb[0].mxu0
        %v1248 = vpop.f32.mrb[0].mxu0
        %v1249 = vadd.f32 0.0, %v1248
        %v1250 = vpop.f32.mrb[0].mxu0
        %1251 = vmatprep.mubr.bf16.mxu0 0
        %1252 = vmatmul.mubr.bf16.gmra.mrb[0].mxu0 %v662
        %v1253 = vpop.f32.mrb[0].mxu0
        %v1254 = vadd.f32 0.0, %v1253
        %v1255 = vpop.f32.mrb[0].mxu0
        %v1256 = vpop.f32.mrb[0].mxu0
        %v1257 = vadd.f32 0.0, %v1256
        %v1258 = vpop.f32.mrb[0].mxu0
        %1259 = vdwg.mxu0
        %v1264 = vunpack.c.l.b16 %v699
        %v1265 = vunpack.c.l.b16 %v700
        %v1266 = vunpack.c.l.b16 %v701
        %v1267 = vunpack.c.l.b16 %v702
        %v1268 = vpack.c.b16 %v1265, %v1264
        %v1269 = vpack.c.b16 %v1267, %v1266
        %1272 = vmatprep.subr.bf16.mxu0 0
        %1273 = vmatpush1.bf16.xpose.msra.mxu0 %v1268
        %1274 = vmatprep.subr.bf16.mxu0 0
        %1275 = vmatpush1.bf16.xpose.msra.mxu0 %v1269
        %1276 = vmatprep.subr.bf16.mxu0 0
        %1277 = vmatpush1.bf16.xpose.msra.mxu0 0
        %1278 = vmatprep.subr.bf16.mxu0 0
        %1279 = vmatpush1.bf16.xpose.msra.mxu0 0
        %1280 = vmatprep.subr.bf16.mxu0 0
        %1281 = vmatpush1.bf16.xpose.msra.mxu0 0
        %1282 = vmatprep.subr.bf16.mxu0 0
        %1283 = vmatpush1.bf16.xpose.msra.mxu0 0
        %1284 = vmatprep.subr.bf16.mxu0 0
        %1285 = vmatpush1.bf16.xpose.msra.mxu0 0
        %1286 = vmatprep.subr.bf16.mxu0 0
        %1287 = vmatpush1.bf16.xpose.msra.mxu0 0
        %1288 = vmatprep.subr.bf16.mxu0 0
        %1289 = vmatpush1.bf16.xpose.msra.mxu0 0
        %1290 = vmatprep.subr.bf16.mxu0 0
        %1291 = vmatpush1.bf16.xpose.msra.mxu0 0
        %1292 = vmatprep.subr.bf16.mxu0 0
        %1293 = vmatpush1.bf16.xpose.msra.mxu0 0
        %1294 = vmatprep.subr.bf16.mxu0 0
        %1295 = vmatpush1.bf16.xpose.msra.mxu0 0
        %1296 = vmatprep.subr.bf16.mxu0 0
        %1297 = vmatpush1.bf16.xpose.msra.mxu0 0
        %1298 = vmatprep.subr.bf16.mxu0 0
        %1299 = vmatpush1.bf16.xpose.msra.mxu0 0
        %1300 = vmatprep.subr.bf16.mxu0 0
        %1301 = vmatpush1.bf16.xpose.msra.mxu0 0
        %1302 = vmatprep.subr.bf16.mxu0 0
        %1303 = vmatpush1.bf16.xpose.msra.mxu0 0
        %1304 = vmatprep.mubr.bf16.mxu0 0
        %1305 = vmatmul.mubr.bf16.gmra.mrb[0].mxu0 %v661
        %v1306 = vpop.f32.mrb[0].mxu0
        %v1307 = vadd.f32 0.0, %v1306
        %v1308 = vpop.f32.mrb[0].mxu0
        %v1309 = vpop.f32.mrb[0].mxu0
        %v1310 = vadd.f32 0.0, %v1309
        %v1311 = vpop.f32.mrb[0].mxu0
        %1312 = vmatprep.mubr.bf16.mxu0 0
        %1313 = vmatmul.mubr.bf16.gmra.mrb[0].mxu0 %v662
        %v1314 = vpop.f32.mrb[0].mxu0
        %v1315 = vadd.f32 0.0, %v1314
        %v1316 = vpop.f32.mrb[0].mxu0
        %v1317 = vpop.f32.mrb[0].mxu0
        %v1318 = vadd.f32 0.0, %v1317
        %v1319 = vpop.f32.mrb[0].mxu0
        %1320 = vdwg.mxu0
        %v1325 = vunpack.c.l.b16 %v703
        %v1326 = vunpack.c.l.b16 %v704
        %v1327 = vunpack.c.l.b16 %v705
        %v1328 = vunpack.c.l.b16 %v706
        %v1329 = vpack.c.b16 %v1326, %v1325
        %v1330 = vpack.c.b16 %v1328, %v1327
        %1333 = vmatprep.subr.bf16.mxu0 0
        %1334 = vmatpush1.bf16.xpose.msra.mxu0 %v1329
        %1335 = vmatprep.subr.bf16.mxu0 0
        %1336 = vmatpush1.bf16.xpose.msra.mxu0 %v1330
        %1337 = vmatprep.subr.bf16.mxu0 0
        %1338 = vmatpush1.bf16.xpose.msra.mxu0 0
        %1339 = vmatprep.subr.bf16.mxu0 0
        %1340 = vmatpush1.bf16.xpose.msra.mxu0 0
        %1341 = vmatprep.subr.bf16.mxu0 0
        %1342 = vmatpush1.bf16.xpose.msra.mxu0 0
        %1343 = vmatprep.subr.bf16.mxu0 0
        %1344 = vmatpush1.bf16.xpose.msra.mxu0 0
        %1345 = vmatprep.subr.bf16.mxu0 0
        %1346 = vmatpush1.bf16.xpose.msra.mxu0 0
        %1347 = vmatprep.subr.bf16.mxu0 0
        %1348 = vmatpush1.bf16.xpose.msra.mxu0 0
        %1349 = vmatprep.subr.bf16.mxu0 0
        %1350 = vmatpush1.bf16.xpose.msra.mxu0 0
        %1351 = vmatprep.subr.bf16.mxu0 0
        %1352 = vmatpush1.bf16.xpose.msra.mxu0 0
        %1353 = vmatprep.subr.bf16.mxu0 0
        %1354 = vmatpush1.bf16.xpose.msra.mxu0 0
        %1355 = vmatprep.subr.bf16.mxu0 0
        %1356 = vmatpush1.bf16.xpose.msra.mxu0 0
        %1357 = vmatprep.subr.bf16.mxu0 0
        %1358 = vmatpush1.bf16.xpose.msra.mxu0 0
        %1359 = vmatprep.subr.bf16.mxu0 0
        %1360 = vmatpush1.bf16.xpose.msra.mxu0 0
        %1361 = vmatprep.subr.bf16.mxu0 0
        %1362 = vmatpush1.bf16.xpose.msra.mxu0 0
        %1363 = vmatprep.subr.bf16.mxu0 0
        %1364 = vmatpush1.bf16.xpose.msra.mxu0 0
        %1365 = vmatprep.mubr.bf16.mxu0 0
        %1366 = vmatmul.mubr.bf16.gmra.mrb[0].mxu0 %v661
        %v1367 = vpop.f32.mrb[0].mxu0
        %v1368 = vadd.f32 0.0, %v1367
        %v1369 = vpop.f32.mrb[0].mxu0
        %v1370 = vpop.f32.mrb[0].mxu0
        %v1371 = vadd.f32 0.0, %v1370
        %v1372 = vpop.f32.mrb[0].mxu0
        %1373 = vmatprep.mubr.bf16.mxu0 0
        %1374 = vmatmul.mubr.bf16.gmra.mrb[0].mxu0 %v662
        %v1375 = vpop.f32.mrb[0].mxu0
        %v1376 = vadd.f32 0.0, %v1375
        %v1377 = vpop.f32.mrb[0].mxu0
        %v1378 = vpop.f32.mrb[0].mxu0
        %v1379 = vadd.f32 0.0, %v1378
        %v1380 = vpop.f32.mrb[0].mxu0
        %1381 = vdwg.mxu0
        %v1386 = vunpack.c.l.b16 %v707
        %v1387 = vunpack.c.l.b16 %v708
        %v1388 = vunpack.c.l.b16 %v709
        %v1389 = vunpack.c.l.b16 %v710
        %v1390 = vpack.c.b16 %v1387, %v1386
        %v1391 = vpack.c.b16 %v1389, %v1388
        %1394 = vmatprep.subr.bf16.mxu0 0
        %1395 = vmatpush1.bf16.xpose.msra.mxu0 %v1390
        %1396 = vmatprep.subr.bf16.mxu0 0
        %1397 = vmatpush1.bf16.xpose.msra.mxu0 %v1391
        %1398 = vmatprep.subr.bf16.mxu0 0
        %1399 = vmatpush1.bf16.xpose.msra.mxu0 0
        %1400 = vmatprep.subr.bf16.mxu0 0
        %1401 = vmatpush1.bf16.xpose.msra.mxu0 0
        %1402 = vmatprep.subr.bf16.mxu0 0
        %1403 = vmatpush1.bf16.xpose.msra.mxu0 0
        %1404 = vmatprep.subr.bf16.mxu0 0
        %1405 = vmatpush1.bf16.xpose.msra.mxu0 0
        %1406 = vmatprep.subr.bf16.mxu0 0
        %1407 = vmatpush1.bf16.xpose.msra.mxu0 0
        %1408 = vmatprep.subr.bf16.mxu0 0
        %1409 = vmatpush1.bf16.xpose.msra.mxu0 0
        %1410 = vmatprep.subr.bf16.mxu0 0
        %1411 = vmatpush1.bf16.xpose.msra.mxu0 0
        %1412 = vmatprep.subr.bf16.mxu0 0
        %1413 = vmatpush1.bf16.xpose.msra.mxu0 0
        %1414 = vmatprep.subr.bf16.mxu0 0
        %1415 = vmatpush1.bf16.xpose.msra.mxu0 0
        %1416 = vmatprep.subr.bf16.mxu0 0
        %1417 = vmatpush1.bf16.xpose.msra.mxu0 0
        %1418 = vmatprep.subr.bf16.mxu0 0
        %1419 = vmatpush1.bf16.xpose.msra.mxu0 0
        %1420 = vmatprep.subr.bf16.mxu0 0
        %1421 = vmatpush1.bf16.xpose.msra.mxu0 0
        %1422 = vmatprep.subr.bf16.mxu0 0
        %1423 = vmatpush1.bf16.xpose.msra.mxu0 0
        %1424 = vmatprep.subr.bf16.mxu0 0
        %1425 = vmatpush1.bf16.xpose.msra.mxu0 0
        %1426 = vmatprep.mubr.bf16.mxu0 0
        %1427 = vmatmul.mubr.bf16.gmra.mrb[0].mxu0 %v661
        %v1428 = vpop.f32.mrb[0].mxu0
        %v1429 = vadd.f32 0.0, %v1428
        %v1430 = vpop.f32.mrb[0].mxu0
        %v1431 = vpop.f32.mrb[0].mxu0
        %v1432 = vadd.f32 0.0, %v1431
        %v1433 = vpop.f32.mrb[0].mxu0
        %1434 = vmatprep.mubr.bf16.mxu0 0
        %1435 = vmatmul.mubr.bf16.gmra.mrb[0].mxu0 %v662
        %v1436 = vpop.f32.mrb[0].mxu0
        %v1437 = vadd.f32 0.0, %v1436
        %v1438 = vpop.f32.mrb[0].mxu0
        %v1439 = vpop.f32.mrb[0].mxu0
        %v1440 = vadd.f32 0.0, %v1439
        %v1441 = vpop.f32.mrb[0].mxu0
        %1442 = vdwg.mxu0
        %v1443 = vpack.c.bf16 %v761, %v758
        %v1444 = vpack.c.bf16 %v769, %v766
        %v1445 = vpack.c.bf16 %v822, %v819
        %v1446 = vpack.c.bf16 %v830, %v827
        %v1447 = vpack.c.bf16 %v883, %v880
        %v1448 = vpack.c.bf16 %v891, %v888
        %v1449 = vpack.c.bf16 %v944, %v941
        %v1450 = vpack.c.bf16 %v952, %v949
        %v1451 = vpack.c.bf16 %v1005, %v1002
        %v1452 = vpack.c.bf16 %v1013, %v1010
        %v1453 = vpack.c.bf16 %v1066, %v1063
        %v1454 = vpack.c.bf16 %v1074, %v1071
        %v1455 = vpack.c.bf16 %v1127, %v1124
        %v1456 = vpack.c.bf16 %v1135, %v1132
        %v1457 = vpack.c.bf16 %v1188, %v1185
        %v1458 = vpack.c.bf16 %v1196, %v1193
        %v1459 = vld [vmem:[%s2] sm:$0xff]
        %v1460 = vld [vmem:[%s2 + $0x8] sm:$0xff]
        %v1461 = vld [vmem:[%s2 + $0x10] sm:$0xff]
        %v1462 = vld [vmem:[%s2 + $0x18] sm:$0xff]
        %vm1463 = vcmask 261120
        %v1465 = vsel %vm1463, %v1443, 0
        %v1468 = vsel %vm1463, %v1444, 0
        %v1471 = vsel %vm1463, %v1451, 0
        %v1474 = vsel %vm1463, %v1452, 0
        %1476 = vmatprep.subr.bf16.mxu0 0
        %1477 = vmatpush1.bf16.xpose.msra.mxu0 %v1471
        %1478 = vmatprep.subr.bf16.mxu0 0
        %1479 = vmatpush1.bf16.xpose.msra.mxu0 %v1474
        %1480 = vmatprep.subr.bf16.mxu0 0
        %1481 = vmatpush1.bf16.xpose.msra.mxu0 0
        %1482 = vmatprep.subr.bf16.mxu0 0
        %1483 = vmatpush1.bf16.xpose.msra.mxu0 0
        %1484 = vmatprep.subr.bf16.mxu0 0
        %1485 = vmatpush1.bf16.xpose.msra.mxu0 0
        %1486 = vmatprep.subr.bf16.mxu0 0
        %1487 = vmatpush1.bf16.xpose.msra.mxu0 0
        %1488 = vmatprep.subr.bf16.mxu0 0
        %1489 = vmatpush1.bf16.xpose.msra.mxu0 0
        %1490 = vmatprep.subr.bf16.mxu0 0
        %1491 = vmatpush1.bf16.xpose.msra.mxu0 0
        %1492 = vmatprep.subr.bf16.mxu0 0
        %1493 = vmatpush1.bf16.xpose.msra.mxu0 0
        %1494 = vmatprep.subr.bf16.mxu0 0
        %1495 = vmatpush1.bf16.xpose.msra.mxu0 0
        %1496 = vmatprep.subr.bf16.mxu0 0
        %1497 = vmatpush1.bf16.xpose.msra.mxu0 0
        %1498 = vmatprep.subr.bf16.mxu0 0
        %1499 = vmatpush1.bf16.xpose.msra.mxu0 0
        %1500 = vmatprep.subr.bf16.mxu0 0
        %1501 = vmatpush1.bf16.xpose.msra.mxu0 0
        %1502 = vmatprep.subr.bf16.mxu0 0
        %1503 = vmatpush1.bf16.xpose.msra.mxu0 0
        %1504 = vmatprep.subr.bf16.mxu0 0
        %1505 = vmatpush1.bf16.xpose.msra.mxu0 0
        %1506 = vmatprep.subr.bf16.mxu0 0
        %1507 = vmatpush1.bf16.xpose.msra.mxu0 0
        %1508 = vmatprep.mubr.bf16.mxu0 0
        %1509 = vmatmul.mubr.bf16.gmra.mrb[0].mxu0 %v1465
        %v1510 = vpop.f32.mrb[0].mxu0
        %v1511 = vadd.f32 %v1459, %v1510
        %v1512 = vpop.f32.mrb[0].mxu0
        %v1513 = vpop.f32.mrb[0].mxu0
        %v1514 = vadd.f32 %v1460, %v1513
        %v1515 = vpop.f32.mrb[0].mxu0
        %1516 = vmatprep.mubr.bf16.mxu0 0
        %1517 = vmatmul.mubr.bf16.gmra.mrb[0].mxu0 %v1468
        %v1518 = vpop.f32.mrb[0].mxu0
        %v1519 = vadd.f32 %v1461, %v1518
        %v1520 = vpop.f32.mrb[0].mxu0
        %v1521 = vpop.f32.mrb[0].mxu0
        %v1522 = vadd.f32 %v1462, %v1521
        %v1523 = vpop.f32.mrb[0].mxu0
        %1524 = vdwg.mxu0
        %v1526 = vsel %vm1463, %v1445, 0
        %v1529 = vsel %vm1463, %v1446, 0
        %v1532 = vsel %vm1463, %v1453, 0
        %v1535 = vsel %vm1463, %v1454, 0
        %1537 = vmatprep.subr.bf16.mxu0 0
        %1538 = vmatpush1.bf16.xpose.msra.mxu0 %v1532
        %1539 = vmatprep.subr.bf16.mxu0 0
        %1540 = vmatpush1.bf16.xpose.msra.mxu0 %v1535
        %1541 = vmatprep.subr.bf16.mxu0 0
        %1542 = vmatpush1.bf16.xpose.msra.mxu0 0
        %1543 = vmatprep.subr.bf16.mxu0 0
        %1544 = vmatpush1.bf16.xpose.msra.mxu0 0
        %1545 = vmatprep.subr.bf16.mxu0 0
        %1546 = vmatpush1.bf16.xpose.msra.mxu0 0
        %1547 = vmatprep.subr.bf16.mxu0 0
        %1548 = vmatpush1.bf16.xpose.msra.mxu0 0
        %1549 = vmatprep.subr.bf16.mxu0 0
        %1550 = vmatpush1.bf16.xpose.msra.mxu0 0
        %1551 = vmatprep.subr.bf16.mxu0 0
        %1552 = vmatpush1.bf16.xpose.msra.mxu0 0
        %1553 = vmatprep.subr.bf16.mxu0 0
        %1554 = vmatpush1.bf16.xpose.msra.mxu0 0
        %1555 = vmatprep.subr.bf16.mxu0 0
        %1556 = vmatpush1.bf16.xpose.msra.mxu0 0
        %1557 = vmatprep.subr.bf16.mxu0 0
        %1558 = vmatpush1.bf16.xpose.msra.mxu0 0
        %1559 = vmatprep.subr.bf16.mxu0 0
        %1560 = vmatpush1.bf16.xpose.msra.mxu0 0
        %1561 = vmatprep.subr.bf16.mxu0 0
        %1562 = vmatpush1.bf16.xpose.msra.mxu0 0
        %1563 = vmatprep.subr.bf16.mxu0 0
        %1564 = vmatpush1.bf16.xpose.msra.mxu0 0
        %1565 = vmatprep.subr.bf16.mxu0 0
        %1566 = vmatpush1.bf16.xpose.msra.mxu0 0
        %1567 = vmatprep.subr.bf16.mxu0 0
        %1568 = vmatpush1.bf16.xpose.msra.mxu0 0
        %1569 = vmatprep.mubr.bf16.mxu0 0
        %1570 = vmatmul.mubr.bf16.gmra.mrb[0].mxu0 %v1526
        %v1571 = vpop.f32.mrb[0].mxu0
        %v1572 = vadd.f32 %v1459, %v1571
        %v1573 = vpop.f32.mrb[0].mxu0
        %v1574 = vpop.f32.mrb[0].mxu0
        %v1575 = vadd.f32 %v1460, %v1574
        %v1576 = vpop.f32.mrb[0].mxu0
        %1577 = vmatprep.mubr.bf16.mxu0 0
        %1578 = vmatmul.mubr.bf16.gmra.mrb[0].mxu0 %v1529
        %v1579 = vpop.f32.mrb[0].mxu0
        %v1580 = vadd.f32 %v1461, %v1579
        %v1581 = vpop.f32.mrb[0].mxu0
        %v1582 = vpop.f32.mrb[0].mxu0
        %v1583 = vadd.f32 %v1462, %v1582
        %v1584 = vpop.f32.mrb[0].mxu0
        %1585 = vdwg.mxu0
        %v1587 = vsel %vm1463, %v1447, 0
        %v1590 = vsel %vm1463, %v1448, 0
        %v1593 = vsel %vm1463, %v1455, 0
        %v1596 = vsel %vm1463, %v1456, 0
        %1598 = vmatprep.subr.bf16.mxu0 0
        %1599 = vmatpush1.bf16.xpose.msra.mxu0 %v1593
        %1600 = vmatprep.subr.bf16.mxu0 0
        %1601 = vmatpush1.bf16.xpose.msra.mxu0 %v1596
        %1602 = vmatprep.subr.bf16.mxu0 0
        %1603 = vmatpush1.bf16.xpose.msra.mxu0 0
        %1604 = vmatprep.subr.bf16.mxu0 0
        %1605 = vmatpush1.bf16.xpose.msra.mxu0 0
        %1606 = vmatprep.subr.bf16.mxu0 0
        %1607 = vmatpush1.bf16.xpose.msra.mxu0 0
        %1608 = vmatprep.subr.bf16.mxu0 0
        %1609 = vmatpush1.bf16.xpose.msra.mxu0 0
        %1610 = vmatprep.subr.bf16.mxu0 0
        %1611 = vmatpush1.bf16.xpose.msra.mxu0 0
        %1612 = vmatprep.subr.bf16.mxu0 0
        %1613 = vmatpush1.bf16.xpose.msra.mxu0 0
        %1614 = vmatprep.subr.bf16.mxu0 0
        %1615 = vmatpush1.bf16.xpose.msra.mxu0 0
        %1616 = vmatprep.subr.bf16.mxu0 0
        %1617 = vmatpush1.bf16.xpose.msra.mxu0 0
        %1618 = vmatprep.subr.bf16.mxu0 0
        %1619 = vmatpush1.bf16.xpose.msra.mxu0 0
        %1620 = vmatprep.subr.bf16.mxu0 0
        %1621 = vmatpush1.bf16.xpose.msra.mxu0 0
        %1622 = vmatprep.subr.bf16.mxu0 0
        %1623 = vmatpush1.bf16.xpose.msra.mxu0 0
        %1624 = vmatprep.subr.bf16.mxu0 0
        %1625 = vmatpush1.bf16.xpose.msra.mxu0 0
        %1626 = vmatprep.subr.bf16.mxu0 0
        %1627 = vmatpush1.bf16.xpose.msra.mxu0 0
        %1628 = vmatprep.subr.bf16.mxu0 0
        %1629 = vmatpush1.bf16.xpose.msra.mxu0 0
        %1630 = vmatprep.mubr.bf16.mxu0 0
        %1631 = vmatmul.mubr.bf16.gmra.mrb[0].mxu0 %v1587
        %v1632 = vpop.f32.mrb[0].mxu0
        %v1633 = vadd.f32 %v1459, %v1632
        %v1634 = vpop.f32.mrb[0].mxu0
        %v1635 = vpop.f32.mrb[0].mxu0
        %v1636 = vadd.f32 %v1460, %v1635
        %v1637 = vpop.f32.mrb[0].mxu0
        %1638 = vmatprep.mubr.bf16.mxu0 0
        %1639 = vmatmul.mubr.bf16.gmra.mrb[0].mxu0 %v1590
        %v1640 = vpop.f32.mrb[0].mxu0
        %v1641 = vadd.f32 %v1461, %v1640
        %v1642 = vpop.f32.mrb[0].mxu0
        %v1643 = vpop.f32.mrb[0].mxu0
        %v1644 = vadd.f32 %v1462, %v1643
        %v1645 = vpop.f32.mrb[0].mxu0
        %1646 = vdwg.mxu0
        %v1648 = vsel %vm1463, %v1449, 0
        %v1651 = vsel %vm1463, %v1450, 0
        %v1654 = vsel %vm1463, %v1457, 0
        %v1657 = vsel %vm1463, %v1458, 0
        %1659 = vmatprep.subr.bf16.mxu0 0
        %1660 = vmatpush1.bf16.xpose.msra.mxu0 %v1654
        %1661 = vmatprep.subr.bf16.mxu0 0
        %1662 = vmatpush1.bf16.xpose.msra.mxu0 %v1657
        %1663 = vmatprep.subr.bf16.mxu0 0
        %1664 = vmatpush1.bf16.xpose.msra.mxu0 0
        %1665 = vmatprep.subr.bf16.mxu0 0
        %1666 = vmatpush1.bf16.xpose.msra.mxu0 0
        %1667 = vmatprep.subr.bf16.mxu0 0
        %1668 = vmatpush1.bf16.xpose.msra.mxu0 0
        %1669 = vmatprep.subr.bf16.mxu0 0
        %1670 = vmatpush1.bf16.xpose.msra.mxu0 0
        %1671 = vmatprep.subr.bf16.mxu0 0
        %1672 = vmatpush1.bf16.xpose.msra.mxu0 0
        %1673 = vmatprep.subr.bf16.mxu0 0
        %1674 = vmatpush1.bf16.xpose.msra.mxu0 0
        %1675 = vmatprep.subr.bf16.mxu0 0
        %1676 = vmatpush1.bf16.xpose.msra.mxu0 0
        %1677 = vmatprep.subr.bf16.mxu0 0
        %1678 = vmatpush1.bf16.xpose.msra.mxu0 0
        %1679 = vmatprep.subr.bf16.mxu0 0
        %1680 = vmatpush1.bf16.xpose.msra.mxu0 0
        %1681 = vmatprep.subr.bf16.mxu0 0
        %1682 = vmatpush1.bf16.xpose.msra.mxu0 0
        %1683 = vmatprep.subr.bf16.mxu0 0
        %1684 = vmatpush1.bf16.xpose.msra.mxu0 0
        %1685 = vmatprep.subr.bf16.mxu0 0
        %1686 = vmatpush1.bf16.xpose.msra.mxu0 0
        %1687 = vmatprep.subr.bf16.mxu0 0
        %1688 = vmatpush1.bf16.xpose.msra.mxu0 0
        %1689 = vmatprep.subr.bf16.mxu0 0
        %1690 = vmatpush1.bf16.xpose.msra.mxu0 0
        %1691 = vmatprep.mubr.bf16.mxu0 0
        %1692 = vmatmul.mubr.bf16.gmra.mrb[0].mxu0 %v1648
        %v1693 = vpop.f32.mrb[0].mxu0
        %v1694 = vadd.f32 %v1459, %v1693
        %v1695 = vpop.f32.mrb[0].mxu0
        %v1696 = vpop.f32.mrb[0].mxu0
        %v1697 = vadd.f32 %v1460, %v1696
        %v1698 = vpop.f32.mrb[0].mxu0
        %1699 = vmatprep.mubr.bf16.mxu0 0
        %1700 = vmatmul.mubr.bf16.gmra.mrb[0].mxu0 %v1651
        %v1701 = vpop.f32.mrb[0].mxu0
        %v1702 = vadd.f32 %v1461, %v1701
        %v1703 = vpop.f32.mrb[0].mxu0
        %v1704 = vpop.f32.mrb[0].mxu0
        %v1705 = vadd.f32 %v1462, %v1704
        %v1706 = vpop.f32.mrb[0].mxu0
        %1707 = vdwg.mxu0
        %v1708 = vsel %vm1463, %v1511, -inf
        %1709 = vmax.xlane.f32.xlu0 %v1708
        %v1710 = vpop.xlane.xlu0 %1709
        %v1711 = vsel %vm1463, %v1514, -inf
        %1712 = vmax.xlane.f32.xlu0 %v1711
        %v1713 = vpop.xlane.xlu0 %1712
        %v1714 = vsel %vm1463, %v1519, -inf
        %1715 = vmax.xlane.f32.xlu0 %v1714
        %v1716 = vpop.xlane.xlu0 %1715
        %v1717 = vsel %vm1463, %v1522, -inf
        %1718 = vmax.xlane.f32.xlu0 %v1717
        %v1719 = vpop.xlane.xlu0 %1718
        %v1720 = vsel %vm1463, %v1572, -inf
        %1721 = vmax.xlane.f32.xlu0 %v1720
        %v1722 = vpop.xlane.xlu0 %1721
        %v1723 = vsel %vm1463, %v1575, -inf
        %1724 = vmax.xlane.f32.xlu0 %v1723
        %v1725 = vpop.xlane.xlu0 %1724
        %v1726 = vsel %vm1463, %v1580, -inf
        %1727 = vmax.xlane.f32.xlu0 %v1726
        %v1728 = vpop.xlane.xlu0 %1727
        %v1729 = vsel %vm1463, %v1583, -inf
        %1730 = vmax.xlane.f32.xlu0 %v1729
        %v1731 = vpop.xlane.xlu0 %1730
        %v1732 = vsel %vm1463, %v1633, -inf
        %1733 = vmax.xlane.f32.xlu0 %v1732
        %v1734 = vpop.xlane.xlu0 %1733
        %v1735 = vsel %vm1463, %v1636, -inf
        %1736 = vmax.xlane.f32.xlu0 %v1735
        %v1737 = vpop.xlane.xlu0 %1736
        %v1738 = vsel %vm1463, %v1641, -inf
        %1739 = vmax.xlane.f32.xlu0 %v1738
        %v1740 = vpop.xlane.xlu0 %1739
        %v1741 = vsel %vm1463, %v1644, -inf
        %1742 = vmax.xlane.f32.xlu0 %v1741
        %v1743 = vpop.xlane.xlu0 %1742
        %v1744 = vsel %vm1463, %v1694, -inf
        %1745 = vmax.xlane.f32.xlu0 %v1744
        %v1746 = vpop.xlane.xlu0 %1745
        %v1747 = vsel %vm1463, %v1697, -inf
        %1748 = vmax.xlane.f32.xlu0 %v1747
        %v1749 = vpop.xlane.xlu0 %1748
        %v1750 = vsel %vm1463, %v1702, -inf
        %1751 = vmax.xlane.f32.xlu0 %v1750
        %v1752 = vpop.xlane.xlu0 %1751
        %v1753 = vsel %vm1463, %v1705, -inf
        %1754 = vmax.xlane.f32.xlu0 %v1753
        %v1755 = vpop.xlane.xlu0 %1754
        %v1756 = vsub.f32 %v1511, %v1710
        %v1757 = vsub.f32 %v1514, %v1713
        %v1758 = vsub.f32 %v1519, %v1716
        %v1759 = vsub.f32 %v1522, %v1719
        %v1760 = vsub.f32 %v1572, %v1722
        %v1761 = vsub.f32 %v1575, %v1725
        %v1762 = vsub.f32 %v1580, %v1728
        %v1763 = vsub.f32 %v1583, %v1731
        %v1764 = vsub.f32 %v1633, %v1734
        %v1765 = vsub.f32 %v1636, %v1737
        %v1766 = vsub.f32 %v1641, %v1740
        %v1767 = vsub.f32 %v1644, %v1743
        %v1768 = vsub.f32 %v1694, %v1746
        %v1769 = vsub.f32 %v1697, %v1749
        %v1770 = vsub.f32 %v1702, %v1752
        %v1771 = vsub.f32 %v1705, %v1755
        %v1772 = vmul.f32 %v1756, 1.442695
        %v1773 = vpow.pop %v1772
        %v1774 = vmul.f32 %v1757, 1.442695
        %v1775 = vpow.pop %v1774
        %v1776 = vmul.f32 %v1758, 1.442695
        %v1777 = vpow.pop %v1776
        %v1778 = vmul.f32 %v1759, 1.442695
        %v1779 = vpow.pop %v1778
        %v1780 = vmul.f32 %v1760, 1.442695
        %v1781 = vpow.pop %v1780
        %v1782 = vmul.f32 %v1761, 1.442695
        %v1783 = vpow.pop %v1782
        %v1784 = vmul.f32 %v1762, 1.442695
        %v1785 = vpow.pop %v1784
        %v1786 = vmul.f32 %v1763, 1.442695
        %v1787 = vpow.pop %v1786
        %v1788 = vmul.f32 %v1764, 1.442695
        %v1789 = vpow.pop %v1788
        %v1790 = vmul.f32 %v1765, 1.442695
        %v1791 = vpow.pop %v1790
        %v1792 = vmul.f32 %v1766, 1.442695
        %v1793 = vpow.pop %v1792
        %v1794 = vmul.f32 %v1767, 1.442695
        %v1795 = vpow.pop %v1794
        %v1796 = vmul.f32 %v1768, 1.442695
        %v1797 = vpow.pop %v1796
        %v1798 = vmul.f32 %v1769, 1.442695
        %v1799 = vpow.pop %v1798
        %v1800 = vmul.f32 %v1770, 1.442695
        %v1801 = vpow.pop %v1800
        %v1802 = vmul.f32 %v1771, 1.442695
        %v1803 = vpow.pop %v1802
        %v1804 = vsel %vm1463, %v1773, 0.0
        %1805 = vadd.xlane.f32.xlu0 %v1804
        %v1806 = vpop.xlane.xlu0 %1805
        %v1807 = vsel %vm1463, %v1775, 0.0
        %1808 = vadd.xlane.f32.xlu0 %v1807
        %v1809 = vpop.xlane.xlu0 %1808
        %v1810 = vsel %vm1463, %v1777, 0.0
        %1811 = vadd.xlane.f32.xlu0 %v1810
        %v1812 = vpop.xlane.xlu0 %1811
        %v1813 = vsel %vm1463, %v1779, 0.0
        %1814 = vadd.xlane.f32.xlu0 %v1813
        %v1815 = vpop.xlane.xlu0 %1814
        %v1816 = vsel %vm1463, %v1781, 0.0
        %1817 = vadd.xlane.f32.xlu0 %v1816
        %v1818 = vpop.xlane.xlu0 %1817
        %v1819 = vsel %vm1463, %v1783, 0.0
        %1820 = vadd.xlane.f32.xlu0 %v1819
        %v1821 = vpop.xlane.xlu0 %1820
        %v1822 = vsel %vm1463, %v1785, 0.0
        %1823 = vadd.xlane.f32.xlu0 %v1822
        %v1824 = vpop.xlane.xlu0 %1823
        %v1825 = vsel %vm1463, %v1787, 0.0
        %1826 = vadd.xlane.f32.xlu0 %v1825
        %v1827 = vpop.xlane.xlu0 %1826
        %v1828 = vsel %vm1463, %v1789, 0.0
        %1829 = vadd.xlane.f32.xlu0 %v1828
        %v1830 = vpop.xlane.xlu0 %1829
        %v1831 = vsel %vm1463, %v1791, 0.0
        %1832 = vadd.xlane.f32.xlu0 %v1831
        %v1833 = vpop.xlane.xlu0 %1832
        %v1834 = vsel %vm1463, %v1793, 0.0
        %1835 = vadd.xlane.f32.xlu0 %v1834
        %v1836 = vpop.xlane.xlu0 %1835
        %v1837 = vsel %vm1463, %v1795, 0.0
        %1838 = vadd.xlane.f32.xlu0 %v1837
        %v1839 = vpop.xlane.xlu0 %1838
        %v1840 = vsel %vm1463, %v1797, 0.0
        %1841 = vadd.xlane.f32.xlu0 %v1840
        %v1842 = vpop.xlane.xlu0 %1841
        %v1843 = vsel %vm1463, %v1799, 0.0
        %1844 = vadd.xlane.f32.xlu0 %v1843
        %v1845 = vpop.xlane.xlu0 %1844
        %v1846 = vsel %vm1463, %v1801, 0.0
        %1847 = vadd.xlane.f32.xlu0 %v1846
        %v1848 = vpop.xlane.xlu0 %1847
        %v1849 = vsel %vm1463, %v1803, 0.0
        %1850 = vadd.xlane.f32.xlu0 %v1849
        %v1851 = vpop.xlane.xlu0 %1850
        %v1852 = vrcp.pop %v1806
        %v1853 = vrcp.pop %v1809
        %v1854 = vrcp.pop %v1812
        %v1855 = vrcp.pop %v1815
        %v1856 = vrcp.pop %v1818
        %v1857 = vrcp.pop %v1821
        %v1858 = vrcp.pop %v1824
        %v1859 = vrcp.pop %v1827
        %v1860 = vrcp.pop %v1830
        %v1861 = vrcp.pop %v1833
        %v1862 = vrcp.pop %v1836
        %v1863 = vrcp.pop %v1839
        %v1864 = vrcp.pop %v1842
        %v1865 = vrcp.pop %v1845
        %v1866 = vrcp.pop %v1848
        %v1867 = vrcp.pop %v1851
        %v1868 = vmul.f32 %v1773, %v1852
        %v1869 = vmul.f32 %v1775, %v1853
        %v1870 = vmul.f32 %v1777, %v1854
        %v1871 = vmul.f32 %v1779, %v1855
        %v1872 = vmul.f32 %v1781, %v1856
        %v1873 = vmul.f32 %v1783, %v1857
        %v1874 = vmul.f32 %v1785, %v1858
        %v1875 = vmul.f32 %v1787, %v1859
        %v1876 = vmul.f32 %v1789, %v1860
        %v1877 = vmul.f32 %v1791, %v1861
        %v1878 = vmul.f32 %v1793, %v1862
        %v1879 = vmul.f32 %v1795, %v1863
        %v1880 = vmul.f32 %v1797, %v1864
        %v1881 = vmul.f32 %v1799, %v1865
        %v1882 = vmul.f32 %v1801, %v1866
        %v1883 = vmul.f32 %v1803, %v1867
        %v1884 = vpack.c.bf16 %v1869, %v1868
        %v1885 = vpack.c.bf16 %v1871, %v1870
        %v1886 = vpack.c.bf16 %v1873, %v1872
        %v1887 = vpack.c.bf16 %v1875, %v1874
        %v1888 = vpack.c.bf16 %v1877, %v1876
        %v1889 = vpack.c.bf16 %v1879, %v1878
        %v1890 = vpack.c.bf16 %v1881, %v1880
        %v1891 = vpack.c.bf16 %v1883, %v1882
        %v1892 = vpack.c.bf16 %v1249, %v1246
        %v1893 = vpack.c.bf16 %v1257, %v1254
        %v1894 = vpack.c.bf16 %v1310, %v1307
        %v1895 = vpack.c.bf16 %v1318, %v1315
        %v1896 = vpack.c.bf16 %v1371, %v1368
        %v1897 = vpack.c.bf16 %v1379, %v1376
        %v1898 = vpack.c.bf16 %v1432, %v1429
        %v1899 = vpack.c.bf16 %v1440, %v1437
        %v1901 = vsel %vm1463, %v1884, 0
        %v1904 = vsel %vm1463, %v1885, 0
        %1906 = vmatprep.subr.bf16.mxu0 0
        %1907 = vmatpush1.bf16.msra.mxu0 %v1892
        %1908 = vmatprep.subr.bf16.mxu0 0
        %1909 = vmatpush1.bf16.msra.mxu0 %v1893
        %1910 = vmatprep.subr.bf16.mxu0 0
        %1911 = vmatpush1.bf16.msra.mxu0 0
        %1912 = vmatprep.subr.bf16.mxu0 0
        %1913 = vmatpush1.bf16.msra.mxu0 0
        %1914 = vmatprep.subr.bf16.mxu0 0
        %1915 = vmatpush1.bf16.msra.mxu0 0
        %1916 = vmatprep.subr.bf16.mxu0 0
        %1917 = vmatpush1.bf16.msra.mxu0 0
        %1918 = vmatprep.subr.bf16.mxu0 0
        %1919 = vmatpush1.bf16.msra.mxu0 0
        %1920 = vmatprep.subr.bf16.mxu0 0
        %1921 = vmatpush1.bf16.msra.mxu0 0
        %1922 = vmatprep.subr.bf16.mxu0 0
        %1923 = vmatpush1.bf16.msra.mxu0 0
        %1924 = vmatprep.subr.bf16.mxu0 0
        %1925 = vmatpush1.bf16.msra.mxu0 0
        %1926 = vmatprep.subr.bf16.mxu0 0
        %1927 = vmatpush1.bf16.msra.mxu0 0
        %1928 = vmatprep.subr.bf16.mxu0 0
        %1929 = vmatpush1.bf16.msra.mxu0 0
        %1930 = vmatprep.subr.bf16.mxu0 0
        %1931 = vmatpush1.bf16.msra.mxu0 0
        %1932 = vmatprep.subr.bf16.mxu0 0
        %1933 = vmatpush1.bf16.msra.mxu0 0
        %1934 = vmatprep.subr.bf16.mxu0 0
        %1935 = vmatpush1.bf16.msra.mxu0 0
        %1936 = vmatprep.subr.bf16.mxu0 0
        %1937 = vmatpush1.bf16.msra.mxu0 0
        %1938 = vmatprep.mubr.bf16.mxu0 0
        %1939 = vmatmul.mubr.bf16.gmra.mrb[0].mxu0 %v1901
        %v1940 = vpop.f32.mrb[0].mxu0
        %v1941 = vadd.f32 0.0, %v1940
        %v1942 = vpop.f32.mrb[0].mxu0
        %v1943 = vpop.f32.mrb[0].mxu0
        %v1944 = vadd.f32 0.0, %v1943
        %v1945 = vpop.f32.mrb[0].mxu0
        %1946 = vmatprep.mubr.bf16.mxu0 0
        %1947 = vmatmul.mubr.bf16.gmra.mrb[0].mxu0 %v1904
        %v1948 = vpop.f32.mrb[0].mxu0
        %v1949 = vadd.f32 0.0, %v1948
        %v1950 = vpop.f32.mrb[0].mxu0
        %v1951 = vpop.f32.mrb[0].mxu0
        %v1952 = vadd.f32 0.0, %v1951
        %v1953 = vpop.f32.mrb[0].mxu0
        %1954 = vdwg.mxu0
        %v1956 = vsel %vm1463, %v1886, 0
        %v1959 = vsel %vm1463, %v1887, 0
        %1961 = vmatprep.subr.bf16.mxu0 0
        %1962 = vmatpush1.bf16.msra.mxu0 %v1894
        %1963 = vmatprep.subr.bf16.mxu0 0
        %1964 = vmatpush1.bf16.msra.mxu0 %v1895
        %1965 = vmatprep.subr.bf16.mxu0 0
        %1966 = vmatpush1.bf16.msra.mxu0 0
        %1967 = vmatprep.subr.bf16.mxu0 0
        %1968 = vmatpush1.bf16.msra.mxu0 0
        %1969 = vmatprep.subr.bf16.mxu0 0
        %1970 = vmatpush1.bf16.msra.mxu0 0
        %1971 = vmatprep.subr.bf16.mxu0 0
        %1972 = vmatpush1.bf16.msra.mxu0 0
        %1973 = vmatprep.subr.bf16.mxu0 0
        %1974 = vmatpush1.bf16.msra.mxu0 0
        %1975 = vmatprep.subr.bf16.mxu0 0
        %1976 = vmatpush1.bf16.msra.mxu0 0
        %1977 = vmatprep.subr.bf16.mxu0 0
        %1978 = vmatpush1.bf16.msra.mxu0 0
        %1979 = vmatprep.subr.bf16.mxu0 0
        %1980 = vmatpush1.bf16.msra.mxu0 0
        %1981 = vmatprep.subr.bf16.mxu0 0
        %1982 = vmatpush1.bf16.msra.mxu0 0
        %1983 = vmatprep.subr.bf16.mxu0 0
        %1984 = vmatpush1.bf16.msra.mxu0 0
        %1985 = vmatprep.subr.bf16.mxu0 0
        %1986 = vmatpush1.bf16.msra.mxu0 0
        %1987 = vmatprep.subr.bf16.mxu0 0
        %1988 = vmatpush1.bf16.msra.mxu0 0
        %1989 = vmatprep.subr.bf16.mxu0 0
        %1990 = vmatpush1.bf16.msra.mxu0 0
        %1991 = vmatprep.subr.bf16.mxu0 0
        %1992 = vmatpush1.bf16.msra.mxu0 0
        %1993 = vmatprep.mubr.bf16.mxu0 0
        %1994 = vmatmul.mubr.bf16.gmra.mrb[0].mxu0 %v1956
        %v1995 = vpop.f32.mrb[0].mxu0
        %v1996 = vadd.f32 0.0, %v1995
        %v1997 = vpop.f32.mrb[0].mxu0
        %v1998 = vpop.f32.mrb[0].mxu0
        %v1999 = vadd.f32 0.0, %v1998
        %v2000 = vpop.f32.mrb[0].mxu0
        %2001 = vmatprep.mubr.bf16.mxu0 0
        %2002 = vmatmul.mubr.bf16.gmra.mrb[0].mxu0 %v1959
        %v2003 = vpop.f32.mrb[0].mxu0
        %v2004 = vadd.f32 0.0, %v2003
        %v2005 = vpop.f32.mrb[0].mxu0
        %v2006 = vpop.f32.mrb[0].mxu0
        %v2007 = vadd.f32 0.0, %v2006
        %v2008 = vpop.f32.mrb[0].mxu0
        %2009 = vdwg.mxu0
        %v2011 = vsel %vm1463, %v1888, 0
        %v2014 = vsel %vm1463, %v1889, 0
        %2016 = vmatprep.subr.bf16.mxu0 0
        %2017 = vmatpush1.bf16.msra.mxu0 %v1896
        %2018 = vmatprep.subr.bf16.mxu0 0
        %2019 = vmatpush1.bf16.msra.mxu0 %v1897
        %2020 = vmatprep.subr.bf16.mxu0 0
        %2021 = vmatpush1.bf16.msra.mxu0 0
        %2022 = vmatprep.subr.bf16.mxu0 0
        %2023 = vmatpush1.bf16.msra.mxu0 0
        %2024 = vmatprep.subr.bf16.mxu0 0
        %2025 = vmatpush1.bf16.msra.mxu0 0
        %2026 = vmatprep.subr.bf16.mxu0 0
        %2027 = vmatpush1.bf16.msra.mxu0 0
        %2028 = vmatprep.subr.bf16.mxu0 0
        %2029 = vmatpush1.bf16.msra.mxu0 0
        %2030 = vmatprep.subr.bf16.mxu0 0
        %2031 = vmatpush1.bf16.msra.mxu0 0
        %2032 = vmatprep.subr.bf16.mxu0 0
        %2033 = vmatpush1.bf16.msra.mxu0 0
        %2034 = vmatprep.subr.bf16.mxu0 0
        %2035 = vmatpush1.bf16.msra.mxu0 0
        %2036 = vmatprep.subr.bf16.mxu0 0
        %2037 = vmatpush1.bf16.msra.mxu0 0
        %2038 = vmatprep.subr.bf16.mxu0 0
        %2039 = vmatpush1.bf16.msra.mxu0 0
        %2040 = vmatprep.subr.bf16.mxu0 0
        %2041 = vmatpush1.bf16.msra.mxu0 0
        %2042 = vmatprep.subr.bf16.mxu0 0
        %2043 = vmatpush1.bf16.msra.mxu0 0
        %2044 = vmatprep.subr.bf16.mxu0 0
        %2045 = vmatpush1.bf16.msra.mxu0 0
        %2046 = vmatprep.subr.bf16.mxu0 0
        %2047 = vmatpush1.bf16.msra.mxu0 0
        %2048 = vmatprep.mubr.bf16.mxu0 0
        %2049 = vmatmul.mubr.bf16.gmra.mrb[0].mxu0 %v2011
        %v2050 = vpop.f32.mrb[0].mxu0
        %v2051 = vadd.f32 0.0, %v2050
        %v2052 = vpop.f32.mrb[0].mxu0
        %v2053 = vpop.f32.mrb[0].mxu0
        %v2054 = vadd.f32 0.0, %v2053
        %v2055 = vpop.f32.mrb[0].mxu0
        %2056 = vmatprep.mubr.bf16.mxu0 0
        %2057 = vmatmul.mubr.bf16.gmra.mrb[0].mxu0 %v2014
        %v2058 = vpop.f32.mrb[0].mxu0
        %v2059 = vadd.f32 0.0, %v2058
        %v2060 = vpop.f32.mrb[0].mxu0
        %v2061 = vpop.f32.mrb[0].mxu0
        %v2062 = vadd.f32 0.0, %v2061
        %v2063 = vpop.f32.mrb[0].mxu0
        %2064 = vdwg.mxu0
        %v2066 = vsel %vm1463, %v1890, 0
        %v2069 = vsel %vm1463, %v1891, 0
        %2071 = vmatprep.subr.bf16.mxu0 0
        %2072 = vmatpush1.bf16.msra.mxu0 %v1898
        %2073 = vmatprep.subr.bf16.mxu0 0
        %2074 = vmatpush1.bf16.msra.mxu0 %v1899
        %2075 = vmatprep.subr.bf16.mxu0 0
        %2076 = vmatpush1.bf16.msra.mxu0 0
        %2077 = vmatprep.subr.bf16.mxu0 0
        %2078 = vmatpush1.bf16.msra.mxu0 0
        %2079 = vmatprep.subr.bf16.mxu0 0
        %2080 = vmatpush1.bf16.msra.mxu0 0
        %2081 = vmatprep.subr.bf16.mxu0 0
        %2082 = vmatpush1.bf16.msra.mxu0 0
        %2083 = vmatprep.subr.bf16.mxu0 0
        %2084 = vmatpush1.bf16.msra.mxu0 0
        %2085 = vmatprep.subr.bf16.mxu0 0
        %2086 = vmatpush1.bf16.msra.mxu0 0
        %2087 = vmatprep.subr.bf16.mxu0 0
        %2088 = vmatpush1.bf16.msra.mxu0 0
        %2089 = vmatprep.subr.bf16.mxu0 0
        %2090 = vmatpush1.bf16.msra.mxu0 0
        %2091 = vmatprep.subr.bf16.mxu0 0
        %2092 = vmatpush1.bf16.msra.mxu0 0
        %2093 = vmatprep.subr.bf16.mxu0 0
        %2094 = vmatpush1.bf16.msra.mxu0 0
        %2095 = vmatprep.subr.bf16.mxu0 0
        %2096 = vmatpush1.bf16.msra.mxu0 0
        %2097 = vmatprep.subr.bf16.mxu0 0
        %2098 = vmatpush1.bf16.msra.mxu0 0
        %2099 = vmatprep.subr.bf16.mxu0 0
        %2100 = vmatpush1.bf16.msra.mxu0 0
        %2101 = vmatprep.subr.bf16.mxu0 0
        %2102 = vmatpush1.bf16.msra.mxu0 0
        %2103 = vmatprep.mubr.bf16.mxu0 0
        %2104 = vmatmul.mubr.bf16.gmra.mrb[0].mxu0 %v2066
        %v2105 = vpop.f32.mrb[0].mxu0
        %v2106 = vadd.f32 0.0, %v2105
        %v2107 = vpop.f32.mrb[0].mxu0
        %v2108 = vpop.f32.mrb[0].mxu0
        %v2109 = vadd.f32 0.0, %v2108
        %v2110 = vpop.f32.mrb[0].mxu0
        %2111 = vmatprep.mubr.bf16.mxu0 0
        %2112 = vmatmul.mubr.bf16.gmra.mrb[0].mxu0 %v2069
        %v2113 = vpop.f32.mrb[0].mxu0
        %v2114 = vadd.f32 0.0, %v2113
        %v2115 = vpop.f32.mrb[0].mxu0
        %v2116 = vpop.f32.mrb[0].mxu0
        %v2117 = vadd.f32 0.0, %v2116
        %v2118 = vpop.f32.mrb[0].mxu0
        %2119 = vdwg.mxu0
        %v2120 = vpack.c.bf16 %v1944, %v1941
        %v2121 = vpack.c.bf16 %v1952, %v1949
        %v2122 = vpack.c.bf16 %v1999, %v1996
        %v2123 = vpack.c.bf16 %v2007, %v2004
        %v2124 = vpack.c.bf16 %v2054, %v2051
        %v2125 = vpack.c.bf16 %v2062, %v2059
        %v2126 = vpack.c.bf16 %v2109, %v2106
        %v2127 = vpack.c.bf16 %v2117, %v2114
        %v2128 = vld [vmem:[%s490] sm:$0xf]
        %v2129 = vld [vmem:[%s490 + $0x4] sm:$0xf]
        %v2130 = vld [vmem:[%s490 + $0x8] sm:$0xf]
        %v2131 = vld [vmem:[%s490 + $0xc] sm:$0xf]
        %v2132 = vld [vmem:[%s490 + $0x10] sm:$0xf]
        %v2133 = vld [vmem:[%s490 + $0x14] sm:$0xf]
        %v2134 = vld [vmem:[%s490 + $0x18] sm:$0xf]
        %v2135 = vld [vmem:[%s490 + $0x1c] sm:$0xf]
        %v2136 = vld [vmem:[%s490 + $0x20] sm:$0xf]
        %v2137 = vld [vmem:[%s490 + $0x24] sm:$0xf]
        %v2138 = vld [vmem:[%s490 + $0x28] sm:$0xf]
        %v2139 = vld [vmem:[%s490 + $0x2c] sm:$0xf]
        %v2140 = vld [vmem:[%s490 + $0x30] sm:$0xf]
        %v2141 = vld [vmem:[%s490 + $0x34] sm:$0xf]
        %v2142 = vld [vmem:[%s490 + $0x38] sm:$0xf]
        %v2143 = vld [vmem:[%s490 + $0x3c] sm:$0xf]
        %v2148 = vunpack.c.l.b16 %v2132
        %v2149 = vunpack.c.l.b16 %v2133
        %v2150 = vunpack.c.l.b16 %v2134
        %v2151 = vunpack.c.l.b16 %v2135
        %v2152 = vpack.c.b16 %v2149, %v2148
        %v2153 = vpack.c.b16 %v2151, %v2150
        %v2157 = vsel %vm1463, %v2122, 0
        %v2160 = vsel %vm1463, %v2123, 0
        %2162 = vmatprep.subr.bf16.mxu0 0
        %2163 = vmatpush1.bf16.msra.mxu0 %v2152
        %2164 = vmatprep.subr.bf16.mxu0 0
        %2165 = vmatpush1.bf16.msra.mxu0 %v2153
        %2166 = vmatprep.subr.bf16.mxu0 0
        %2167 = vmatpush1.bf16.msra.mxu0 0
        %2168 = vmatprep.subr.bf16.mxu0 0
        %2169 = vmatpush1.bf16.msra.mxu0 0
        %2170 = vmatprep.subr.bf16.mxu0 0
        %2171 = vmatpush1.bf16.msra.mxu0 0
        %2172 = vmatprep.subr.bf16.mxu0 0
        %2173 = vmatpush1.bf16.msra.mxu0 0
        %2174 = vmatprep.subr.bf16.mxu0 0
        %2175 = vmatpush1.bf16.msra.mxu0 0
        %2176 = vmatprep.subr.bf16.mxu0 0
        %2177 = vmatpush1.bf16.msra.mxu0 0
        %2178 = vmatprep.subr.bf16.mxu0 0
        %2179 = vmatpush1.bf16.msra.mxu0 0
        %2180 = vmatprep.subr.bf16.mxu0 0
        %2181 = vmatpush1.bf16.msra.mxu0 0
        %2182 = vmatprep.subr.bf16.mxu0 0
        %2183 = vmatpush1.bf16.msra.mxu0 0
        %2184 = vmatprep.subr.bf16.mxu0 0
        %2185 = vmatpush1.bf16.msra.mxu0 0
        %2186 = vmatprep.subr.bf16.mxu0 0
        %2187 = vmatpush1.bf16.msra.mxu0 0
        %2188 = vmatprep.subr.bf16.mxu0 0
        %2189 = vmatpush1.bf16.msra.mxu0 0
        %2190 = vmatprep.subr.bf16.mxu0 0
        %2191 = vmatpush1.bf16.msra.mxu0 0
        %2192 = vmatprep.subr.bf16.mxu0 0
        %2193 = vmatpush1.bf16.msra.mxu0 0
        %2194 = vmatprep.mubr.bf16.mxu0 0
        %2195 = vmatmul.mubr.bf16.gmra.mrb[0].mxu0 %v2157
        %v2196 = vpop.f32.mrb[0].mxu0
        %v2197 = vadd.f32 0.0, %v2196
        %v2198 = vpop.f32.mrb[0].mxu0
        %v2199 = vpop.f32.mrb[0].mxu0
        %v2200 = vadd.f32 0.0, %v2199
        %v2201 = vpop.f32.mrb[0].mxu0
        %2202 = vmatprep.mubr.bf16.mxu0 0
        %2203 = vmatmul.mubr.bf16.gmra.mrb[0].mxu0 %v2160
        %v2204 = vpop.f32.mrb[0].mxu0
        %v2205 = vadd.f32 0.0, %v2204
        %v2206 = vpop.f32.mrb[0].mxu0
        %v2207 = vpop.f32.mrb[0].mxu0
        %v2208 = vadd.f32 0.0, %v2207
        %v2209 = vpop.f32.mrb[0].mxu0
        %2210 = vdwg.mxu0
        %v2215 = vunpack.c.l.b16 %v2128
        %v2216 = vunpack.c.l.b16 %v2129
        %v2217 = vunpack.c.l.b16 %v2130
        %v2218 = vunpack.c.l.b16 %v2131
        %v2219 = vpack.c.b16 %v2216, %v2215
        %v2220 = vpack.c.b16 %v2218, %v2217
        %v2224 = vsel %vm1463, %v2120, 0
        %v2227 = vsel %vm1463, %v2121, 0
        %2229 = vmatprep.subr.bf16.mxu0 0
        %2230 = vmatpush1.bf16.msra.mxu0 %v2219
        %2231 = vmatprep.subr.bf16.mxu0 0
        %2232 = vmatpush1.bf16.msra.mxu0 %v2220
        %2233 = vmatprep.subr.bf16.mxu0 0
        %2234 = vmatpush1.bf16.msra.mxu0 0
        %2235 = vmatprep.subr.bf16.mxu0 0
        %2236 = vmatpush1.bf16.msra.mxu0 0
        %2237 = vmatprep.subr.bf16.mxu0 0
        %2238 = vmatpush1.bf16.msra.mxu0 0
        %2239 = vmatprep.subr.bf16.mxu0 0
        %2240 = vmatpush1.bf16.msra.mxu0 0
        %2241 = vmatprep.subr.bf16.mxu0 0
        %2242 = vmatpush1.bf16.msra.mxu0 0
        %2243 = vmatprep.subr.bf16.mxu0 0
        %2244 = vmatpush1.bf16.msra.mxu0 0
        %2245 = vmatprep.subr.bf16.mxu0 0
        %2246 = vmatpush1.bf16.msra.mxu0 0
        %2247 = vmatprep.subr.bf16.mxu0 0
        %2248 = vmatpush1.bf16.msra.mxu0 0
        %2249 = vmatprep.subr.bf16.mxu0 0
        %2250 = vmatpush1.bf16.msra.mxu0 0
        %2251 = vmatprep.subr.bf16.mxu0 0
        %2252 = vmatpush1.bf16.msra.mxu0 0
        %2253 = vmatprep.subr.bf16.mxu0 0
        %2254 = vmatpush1.bf16.msra.mxu0 0
        %2255 = vmatprep.subr.bf16.mxu0 0
        %2256 = vmatpush1.bf16.msra.mxu0 0
        %2257 = vmatprep.subr.bf16.mxu0 0
        %2258 = vmatpush1.bf16.msra.mxu0 0
        %2259 = vmatprep.subr.bf16.mxu0 0
        %2260 = vmatpush1.bf16.msra.mxu0 0
        %2261 = vmatprep.mubr.bf16.mxu0 0
        %2262 = vmatmul.mubr.bf16.gmra.mrb[0].mxu0 %v2224
        %v2263 = vpop.f32.mrb[0].mxu0
        %v2264 = vadd.f32 %v2197, %v2263
        %v2265 = vpop.f32.mrb[0].mxu0
        %v2266 = vpop.f32.mrb[0].mxu0
        %v2267 = vadd.f32 %v2200, %v2266
        %v2268 = vpop.f32.mrb[0].mxu0
        %2269 = vmatprep.mubr.bf16.mxu0 0
        %2270 = vmatmul.mubr.bf16.gmra.mrb[0].mxu0 %v2227
        %v2271 = vpop.f32.mrb[0].mxu0
        %v2272 = vadd.f32 %v2205, %v2271
        %v2273 = vpop.f32.mrb[0].mxu0
        %v2274 = vpop.f32.mrb[0].mxu0
        %v2275 = vadd.f32 %v2208, %v2274
        %v2276 = vpop.f32.mrb[0].mxu0
        %2277 = vdwg.mxu0
        %v2282 = vunpack.c.l.b16 %v2136
        %v2283 = vunpack.c.l.b16 %v2137
        %v2284 = vunpack.c.l.b16 %v2138
        %v2285 = vunpack.c.l.b16 %v2139
        %v2286 = vpack.c.b16 %v2283, %v2282
        %v2287 = vpack.c.b16 %v2285, %v2284
        %v2291 = vsel %vm1463, %v2124, 0
        %v2294 = vsel %vm1463, %v2125, 0
        %2296 = vmatprep.subr.bf16.mxu0 0
        %2297 = vmatpush1.bf16.msra.mxu0 %v2286
        %2298 = vmatprep.subr.bf16.mxu0 0
        %2299 = vmatpush1.bf16.msra.mxu0 %v2287
        %2300 = vmatprep.subr.bf16.mxu0 0
        %2301 = vmatpush1.bf16.msra.mxu0 0
        %2302 = vmatprep.subr.bf16.mxu0 0
        %2303 = vmatpush1.bf16.msra.mxu0 0
        %2304 = vmatprep.subr.bf16.mxu0 0
        %2305 = vmatpush1.bf16.msra.mxu0 0
        %2306 = vmatprep.subr.bf16.mxu0 0
        %2307 = vmatpush1.bf16.msra.mxu0 0
        %2308 = vmatprep.subr.bf16.mxu0 0
        %2309 = vmatpush1.bf16.msra.mxu0 0
        %2310 = vmatprep.subr.bf16.mxu0 0
        %2311 = vmatpush1.bf16.msra.mxu0 0
        %2312 = vmatprep.subr.bf16.mxu0 0
        %2313 = vmatpush1.bf16.msra.mxu0 0
        %2314 = vmatprep.subr.bf16.mxu0 0
        %2315 = vmatpush1.bf16.msra.mxu0 0
        %2316 = vmatprep.subr.bf16.mxu0 0
        %2317 = vmatpush1.bf16.msra.mxu0 0
        %2318 = vmatprep.subr.bf16.mxu0 0
        %2319 = vmatpush1.bf16.msra.mxu0 0
        %2320 = vmatprep.subr.bf16.mxu0 0
        %2321 = vmatpush1.bf16.msra.mxu0 0
        %2322 = vmatprep.subr.bf16.mxu0 0
        %2323 = vmatpush1.bf16.msra.mxu0 0
        %2324 = vmatprep.subr.bf16.mxu0 0
        %2325 = vmatpush1.bf16.msra.mxu0 0
        %2326 = vmatprep.subr.bf16.mxu0 0
        %2327 = vmatpush1.bf16.msra.mxu0 0
        %2328 = vmatprep.mubr.bf16.mxu0 0
        %2329 = vmatmul.mubr.bf16.gmra.mrb[0].mxu0 %v2291
        %v2330 = vpop.f32.mrb[0].mxu0
        %v2331 = vadd.f32 0.0, %v2330
        %v2332 = vpop.f32.mrb[0].mxu0
        %v2333 = vpop.f32.mrb[0].mxu0
        %v2334 = vadd.f32 0.0, %v2333
        %v2335 = vpop.f32.mrb[0].mxu0
        %2336 = vmatprep.mubr.bf16.mxu0 0
        %2337 = vmatmul.mubr.bf16.gmra.mrb[0].mxu0 %v2294
        %v2338 = vpop.f32.mrb[0].mxu0
        %v2339 = vadd.f32 0.0, %v2338
        %v2340 = vpop.f32.mrb[0].mxu0
        %v2341 = vpop.f32.mrb[0].mxu0
        %v2342 = vadd.f32 0.0, %v2341
        %v2343 = vpop.f32.mrb[0].mxu0
        %2344 = vdwg.mxu0
        %v2345 = vadd.f32 %v2264, %v2331
        %v2346 = vadd.f32 %v2267, %v2334
        %v2347 = vadd.f32 %v2272, %v2339
        %v2348 = vadd.f32 %v2275, %v2342
        %v2353 = vunpack.c.l.b16 %v2140
        %v2354 = vunpack.c.l.b16 %v2141
        %v2355 = vunpack.c.l.b16 %v2142
        %v2356 = vunpack.c.l.b16 %v2143
        %v2357 = vpack.c.b16 %v2354, %v2353
        %v2358 = vpack.c.b16 %v2356, %v2355
        %v2362 = vsel %vm1463, %v2126, 0
        %v2365 = vsel %vm1463, %v2127, 0
        %2367 = vmatprep.subr.bf16.mxu0 0
        %2368 = vmatpush1.bf16.msra.mxu0 %v2357
        %2369 = vmatprep.subr.bf16.mxu0 0
        %2370 = vmatpush1.bf16.msra.mxu0 %v2358
        %2371 = vmatprep.subr.bf16.mxu0 0
        %2372 = vmatpush1.bf16.msra.mxu0 0
        %2373 = vmatprep.subr.bf16.mxu0 0
        %2374 = vmatpush1.bf16.msra.mxu0 0
        %2375 = vmatprep.subr.bf16.mxu0 0
        %2376 = vmatpush1.bf16.msra.mxu0 0
        %2377 = vmatprep.subr.bf16.mxu0 0
        %2378 = vmatpush1.bf16.msra.mxu0 0
        %2379 = vmatprep.subr.bf16.mxu0 0
        %2380 = vmatpush1.bf16.msra.mxu0 0
        %2381 = vmatprep.subr.bf16.mxu0 0
        %2382 = vmatpush1.bf16.msra.mxu0 0
        %2383 = vmatprep.subr.bf16.mxu0 0
        %2384 = vmatpush1.bf16.msra.mxu0 0
        %2385 = vmatprep.subr.bf16.mxu0 0
        %2386 = vmatpush1.bf16.msra.mxu0 0
        %2387 = vmatprep.subr.bf16.mxu0 0
        %2388 = vmatpush1.bf16.msra.mxu0 0
        %2389 = vmatprep.subr.bf16.mxu0 0
        %2390 = vmatpush1.bf16.msra.mxu0 0
        %2391 = vmatprep.subr.bf16.mxu0 0
        %2392 = vmatpush1.bf16.msra.mxu0 0
        %2393 = vmatprep.subr.bf16.mxu0 0
        %2394 = vmatpush1.bf16.msra.mxu0 0
        %2395 = vmatprep.subr.bf16.mxu0 0
        %2396 = vmatpush1.bf16.msra.mxu0 0
        %2397 = vmatprep.subr.bf16.mxu0 0
        %2398 = vmatpush1.bf16.msra.mxu0 0
        %2399 = vmatprep.mubr.bf16.mxu0 0
        %2400 = vmatmul.mubr.bf16.gmra.mrb[0].mxu0 %v2362
        %v2401 = vpop.f32.mrb[0].mxu0
        %v2402 = vadd.f32 0.0, %v2401
        %v2403 = vpop.f32.mrb[0].mxu0
        %v2404 = vpop.f32.mrb[0].mxu0
        %v2405 = vadd.f32 0.0, %v2404
        %v2406 = vpop.f32.mrb[0].mxu0
        %2407 = vmatprep.mubr.bf16.mxu0 0
        %2408 = vmatmul.mubr.bf16.gmra.mrb[0].mxu0 %v2365
        %v2409 = vpop.f32.mrb[0].mxu0
        %v2410 = vadd.f32 0.0, %v2409
        %v2411 = vpop.f32.mrb[0].mxu0
        %v2412 = vpop.f32.mrb[0].mxu0
        %v2413 = vadd.f32 0.0, %v2412
        %v2414 = vpop.f32.mrb[0].mxu0
        %2415 = vdwg.mxu0
        %v2416 = vadd.f32 %v2345, %v2402
        %v2417 = vadd.f32 %v2346, %v2405
        %v2418 = vadd.f32 %v2347, %v2410
        %v2419 = vadd.f32 %v2348, %v2413
        %v2420 = vadd.f32 %v595, %v2416
        %v2421 = vadd.f32 %v596, %v2417
        %v2422 = vadd.f32 %v597, %v2418
        %v2423 = vadd.f32 %v598, %v2419
        %v2424 = vlaneseq
        %v2425 = vshrl.u32 %v2424, 7
        %v2426 = vsub.s32 4, %v2425
        %v2427 = vrot.slane %v599, %v2426
        %v2428 = vadd.f32 %v2420, %v2427
        %v2429 = vadd.f32 %v2421, %v2427
        %v2430 = vadd.f32 %v2422, %v2427
        %v2431 = vadd.f32 %v2423, %v2427
        %2432 = vadd.xlane.f32.xlu0 %v2428
        %v2433 = vpop.xlane.xlu0 %2432
        %2434 = vadd.xlane.f32.xlu0 %v2429
        %v2435 = vpop.xlane.xlu0 %2434
        %2436 = vadd.xlane.f32.xlu0 %v2430
        %v2437 = vpop.xlane.xlu0 %2436
        %2438 = vadd.xlane.f32.xlu0 %v2431
        %v2439 = vpop.xlane.xlu0 %2438
        %v2440 = vmul.f32 %v2433, %v608
        %v2441 = vmul.f32 %v2435, %v608
        %v2442 = vmul.f32 %v2437, %v608
        %v2443 = vmul.f32 %v2439, %v608
        %v2444 = vsub.f32 %v2428, %v2440
        %v2445 = vsub.f32 %v2429, %v2441
        %v2446 = vsub.f32 %v2430, %v2442
        %v2447 = vsub.f32 %v2431, %v2443
        %v2448 = vmul.f32 %v2444, %v2444
        %v2449 = vmul.f32 %v2445, %v2445
        %v2450 = vmul.f32 %v2446, %v2446
        %v2451 = vmul.f32 %v2447, %v2447
        %2452 = vadd.xlane.f32.xlu0 %v2448
        %v2453 = vpop.xlane.xlu0 %2452
        %2454 = vadd.xlane.f32.xlu0 %v2449
        %v2455 = vpop.xlane.xlu0 %2454
        %2456 = vadd.xlane.f32.xlu0 %v2450
        %v2457 = vpop.xlane.xlu0 %2456
        %2458 = vadd.xlane.f32.xlu0 %v2451
        %v2459 = vpop.xlane.xlu0 %2458
        %v2460 = vmul.f32 %v2453, %v608
        %v2461 = vmul.f32 %v2455, %v608
        %v2462 = vmul.f32 %v2457, %v608
        %v2463 = vmul.f32 %v2459, %v608
        %v2464 = vadd.f32 %v2460, 1e-05
        %v2465 = vadd.f32 %v2461, 1e-05
        %v2466 = vadd.f32 %v2462, 1e-05
        %v2467 = vadd.f32 %v2463, 1e-05
        %v2468 = vrsqrt.pop %v2464
        %v2469 = vrsqrt.pop %v2465
        %v2470 = vrsqrt.pop %v2466
        %v2471 = vrsqrt.pop %v2467
        %v2472 = vmul.f32 %v2444, %v2468
        %v2473 = vmul.f32 %v2445, %v2469
        %v2474 = vmul.f32 %v2446, %v2470
        %v2475 = vmul.f32 %v2447, %v2471
        %v2476 = vlaneseq
        %v2477 = vshrl.u32 %v2476, 7
        %v2478 = vsub.s32 2, %v2477
        %v2479 = vrot.slane %v599, %v2478
        %v2480 = vmul.f32 %v2472, %v2479
        %v2481 = vmul.f32 %v2473, %v2479
        %v2482 = vmul.f32 %v2474, %v2479
        %v2483 = vmul.f32 %v2475, %v2479
        %v2484 = vlaneseq
        %v2485 = vshrl.u32 %v2484, 7
        %v2486 = vsub.s32 3, %v2485
        %v2487 = vrot.slane %v599, %v2486
        %v2488 = vadd.f32 %v2480, %v2487
        %v2489 = vadd.f32 %v2481, %v2487
        %v2490 = vadd.f32 %v2482, %v2487
        %v2491 = vadd.f32 %v2483, %v2487
        %v2492 = vpack.c.bf16 %v2489, %v2488
        %v2493 = vpack.c.bf16 %v2491, %v2490
        %v2494 = vld [vmem:[%s499] sm:$0xff]
        %v2495 = vld [vmem:[%s499 + $0x8] sm:$0xff]
        %v2496 = vld [vmem:[%s499 + $0x10] sm:$0xff]
        %v2497 = vld [vmem:[%s499 + $0x18] sm:$0xff]
        %v2498 = vld [vmem:[%s499 + $0x20] sm:$0xff]
        %v2499 = vld [vmem:[%s499 + $0x28] sm:$0xff]
        %v2500 = vld [vmem:[%s499 + $0x30] sm:$0xff]
        %v2501 = vld [vmem:[%s499 + $0x38] sm:$0xff]
        %v2502 = vld [vmem:[%s499 + $0x40] sm:$0xff]
        %v2503 = vld [vmem:[%s499 + $0x48] sm:$0xff]
        %v2504 = vld [vmem:[%s499 + $0x50] sm:$0xff]
        %v2505 = vld [vmem:[%s499 + $0x58] sm:$0xff]
        %v2506 = vld [vmem:[%s499 + $0x60] sm:$0xff]
        %v2507 = vld [vmem:[%s499 + $0x68] sm:$0xff]
        %v2508 = vld [vmem:[%s499 + $0x70] sm:$0xff]
        %v2509 = vld [vmem:[%s499 + $0x78] sm:$0xff]
        %v2510 = vld [vmem:[%s499 + $0x80] sm:$0xff]
        %v2511 = vld [vmem:[%s499 + $0x88] sm:$0xff]
        %v2512 = vld [vmem:[%s499 + $0x90] sm:$0xff]
        %v2513 = vld [vmem:[%s499 + $0x98] sm:$0xff]
        %v2514 = vld [vmem:[%s499 + $0xa0] sm:$0xff]
        %v2515 = vld [vmem:[%s499 + $0xa8] sm:$0xff]
        %v2516 = vld [vmem:[%s499 + $0xb0] sm:$0xff]
        %v2517 = vld [vmem:[%s499 + $0xb8] sm:$0xff]
        %v2518 = vld [vmem:[%s499 + $0xc0] sm:$0xff]
        %v2519 = vld [vmem:[%s499 + $0xc8] sm:$0xff]
        %v2520 = vld [vmem:[%s499 + $0xd0] sm:$0xff]
        %v2521 = vld [vmem:[%s499 + $0xd8] sm:$0xff]
        %v2522 = vld [vmem:[%s499 + $0xe0] sm:$0xff]
        %v2523 = vld [vmem:[%s499 + $0xe8] sm:$0xff]
        %v2524 = vld [vmem:[%s499 + $0xf0] sm:$0xff]
        %v2525 = vld [vmem:[%s499 + $0xf8] sm:$0xff]
        %v2526 = vld [vmem:[%s572] sm:$0xf]
        %v2528 = vlaneseq
        %v2529 = vshrl.u32 %v2528, 7
        %v2530 = vsub.s32 0, %v2529
        %v2531 = vrot.slane %v2526, %v2530
        %v2532 = vlaneseq
        %v2533 = vshrl.u32 %v2532, 7
        %v2534 = vsub.s32 1, %v2533
        %v2535 = vrot.slane %v2526, %v2534
        %v2536 = vlaneseq
        %v2537 = vshrl.u32 %v2536, 7
        %v2538 = vsub.s32 2, %v2537
        %v2539 = vrot.slane %v2526, %v2538
        %v2540 = vlaneseq
        %v2541 = vshrl.u32 %v2540, 7
        %v2542 = vsub.s32 3, %v2541
        %v2543 = vrot.slane %v2526, %v2542
        %v2580 = vunpack.c.l.b16 %v2494
        %v2581 = vunpack.c.h.b16 %v2494
        %v2582 = vunpack.c.l.b16 %v2495
        %v2583 = vunpack.c.h.b16 %v2495
        %v2584 = vunpack.c.l.b16 %v2496
        %v2585 = vunpack.c.h.b16 %v2496
        %v2586 = vunpack.c.l.b16 %v2497
        %v2587 = vunpack.c.h.b16 %v2497
        %v2588 = vunpack.c.l.b16 %v2498
        %v2589 = vunpack.c.h.b16 %v2498
        %v2590 = vunpack.c.l.b16 %v2499
        %v2591 = vunpack.c.h.b16 %v2499
        %v2592 = vunpack.c.l.b16 %v2500
        %v2593 = vunpack.c.h.b16 %v2500
        %v2594 = vunpack.c.l.b16 %v2501
        %v2595 = vunpack.c.h.b16 %v2501
        %v2596 = vunpack.c.l.b16 %v2502
        %v2597 = vunpack.c.h.b16 %v2502
        %v2598 = vunpack.c.l.b16 %v2503
        %v2599 = vunpack.c.h.b16 %v2503
        %v2600 = vunpack.c.l.b16 %v2504
        %v2601 = vunpack.c.h.b16 %v2504
        %v2602 = vunpack.c.l.b16 %v2505
        %v2603 = vunpack.c.h.b16 %v2505
        %v2604 = vunpack.c.l.b16 %v2506
        %v2605 = vunpack.c.h.b16 %v2506
        %v2606 = vunpack.c.l.b16 %v2507
        %v2607 = vunpack.c.h.b16 %v2507
        %v2608 = vunpack.c.l.b16 %v2508
        %v2609 = vunpack.c.h.b16 %v2508
        %v2610 = vunpack.c.l.b16 %v2509
        %v2611 = vunpack.c.h.b16 %v2509
        %v2612 = vunpack.c.l.b16 %v2510
        %v2613 = vunpack.c.h.b16 %v2510
        %v2614 = vunpack.c.l.b16 %v2511
        %v2615 = vunpack.c.h.b16 %v2511
        %v2616 = vunpack.c.l.b16 %v2512
        %v2617 = vunpack.c.h.b16 %v2512
        %v2618 = vunpack.c.l.b16 %v2513
        %v2619 = vunpack.c.h.b16 %v2513
        %v2620 = vunpack.c.l.b16 %v2514
        %v2621 = vunpack.c.h.b16 %v2514
        %v2622 = vunpack.c.l.b16 %v2515
        %v2623 = vunpack.c.h.b16 %v2515
        %v2624 = vunpack.c.l.b16 %v2516
        %v2625 = vunpack.c.h.b16 %v2516
        %v2626 = vunpack.c.l.b16 %v2517
        %v2627 = vunpack.c.h.b16 %v2517
        %v2628 = vunpack.c.l.b16 %v2518
        %v2629 = vunpack.c.h.b16 %v2518
        %v2630 = vunpack.c.l.b16 %v2519
        %v2631 = vunpack.c.h.b16 %v2519
        %v2632 = vunpack.c.l.b16 %v2520
        %v2633 = vunpack.c.h.b16 %v2520
        %v2634 = vunpack.c.l.b16 %v2521
        %v2635 = vunpack.c.h.b16 %v2521
        %v2636 = vunpack.c.l.b16 %v2522
        %v2637 = vunpack.c.h.b16 %v2522
        %v2638 = vunpack.c.l.b16 %v2523
        %v2639 = vunpack.c.h.b16 %v2523
        %v2640 = vunpack.c.l.b16 %v2524
        %v2641 = vunpack.c.h.b16 %v2524
        %v2642 = vunpack.c.l.b16 %v2525
        %v2643 = vunpack.c.h.b16 %v2525
        %v2644 = vpack.c.b16 %v2584, %v2580
        %v2645 = vpack.c.b16 %v2585, %v2581
        %v2646 = vpack.c.b16 %v2586, %v2582
        %v2647 = vpack.c.b16 %v2587, %v2583
        %v2648 = vpack.c.b16 %v2592, %v2588
        %v2649 = vpack.c.b16 %v2593, %v2589
        %v2650 = vpack.c.b16 %v2594, %v2590
        %v2651 = vpack.c.b16 %v2595, %v2591
        %v2652 = vpack.c.b16 %v2600, %v2596
        %v2653 = vpack.c.b16 %v2601, %v2597
        %v2654 = vpack.c.b16 %v2602, %v2598
        %v2655 = vpack.c.b16 %v2603, %v2599
        %v2656 = vpack.c.b16 %v2608, %v2604
        %v2657 = vpack.c.b16 %v2609, %v2605
        %v2658 = vpack.c.b16 %v2610, %v2606
        %v2659 = vpack.c.b16 %v2611, %v2607
        %v2660 = vpack.c.b16 %v2616, %v2612
        %v2661 = vpack.c.b16 %v2617, %v2613
        %v2662 = vpack.c.b16 %v2618, %v2614
        %v2663 = vpack.c.b16 %v2619, %v2615
        %v2664 = vpack.c.b16 %v2624, %v2620
        %v2665 = vpack.c.b16 %v2625, %v2621
        %v2666 = vpack.c.b16 %v2626, %v2622
        %v2667 = vpack.c.b16 %v2627, %v2623
        %v2668 = vpack.c.b16 %v2632, %v2628
        %v2669 = vpack.c.b16 %v2633, %v2629
        %v2670 = vpack.c.b16 %v2634, %v2630
        %v2671 = vpack.c.b16 %v2635, %v2631
        %v2672 = vpack.c.b16 %v2640, %v2636
        %v2673 = vpack.c.b16 %v2641, %v2637
        %v2674 = vpack.c.b16 %v2642, %v2638
        %v2675 = vpack.c.b16 %v2643, %v2639
        %2708 = vmatprep.subr.bf16.mxu0 %v2645
        %2709 = vmatpush1.bf16.msra.mxu0 %v2644
        %2710 = vmatprep.subr.bf16.mxu0 %v2649
        %2711 = vmatpush1.bf16.msra.mxu0 %v2648
        %2712 = vmatprep.subr.bf16.mxu0 %v2653
        %2713 = vmatpush1.bf16.msra.mxu0 %v2652
        %2714 = vmatprep.subr.bf16.mxu0 %v2657
        %2715 = vmatpush1.bf16.msra.mxu0 %v2656
        %2716 = vmatprep.subr.bf16.mxu0 %v2661
        %2717 = vmatpush1.bf16.msra.mxu0 %v2660
        %2718 = vmatprep.subr.bf16.mxu0 %v2665
        %2719 = vmatpush1.bf16.msra.mxu0 %v2664
        %2720 = vmatprep.subr.bf16.mxu0 %v2669
        %2721 = vmatpush1.bf16.msra.mxu0 %v2668
        %2722 = vmatprep.subr.bf16.mxu0 %v2673
        %2723 = vmatpush1.bf16.msra.mxu0 %v2672
        %2724 = vmatprep.subr.bf16.mxu0 0
        %2725 = vmatpush1.bf16.msra.mxu0 0
        %2726 = vmatprep.subr.bf16.mxu0 0
        %2727 = vmatpush1.bf16.msra.mxu0 0
        %2728 = vmatprep.subr.bf16.mxu0 0
        %2729 = vmatpush1.bf16.msra.mxu0 0
        %2730 = vmatprep.subr.bf16.mxu0 0
        %2731 = vmatpush1.bf16.msra.mxu0 0
        %2732 = vmatprep.subr.bf16.mxu0 0
        %2733 = vmatpush1.bf16.msra.mxu0 0
        %2734 = vmatprep.subr.bf16.mxu0 0
        %2735 = vmatpush1.bf16.msra.mxu0 0
        %2736 = vmatprep.subr.bf16.mxu0 0
        %2737 = vmatpush1.bf16.msra.mxu0 0
        %2738 = vmatprep.subr.bf16.mxu0 0
        %2739 = vmatpush1.bf16.msra.mxu0 0
        %2740 = vmatprep.mubr.bf16.mxu0 0
        %2741 = vmatmul.mubr.bf16.gmra.mrb[0].mxu0 %v2492
        %v2742 = vpop.f32.mrb[0].mxu0
        %v2743 = vadd.f32 %v2531, %v2742
        %v2744 = vpop.f32.mrb[0].mxu0
        %v2745 = vadd.f32 %v2535, %v2744
        %v2746 = vpop.f32.mrb[0].mxu0
        %v2747 = vadd.f32 %v2531, %v2746
        %v2748 = vpop.f32.mrb[0].mxu0
        %v2749 = vadd.f32 %v2535, %v2748
        %2750 = vmatprep.mubr.bf16.mxu0 0
        %2751 = vmatmul.mubr.bf16.gmra.mrb[0].mxu0 %v2493
        %v2752 = vpop.f32.mrb[0].mxu0
        %v2753 = vadd.f32 %v2531, %v2752
        %v2754 = vpop.f32.mrb[0].mxu0
        %v2755 = vadd.f32 %v2535, %v2754
        %v2756 = vpop.f32.mrb[0].mxu0
        %v2757 = vadd.f32 %v2531, %v2756
        %v2758 = vpop.f32.mrb[0].mxu0
        %v2759 = vadd.f32 %v2535, %v2758
        %2760 = vdwg.mxu0
        %2761 = vmatprep.subr.bf16.mxu0 %v2647
        %2762 = vmatpush1.bf16.msra.mxu0 %v2646
        %2763 = vmatprep.subr.bf16.mxu0 %v2651
        %2764 = vmatpush1.bf16.msra.mxu0 %v2650
        %2765 = vmatprep.subr.bf16.mxu0 %v2655
        %2766 = vmatpush1.bf16.msra.mxu0 %v2654
        %2767 = vmatprep.subr.bf16.mxu0 %v2659
        %2768 = vmatpush1.bf16.msra.mxu0 %v2658
        %2769 = vmatprep.subr.bf16.mxu0 %v2663
        %2770 = vmatpush1.bf16.msra.mxu0 %v2662
        %2771 = vmatprep.subr.bf16.mxu0 %v2667
        %2772 = vmatpush1.bf16.msra.mxu0 %v2666
        %2773 = vmatprep.subr.bf16.mxu0 %v2671
        %2774 = vmatpush1.bf16.msra.mxu0 %v2670
        %2775 = vmatprep.subr.bf16.mxu0 %v2675
        %2776 = vmatpush1.bf16.msra.mxu0 %v2674
        %2777 = vmatprep.subr.bf16.mxu0 0
        %2778 = vmatpush1.bf16.msra.mxu0 0
        %2779 = vmatprep.subr.bf16.mxu0 0
        %2780 = vmatpush1.bf16.msra.mxu0 0
        %2781 = vmatprep.subr.bf16.mxu0 0
        %2782 = vmatpush1.bf16.msra.mxu0 0
        %2783 = vmatprep.subr.bf16.mxu0 0
        %2784 = vmatpush1.bf16.msra.mxu0 0
        %2785 = vmatprep.subr.bf16.mxu0 0
        %2786 = vmatpush1.bf16.msra.mxu0 0
        %2787 = vmatprep.subr.bf16.mxu0 0
        %2788 = vmatpush1.bf16.msra.mxu0 0
        %2789 = vmatprep.subr.bf16.mxu0 0
        %2790 = vmatpush1.bf16.msra.mxu0 0
        %2791 = vmatprep.subr.bf16.mxu0 0
        %2792 = vmatpush1.bf16.msra.mxu0 0
        %2793 = vmatprep.mubr.bf16.mxu0 0
        %2794 = vmatmul.mubr.bf16.gmra.mrb[0].mxu0 %v2492
        %v2795 = vpop.f32.mrb[0].mxu0
        %v2796 = vadd.f32 %v2539, %v2795
        %v2797 = vpop.f32.mrb[0].mxu0
        %v2798 = vadd.f32 %v2543, %v2797
        %v2799 = vpop.f32.mrb[0].mxu0
        %v2800 = vadd.f32 %v2539, %v2799
        %v2801 = vpop.f32.mrb[0].mxu0
        %v2802 = vadd.f32 %v2543, %v2801
        %2803 = vmatprep.mubr.bf16.mxu0 0
        %2804 = vmatmul.mubr.bf16.gmra.mrb[0].mxu0 %v2493
        %v2805 = vpop.f32.mrb[0].mxu0
        %v2806 = vadd.f32 %v2539, %v2805
        %v2807 = vpop.f32.mrb[0].mxu0
        %v2808 = vadd.f32 %v2543, %v2807
        %v2809 = vpop.f32.mrb[0].mxu0
        %v2810 = vadd.f32 %v2539, %v2809
        %v2811 = vpop.f32.mrb[0].mxu0
        %v2812 = vadd.f32 %v2543, %v2811
        %2813 = vdwg.mxu0
        %v2814 = vmul.f32 %v2743, 0.5
        %v2815 = vmul.f32 %v2745, 0.5
        %v2816 = vmul.f32 %v2796, 0.5
        %v2817 = vmul.f32 %v2798, 0.5
        %v2818 = vmul.f32 %v2747, 0.5
        %v2819 = vmul.f32 %v2749, 0.5
        %v2820 = vmul.f32 %v2800, 0.5
        %v2821 = vmul.f32 %v2802, 0.5
        %v2822 = vmul.f32 %v2753, 0.5
        %v2823 = vmul.f32 %v2755, 0.5
        %v2824 = vmul.f32 %v2806, 0.5
        %v2825 = vmul.f32 %v2808, 0.5
        %v2826 = vmul.f32 %v2757, 0.5
        %v2827 = vmul.f32 %v2759, 0.5
        %v2828 = vmul.f32 %v2810, 0.5
        %v2829 = vmul.f32 %v2812, 0.5
        %v2830 = vmul.f32 %v2743, 0.044715
        %v2831 = vmul.f32 %v2745, 0.044715
        %v2832 = vmul.f32 %v2796, 0.044715
        %v2833 = vmul.f32 %v2798, 0.044715
        %v2834 = vmul.f32 %v2747, 0.044715
        %v2835 = vmul.f32 %v2749, 0.044715
        %v2836 = vmul.f32 %v2800, 0.044715
        %v2837 = vmul.f32 %v2802, 0.044715
        %v2838 = vmul.f32 %v2753, 0.044715
        %v2839 = vmul.f32 %v2755, 0.044715
        %v2840 = vmul.f32 %v2806, 0.044715
        %v2841 = vmul.f32 %v2808, 0.044715
        %v2842 = vmul.f32 %v2757, 0.044715
        %v2843 = vmul.f32 %v2759, 0.044715
        %v2844 = vmul.f32 %v2810, 0.044715
        %v2845 = vmul.f32 %v2812, 0.044715
        %v2846 = vmul.f32 %v2830, %v2743
        %v2847 = vmul.f32 %v2831, %v2745
        %v2848 = vmul.f32 %v2832, %v2796
        %v2849 = vmul.f32 %v2833, %v2798
        %v2850 = vmul.f32 %v2834, %v2747
        %v2851 = vmul.f32 %v2835, %v2749
        %v2852 = vmul.f32 %v2836, %v2800
        %v2853 = vmul.f32 %v2837, %v2802
        %v2854 = vmul.f32 %v2838, %v2753
        %v2855 = vmul.f32 %v2839, %v2755
        %v2856 = vmul.f32 %v2840, %v2806
        %v2857 = vmul.f32 %v2841, %v2808
        %v2858 = vmul.f32 %v2842, %v2757
        %v2859 = vmul.f32 %v2843, %v2759
        %v2860 = vmul.f32 %v2844, %v2810
        %v2861 = vmul.f32 %v2845, %v2812
        %v2862 = vmul.f32 %v2846, %v2743
        %v2863 = vmul.f32 %v2847, %v2745
        %v2864 = vmul.f32 %v2848, %v2796
        %v2865 = vmul.f32 %v2849, %v2798
        %v2866 = vmul.f32 %v2850, %v2747
        %v2867 = vmul.f32 %v2851, %v2749
        %v2868 = vmul.f32 %v2852, %v2800
        %v2869 = vmul.f32 %v2853, %v2802
        %v2870 = vmul.f32 %v2854, %v2753
        %v2871 = vmul.f32 %v2855, %v2755
        %v2872 = vmul.f32 %v2856, %v2806
        %v2873 = vmul.f32 %v2857, %v2808
        %v2874 = vmul.f32 %v2858, %v2757
        %v2875 = vmul.f32 %v2859, %v2759
        %v2876 = vmul.f32 %v2860, %v2810
        %v2877 = vmul.f32 %v2861, %v2812
        %v2878 = vadd.f32 %v2743, %v2862
        %v2879 = vadd.f32 %v2745, %v2863
        %v2880 = vadd.f32 %v2796, %v2864
        %v2881 = vadd.f32 %v2798, %v2865
        %v2882 = vadd.f32 %v2747, %v2866
        %v2883 = vadd.f32 %v2749, %v2867
        %v2884 = vadd.f32 %v2800, %v2868
        %v2885 = vadd.f32 %v2802, %v2869
        %v2886 = vadd.f32 %v2753, %v2870
        %v2887 = vadd.f32 %v2755, %v2871
        %v2888 = vadd.f32 %v2806, %v2872
        %v2889 = vadd.f32 %v2808, %v2873
        %v2890 = vadd.f32 %v2757, %v2874
        %v2891 = vadd.f32 %v2759, %v2875
        %v2892 = vadd.f32 %v2810, %v2876
        %v2893 = vadd.f32 %v2812, %v2877
        %v2894 = vmul.f32 %v2878, 0.7978846
        %v2895 = vmul.f32 %v2879, 0.7978846
        %v2896 = vmul.f32 %v2880, 0.7978846
        %v2897 = vmul.f32 %v2881, 0.7978846
        %v2898 = vmul.f32 %v2882, 0.7978846
        %v2899 = vmul.f32 %v2883, 0.7978846
        %v2900 = vmul.f32 %v2884, 0.7978846
        %v2901 = vmul.f32 %v2885, 0.7978846
        %v2902 = vmul.f32 %v2886, 0.7978846
        %v2903 = vmul.f32 %v2887, 0.7978846
        %v2904 = vmul.f32 %v2888, 0.7978846
        %v2905 = vmul.f32 %v2889, 0.7978846
        %v2906 = vmul.f32 %v2890, 0.7978846
        %v2907 = vmul.f32 %v2891, 0.7978846
        %v2908 = vmul.f32 %v2892, 0.7978846
        %v2909 = vmul.f32 %v2893, 0.7978846
        %v2910 = vtanh.pop %v2894
        %v2911 = vtanh.pop %v2895
        %v2912 = vtanh.pop %v2896
        %v2913 = vtanh.pop %v2897
        %v2914 = vtanh.pop %v2898
        %v2915 = vtanh.pop %v2899
        %v2916 = vtanh.pop %v2900
        %v2917 = vtanh.pop %v2901
        %v2918 = vtanh.pop %v2902
        %v2919 = vtanh.pop %v2903
        %v2920 = vtanh.pop %v2904
        %v2921 = vtanh.pop %v2905
        %v2922 = vtanh.pop %v2906
        %v2923 = vtanh.pop %v2907
        %v2924 = vtanh.pop %v2908
        %v2925 = vtanh.pop %v2909
        %v2926 = vadd.f32 %v2910, 1.0
        %v2927 = vadd.f32 %v2911, 1.0
        %v2928 = vadd.f32 %v2912, 1.0
        %v2929 = vadd.f32 %v2913, 1.0
        %v2930 = vadd.f32 %v2914, 1.0
        %v2931 = vadd.f32 %v2915, 1.0
        %v2932 = vadd.f32 %v2916, 1.0
        %v2933 = vadd.f32 %v2917, 1.0
        %v2934 = vadd.f32 %v2918, 1.0
        %v2935 = vadd.f32 %v2919, 1.0
        %v2936 = vadd.f32 %v2920, 1.0
        %v2937 = vadd.f32 %v2921, 1.0
        %v2938 = vadd.f32 %v2922, 1.0
        %v2939 = vadd.f32 %v2923, 1.0
        %v2940 = vadd.f32 %v2924, 1.0
        %v2941 = vadd.f32 %v2925, 1.0
        %v2942 = vmul.f32 %v2814, %v2926
        %v2943 = vmul.f32 %v2815, %v2927
        %v2944 = vmul.f32 %v2816, %v2928
        %v2945 = vmul.f32 %v2817, %v2929
        %v2946 = vmul.f32 %v2818, %v2930
        %v2947 = vmul.f32 %v2819, %v2931
        %v2948 = vmul.f32 %v2820, %v2932
        %v2949 = vmul.f32 %v2821, %v2933
        %v2950 = vmul.f32 %v2822, %v2934
        %v2951 = vmul.f32 %v2823, %v2935
        %v2952 = vmul.f32 %v2824, %v2936
        %v2953 = vmul.f32 %v2825, %v2937
        %v2954 = vmul.f32 %v2826, %v2938
        %v2955 = vmul.f32 %v2827, %v2939
        %v2956 = vmul.f32 %v2828, %v2940
        %v2957 = vmul.f32 %v2829, %v2941
        %v2958 = vpack.c.bf16 %v2946, %v2942
        %v2959 = vpack.c.bf16 %v2947, %v2943
        %v2960 = vpack.c.bf16 %v2948, %v2944
        %v2961 = vpack.c.bf16 %v2949, %v2945
        %v2962 = vpack.c.bf16 %v2954, %v2950
        %v2963 = vpack.c.bf16 %v2955, %v2951
        %v2964 = vpack.c.bf16 %v2956, %v2952
        %v2965 = vpack.c.bf16 %v2957, %v2953
        %v2966 = vld [vmem:[%s508] sm:$0xf]
        %v2967 = vld [vmem:[%s508 + $0x4] sm:$0xf]
        %v2968 = vld [vmem:[%s508 + $0x8] sm:$0xf]
        %v2969 = vld [vmem:[%s508 + $0xc] sm:$0xf]
        %v2970 = vld [vmem:[%s508 + $0x10] sm:$0xf]
        %v2971 = vld [vmem:[%s508 + $0x14] sm:$0xf]
        %v2972 = vld [vmem:[%s508 + $0x18] sm:$0xf]
        %v2973 = vld [vmem:[%s508 + $0x1c] sm:$0xf]
        %v2974 = vld [vmem:[%s508 + $0x20] sm:$0xf]
        %v2975 = vld [vmem:[%s508 + $0x24] sm:$0xf]
        %v2976 = vld [vmem:[%s508 + $0x28] sm:$0xf]
        %v2977 = vld [vmem:[%s508 + $0x2c] sm:$0xf]
        %v2978 = vld [vmem:[%s508 + $0x30] sm:$0xf]
        %v2979 = vld [vmem:[%s508 + $0x34] sm:$0xf]
        %v2980 = vld [vmem:[%s508 + $0x38] sm:$0xf]
        %v2981 = vld [vmem:[%s508 + $0x3c] sm:$0xf]
        %v2982 = vld [vmem:[%s508 + $0x40] sm:$0xf]
        %v2983 = vld [vmem:[%s508 + $0x44] sm:$0xf]
        %v2984 = vld [vmem:[%s508 + $0x48] sm:$0xf]
        %v2985 = vld [vmem:[%s508 + $0x4c] sm:$0xf]
        %v2986 = vld [vmem:[%s508 + $0x50] sm:$0xf]
        %v2987 = vld [vmem:[%s508 + $0x54] sm:$0xf]
        %v2988 = vld [vmem:[%s508 + $0x58] sm:$0xf]
        %v2989 = vld [vmem:[%s508 + $0x5c] sm:$0xf]
        %v2990 = vld [vmem:[%s508 + $0x60] sm:$0xf]
        %v2991 = vld [vmem:[%s508 + $0x64] sm:$0xf]
        %v2992 = vld [vmem:[%s508 + $0x68] sm:$0xf]
        %v2993 = vld [vmem:[%s508 + $0x6c] sm:$0xf]
        %v2994 = vld [vmem:[%s508 + $0x70] sm:$0xf]
        %v2995 = vld [vmem:[%s508 + $0x74] sm:$0xf]
        %v2996 = vld [vmem:[%s508 + $0x78] sm:$0xf]
        %v2997 = vld [vmem:[%s508 + $0x7c] sm:$0xf]
        %v2998 = vld [vmem:[%s508 + $0x80] sm:$0xf]
        %v2999 = vld [vmem:[%s508 + $0x84] sm:$0xf]
        %v3000 = vld [vmem:[%s508 + $0x88] sm:$0xf]
        %v3001 = vld [vmem:[%s508 + $0x8c] sm:$0xf]
        %v3002 = vld [vmem:[%s508 + $0x90] sm:$0xf]
        %v3003 = vld [vmem:[%s508 + $0x94] sm:$0xf]
        %v3004 = vld [vmem:[%s508 + $0x98] sm:$0xf]
        %v3005 = vld [vmem:[%s508 + $0x9c] sm:$0xf]
        %v3006 = vld [vmem:[%s508 + $0xa0] sm:$0xf]
        %v3007 = vld [vmem:[%s508 + $0xa4] sm:$0xf]
        %v3008 = vld [vmem:[%s508 + $0xa8] sm:$0xf]
        %v3009 = vld [vmem:[%s508 + $0xac] sm:$0xf]
        %v3010 = vld [vmem:[%s508 + $0xb0] sm:$0xf]
        %v3011 = vld [vmem:[%s508 + $0xb4] sm:$0xf]
        %v3012 = vld [vmem:[%s508 + $0xb8] sm:$0xf]
        %v3013 = vld [vmem:[%s508 + $0xbc] sm:$0xf]
        %v3014 = vld [vmem:[%s508 + $0xc0] sm:$0xf]
        %v3015 = vld [vmem:[%s508 + $0xc4] sm:$0xf]
        %v3016 = vld [vmem:[%s508 + $0xc8] sm:$0xf]
        %v3017 = vld [vmem:[%s508 + $0xcc] sm:$0xf]
        %v3018 = vld [vmem:[%s508 + $0xd0] sm:$0xf]
        %v3019 = vld [vmem:[%s508 + $0xd4] sm:$0xf]
        %v3020 = vld [vmem:[%s508 + $0xd8] sm:$0xf]
        %v3021 = vld [vmem:[%s508 + $0xdc] sm:$0xf]
        %v3022 = vld [vmem:[%s508 + $0xe0] sm:$0xf]
        %v3023 = vld [vmem:[%s508 + $0xe4] sm:$0xf]
        %v3024 = vld [vmem:[%s508 + $0xe8] sm:$0xf]
        %v3025 = vld [vmem:[%s508 + $0xec] sm:$0xf]
        %v3026 = vld [vmem:[%s508 + $0xf0] sm:$0xf]
        %v3027 = vld [vmem:[%s508 + $0xf4] sm:$0xf]
        %v3028 = vld [vmem:[%s508 + $0xf8] sm:$0xf]
        %v3029 = vld [vmem:[%s508 + $0xfc] sm:$0xf]
        %v3030 = vlaneseq
        %v3031 = vshrl.u32 %v3030, 7
        %v3032 = vsub.s32 5, %v3031
        %v3033 = vrot.slane %v599, %v3032
        %v3098 = vunpack.c.l.b16 %v2966
        %v3099 = vunpack.c.l.b16 %v2967
        %v3100 = vunpack.c.l.b16 %v2968
        %v3101 = vunpack.c.l.b16 %v2969
        %v3102 = vunpack.c.l.b16 %v2970
        %v3103 = vunpack.c.l.b16 %v2971
        %v3104 = vunpack.c.l.b16 %v2972
        %v3105 = vunpack.c.l.b16 %v2973
        %v3106 = vunpack.c.l.b16 %v2974
        %v3107 = vunpack.c.l.b16 %v2975
        %v3108 = vunpack.c.l.b16 %v2976
        %v3109 = vunpack.c.l.b16 %v2977
        %v3110 = vunpack.c.l.b16 %v2978
        %v3111 = vunpack.c.l.b16 %v2979
        %v3112 = vunpack.c.l.b16 %v2980
        %v3113 = vunpack.c.l.b16 %v2981
        %v3114 = vunpack.c.l.b16 %v2982
        %v3115 = vunpack.c.l.b16 %v2983
        %v3116 = vunpack.c.l.b16 %v2984
        %v3117 = vunpack.c.l.b16 %v2985
        %v3118 = vunpack.c.l.b16 %v2986
        %v3119 = vunpack.c.l.b16 %v2987
        %v3120 = vunpack.c.l.b16 %v2988
        %v3121 = vunpack.c.l.b16 %v2989
        %v3122 = vunpack.c.l.b16 %v2990
        %v3123 = vunpack.c.l.b16 %v2991
        %v3124 = vunpack.c.l.b16 %v2992
        %v3125 = vunpack.c.l.b16 %v2993
        %v3126 = vunpack.c.l.b16 %v2994
        %v3127 = vunpack.c.l.b16 %v2995
        %v3128 = vunpack.c.l.b16 %v2996
        %v3129 = vunpack.c.l.b16 %v2997
        %v3130 = vunpack.c.l.b16 %v2998
        %v3131 = vunpack.c.l.b16 %v2999
        %v3132 = vunpack.c.l.b16 %v3000
        %v3133 = vunpack.c.l.b16 %v3001
        %v3134 = vunpack.c.l.b16 %v3002
        %v3135 = vunpack.c.l.b16 %v3003
        %v3136 = vunpack.c.l.b16 %v3004
        %v3137 = vunpack.c.l.b16 %v3005
        %v3138 = vunpack.c.l.b16 %v3006
        %v3139 = vunpack.c.l.b16 %v3007
        %v3140 = vunpack.c.l.b16 %v3008
        %v3141 = vunpack.c.l.b16 %v3009
        %v3142 = vunpack.c.l.b16 %v3010
        %v3143 = vunpack.c.l.b16 %v3011
        %v3144 = vunpack.c.l.b16 %v3012
        %v3145 = vunpack.c.l.b16 %v3013
        %v3146 = vunpack.c.l.b16 %v3014
        %v3147 = vunpack.c.l.b16 %v3015
        %v3148 = vunpack.c.l.b16 %v3016
        %v3149 = vunpack.c.l.b16 %v3017
        %v3150 = vunpack.c.l.b16 %v3018
        %v3151 = vunpack.c.l.b16 %v3019
        %v3152 = vunpack.c.l.b16 %v3020
        %v3153 = vunpack.c.l.b16 %v3021
        %v3154 = vunpack.c.l.b16 %v3022
        %v3155 = vunpack.c.l.b16 %v3023
        %v3156 = vunpack.c.l.b16 %v3024
        %v3157 = vunpack.c.l.b16 %v3025
        %v3158 = vunpack.c.l.b16 %v3026
        %v3159 = vunpack.c.l.b16 %v3027
        %v3160 = vunpack.c.l.b16 %v3028
        %v3161 = vunpack.c.l.b16 %v3029
        %v3162 = vpack.c.b16 %v3099, %v3098
        %v3163 = vpack.c.b16 %v3101, %v3100
        %v3164 = vpack.c.b16 %v3103, %v3102
        %v3165 = vpack.c.b16 %v3105, %v3104
        %v3166 = vpack.c.b16 %v3107, %v3106
        %v3167 = vpack.c.b16 %v3109, %v3108
        %v3168 = vpack.c.b16 %v3111, %v3110
        %v3169 = vpack.c.b16 %v3113, %v3112
        %v3170 = vpack.c.b16 %v3115, %v3114
        %v3171 = vpack.c.b16 %v3117, %v3116
        %v3172 = vpack.c.b16 %v3119, %v3118
        %v3173 = vpack.c.b16 %v3121, %v3120
        %v3174 = vpack.c.b16 %v3123, %v3122
        %v3175 = vpack.c.b16 %v3125, %v3124
        %v3176 = vpack.c.b16 %v3127, %v3126
        %v3177 = vpack.c.b16 %v3129, %v3128
        %v3178 = vpack.c.b16 %v3131, %v3130
        %v3179 = vpack.c.b16 %v3133, %v3132
        %v3180 = vpack.c.b16 %v3135, %v3134
        %v3181 = vpack.c.b16 %v3137, %v3136
        %v3182 = vpack.c.b16 %v3139, %v3138
        %v3183 = vpack.c.b16 %v3141, %v3140
        %v3184 = vpack.c.b16 %v3143, %v3142
        %v3185 = vpack.c.b16 %v3145, %v3144
        %v3186 = vpack.c.b16 %v3147, %v3146
        %v3187 = vpack.c.b16 %v3149, %v3148
        %v3188 = vpack.c.b16 %v3151, %v3150
        %v3189 = vpack.c.b16 %v3153, %v3152
        %v3190 = vpack.c.b16 %v3155, %v3154
        %v3191 = vpack.c.b16 %v3157, %v3156
        %v3192 = vpack.c.b16 %v3159, %v3158
        %v3193 = vpack.c.b16 %v3161, %v3160
        %3226 = vmatprep.subr.bf16.mxu0 0
        %3227 = vmatpush1.bf16.msra.mxu0 %v3162
        %3228 = vmatprep.subr.bf16.mxu0 0
        %3229 = vmatpush1.bf16.msra.mxu0 %v3163
        %3230 = vmatprep.subr.bf16.mxu0 0
        %3231 = vmatpush1.bf16.msra.mxu0 %v3164
        %3232 = vmatprep.subr.bf16.mxu0 0
        %3233 = vmatpush1.bf16.msra.mxu0 %v3165
        %3234 = vmatprep.subr.bf16.mxu0 0
        %3235 = vmatpush1.bf16.msra.mxu0 %v3166
        %3236 = vmatprep.subr.bf16.mxu0 0
        %3237 = vmatpush1.bf16.msra.mxu0 %v3167
        %3238 = vmatprep.subr.bf16.mxu0 0
        %3239 = vmatpush1.bf16.msra.mxu0 %v3168
        %3240 = vmatprep.subr.bf16.mxu0 0
        %3241 = vmatpush1.bf16.msra.mxu0 %v3169
        %3242 = vmatprep.subr.bf16.mxu0 0
        %3243 = vmatpush1.bf16.msra.mxu0 %v3170
        %3244 = vmatprep.subr.bf16.mxu0 0
        %3245 = vmatpush1.bf16.msra.mxu0 %v3171
        %3246 = vmatprep.subr.bf16.mxu0 0
        %3247 = vmatpush1.bf16.msra.mxu0 %v3172
        %3248 = vmatprep.subr.bf16.mxu0 0
        %3249 = vmatpush1.bf16.msra.mxu0 %v3173
        %3250 = vmatprep.subr.bf16.mxu0 0
        %3251 = vmatpush1.bf16.msra.mxu0 %v3174
        %3252 = vmatprep.subr.bf16.mxu0 0
        %3253 = vmatpush1.bf16.msra.mxu0 %v3175
        %3254 = vmatprep.subr.bf16.mxu0 0
        %3255 = vmatpush1.bf16.msra.mxu0 %v3176
        %3256 = vmatprep.subr.bf16.mxu0 0
        %3257 = vmatpush1.bf16.msra.mxu0 %v3177
        %3258 = vmatprep.mubr.bf16.mxu0 %v2959
        %3259 = vmatmul.mubr.bf16.gmra.mrb[0].mxu0 %v2958
        %v3260 = vpop.f32.mrb[0].mxu0
        %v3261 = vadd.f32 %v3033, %v3260
        %v3262 = vpop.f32.mrb[0].mxu0
        %v3263 = vpop.f32.mrb[0].mxu0
        %v3264 = vadd.f32 %v3033, %v3263
        %v3265 = vpop.f32.mrb[0].mxu0
        %3266 = vmatprep.mubr.bf16.mxu0 %v2963
        %3267 = vmatmul.mubr.bf16.gmra.mrb[0].mxu0 %v2962
        %v3268 = vpop.f32.mrb[0].mxu0
        %v3269 = vadd.f32 %v3033, %v3268
        %v3270 = vpop.f32.mrb[0].mxu0
        %v3271 = vpop.f32.mrb[0].mxu0
        %v3272 = vadd.f32 %v3033, %v3271
        %v3273 = vpop.f32.mrb[0].mxu0
        %3274 = vdwg.mxu0
        %3275 = vmatprep.subr.bf16.mxu0 0
        %3276 = vmatpush1.bf16.msra.mxu0 %v3178
        %3277 = vmatprep.subr.bf16.mxu0 0
        %3278 = vmatpush1.bf16.msra.mxu0 %v3179
        %3279 = vmatprep.subr.bf16.mxu0 0
        %3280 = vmatpush1.bf16.msra.mxu0 %v3180
        %3281 = vmatprep.subr.bf16.mxu0 0
        %3282 = vmatpush1.bf16.msra.mxu0 %v3181
        %3283 = vmatprep.subr.bf16.mxu0 0
        %3284 = vmatpush1.bf16.msra.mxu0 %v3182
        %3285 = vmatprep.subr.bf16.mxu0 0
        %3286 = vmatpush1.bf16.msra.mxu0 %v3183
        %3287 = vmatprep.subr.bf16.mxu0 0
        %3288 = vmatpush1.bf16.msra.mxu0 %v3184
        %3289 = vmatprep.subr.bf16.mxu0 0
        %3290 = vmatpush1.bf16.msra.mxu0 %v3185
        %3291 = vmatprep.subr.bf16.mxu0 0
        %3292 = vmatpush1.bf16.msra.mxu0 %v3186
        %3293 = vmatprep.subr.bf16.mxu0 0
        %3294 = vmatpush1.bf16.msra.mxu0 %v3187
        %3295 = vmatprep.subr.bf16.mxu0 0
        %3296 = vmatpush1.bf16.msra.mxu0 %v3188
        %3297 = vmatprep.subr.bf16.mxu0 0
        %3298 = vmatpush1.bf16.msra.mxu0 %v3189
        %3299 = vmatprep.subr.bf16.mxu0 0
        %3300 = vmatpush1.bf16.msra.mxu0 %v3190
        %3301 = vmatprep.subr.bf16.mxu0 0
        %3302 = vmatpush1.bf16.msra.mxu0 %v3191
        %3303 = vmatprep.subr.bf16.mxu0 0
        %3304 = vmatpush1.bf16.msra.mxu0 %v3192
        %3305 = vmatprep.subr.bf16.mxu0 0
        %3306 = vmatpush1.bf16.msra.mxu0 %v3193
        %3307 = vmatprep.mubr.bf16.mxu0 %v2961
        %3308 = vmatmul.mubr.bf16.gmra.mrb[0].mxu0 %v2960
        %v3309 = vpop.f32.mrb[0].mxu0
        %v3310 = vadd.f32 %v3261, %v3309
        %v3311 = vpop.f32.mrb[0].mxu0
        %v3312 = vpop.f32.mrb[0].mxu0
        %v3313 = vadd.f32 %v3264, %v3312
        %v3314 = vpop.f32.mrb[0].mxu0
        %3315 = vmatprep.mubr.bf16.mxu0 %v2965
        %3316 = vmatmul.mubr.bf16.gmra.mrb[0].mxu0 %v2964
        %v3317 = vpop.f32.mrb[0].mxu0
        %v3318 = vadd.f32 %v3269, %v3317
        %v3319 = vpop.f32.mrb[0].mxu0
        %v3320 = vpop.f32.mrb[0].mxu0
        %v3321 = vadd.f32 %v3272, %v3320
        %v3322 = vpop.f32.mrb[0].mxu0
        %3323 = vdwg.mxu0
        %v3324 = vadd.f32 %v2428, %v3310
        %v3325 = vadd.f32 %v2429, %v3313
        %v3326 = vadd.f32 %v2430, %v3318
        %v3327 = vadd.f32 %v2431, %v3321
        %3328 = vst [vmem:[#allocation2] sm:$0xff] %v3324
        %3329 = vst [vmem:[#allocation2 + $0x8] sm:$0xff] %v3325
        %3330 = vst [vmem:[#allocation2 + $0x10] sm:$0xff] %v3326
        %3331 = vst [vmem:[#allocation2 + $0x18] sm:$0xff] %v3327
        %p3332 = scmp.eq.s32.totalorder %s29, 1
        // Predicated region
        $region89: #{tpu_custom_call.1} parent=59 // pred_check
          %p3333 = pneg %p3332
        $region90: #{tpu_custom_call.1} parent=59 // pred_check_branch
          %3335 = sbr.rel (%p3333) target = $region92
        $region91: #{tpu_custom_call.1} parent=59 // pred_region
          %v3336 = vld [vmem:[%s9] sm:$0x3]
          %3337 = vadd.xlane.f32.xlu0 %v3325
          %v3338 = vpop.xlane.xlu0 %3337
          %v3339 = vmul.f32 %v3338, %v608
          %v3340 = vsub.f32 %v3325, %v3339
          %v3341 = vmul.f32 %v3340, %v3340
          %3342 = vadd.xlane.f32.xlu0 %v3341
          %v3343 = vpop.xlane.xlu0 %3342
          %v3344 = vmul.f32 %v3343, %v608
          %v3345 = vadd.f32 %v3344, 1e-05
          %v3346 = vrsqrt.pop %v3345
          %v3347 = vmul.f32 %v3340, %v3346
          %v3348 = vlaneseq
          %v3349 = vshrl.u32 %v3348, 7
          %v3350 = vsub.s32 0, %v3349
          %v3351 = vrot.slane %v3336, %v3350
          %v3352 = vmul.f32 %v3347, %v3351
          %v3353 = vlaneseq
          %v3354 = vshrl.u32 %v3353, 7
          %v3355 = vsub.s32 1, %v3354
          %v3356 = vrot.slane %v3336, %v3355
          %v3357 = vadd.f32 %v3352, %v3356
          %3358 = vst [vmem:[#allocation12] sm:$0xff] %v3357
          %3359 = vadd.xlane.f32.xlu0 %v3327
          %v3360 = vpop.xlane.xlu0 %3359
          %v3361 = vmul.f32 %v3360, %v608
          %v3362 = vsub.f32 %v3327, %v3361
          %v3363 = vmul.f32 %v3362, %v3362
          %3364 = vadd.xlane.f32.xlu0 %v3363
          %v3365 = vpop.xlane.xlu0 %3364
          %v3366 = vmul.f32 %v3365, %v608
          %v3367 = vadd.f32 %v3366, 1e-05
          %v3368 = vrsqrt.pop %v3367
          %v3369 = vmul.f32 %v3362, %v3368
          %v3370 = vmul.f32 %v3369, %v3351
          %v3371 = vadd.f32 %v3370, %v3356
          %3372 = vst [vmem:[#allocation12 + $0x8] sm:$0xff] %v3371
        $region92: #{tpu_custom_call.1} parent=59 // pred_fallthru
          _
        // Predicated region
        $region93: #{tpu_custom_call.1} parent=59 // pred_check
          %p3373 = pneg %p304
        $region94: #{tpu_custom_call.1} parent=59 // pred_check_branch
          %3375 = sbr.rel (%p3373) target = $region96
        $region95: #{tpu_custom_call.1} parent=59 // pred_region
          %s3376 = smul.u32 2, %s28
          %s3378 = ssub.s32 256, 256
          %3379 = vsyncadd [#allocation5], %s3378
          %s3380 = smul.addr %s3376, 128
          %s3381 = scalar_lea.hbm %s10, %s3380
          %s3382 = sshll.u32 [#allocation12], 4
          %s3383 = int_to_ptr.vmem [resolvable:$true] %s3382
          %3388 = dma.vmem_to_hbm [thread:$0]  %s3383, 256, %s3381, [#allocation5], 128, 128, 8
        $region96: #{tpu_custom_call.1} parent=59 // pred_fallthru
          _
        // Predicated region
        $region97: #{tpu_custom_call.1} parent=59 // pred_check
          %p3389 = pneg %p304
        $region98: #{tpu_custom_call.1} parent=59 // pred_check_branch
          %3391 = sbr.rel (%p3389) target = $region100
        $region99: #{tpu_custom_call.1} parent=59 // pred_region
          %3392 = dma.done [#allocation5], 256
        $region100: #{tpu_custom_call.1} parent=59 // pred_fallthru
          _
      $region60: #{tpu_custom_call.1} parent=5 // pred_fallthru
        _
      %p3393 = scmp.le.s32.totalorder 2, %s19
      // Predicated region
      $region101: #{tpu_custom_call.1} parent=5 // pred_check
        %p3394 = pneg %p3393
      $region102: #{tpu_custom_call.1} parent=5 // pred_check_branch
        %3396 = sbr.rel (%p3394) target = $region104
      $region103: #{tpu_custom_call.1} parent=5 // pred_region
        %s3397 = ssub.s32 %s19, 2
      $region104: #{tpu_custom_call.1} parent=5 // pred_fallthru
        _
    $region6: #{tpu_custom_call.1} parent=1 // loop_footer
      %s23 = sadd.s32 1, %s19
    $region7: #{tpu_custom_call.1} parent=1 // loop_footer_branch
      %18 = sbr.rel target = $region3
    $region8: #{tpu_custom_call.1} parent=1 // loop_exit
      _
    %3398 = vsyncpa [#allocation4], 1
    %s3399 = scalar_lea.sflag [#allocation4], 1
    %3400 = vsyncpa %s3399, 1
    %3401 = vsyncpa [#allocation7], 1
    %3402 = vsyncpa [#allocation5], 1
    %s3403 = scalar_lea.sflag [#allocation5], 1
    %3404 = vsyncpa %s3403, 1

</llo_original>
